<compile_context>
chip_gen: v6e
topology: v6e:2x2x1
jax: 0.10.0
libtpu: 0.0.40
codegen_flags: <defaults>
</compile_context>

<pallas_src>
import jax
import jax.numpy as jnp
from jax.experimental import pallas as pl
from jax.experimental.pallas import tpu as pltpu


# ----------------------------- Pallas kernel -------------------------------
def _fsvd_kernel(data_ref, ue_ref, vblk_ref, mcat_ref, out_ref):
    # data_ref : (L+1, B*F)  rows 0..L-1 = xc (last-step removed), row L = x_last
    # ue_ref   : (L,   B*K)  u * wu, lane-dense over batch
    # vblk_ref : (B*K, B*F)  block-diagonal rhs: per-batch diag(ws*s) @ (vh*wv)
    # mcat_ref : (P,   2L)   [m2@m1 | m2] folded-FFT matrices (weight-only)
    # out_ref  : (P,   B*F)
    L = ue_ref.shape[0]
    xc = data_ref[:L, :]                  # static slice of the packed data slab
    x_last = data_ref[L:L + 1, :]         # (1, B*F)

    # SVD branch for ALL batches in one MXU push:
    # sin( (u*wu) @ diag(ws*s) @ (vh*wv) ) lane-packed as (L, B*F).
    sin_p = jnp.sin(jnp.dot(ue_ref[...], vblk_ref[...],
                            preferred_element_type=jnp.float32))

    # Fused output matmul: [m21 | m2] @ [xc ; sin_p]  ==  m2 @ (m1 @ xc + sin_p).
    stacked = jnp.concatenate([xc, sin_p], axis=0)        # (2L, B*F) sublane stack
    out = jnp.dot(mcat_ref[...], stacked, preferred_element_type=jnp.float32)
    out_ref[...] = out + x_last                           # residual last time step


# ------------------------- weight-only precompute ---------------------------
def fft_block_matrix(w_fft, n_out):
    """Fold FFT1D_block (fft over dim1 -> einsum('bix,io->box', ., W) ->
    ifft(n=n_out) -> real) into one real (n_out, L) matrix acting on the seq axis."""
    L = w_fft.shape[0]
    k = jnp.arange(L, dtype=jnp.float32)
    dft = jnp.exp(-2j * jnp.pi * jnp.outer(k, k) / L).astype(jnp.complex64)     # (L, L)
    a = w_fft.T.astype(jnp.complex64) @ dft                                     # (L, L)
    if n_out <= L:
        a = a[:n_out]                                                           # ifft truncation
    else:
        a = jnp.concatenate([a, jnp.zeros((n_out - L, L), jnp.complex64)], 0)   # zero-pad
    m = jnp.arange(n_out, dtype=jnp.float32)
    idft = (jnp.exp(2j * jnp.pi * jnp.outer(m, m) / n_out) / n_out).astype(jnp.complex64)
    return jnp.real(idft @ a).astype(jnp.float32)                               # (n_out, L)


def init_fsvd_params(w_fft1, w_svd, w_fft_out, pred_num):
    """Call ONCE at model init.  Everything here depends only on parameters."""
    L, F = w_svd.shape
    wu, ws, wv = jnp.linalg.svd(w_svd.astype(jnp.float32), full_matrices=False)
    wv_eff = (ws[:, None] * wv).astype(jnp.float32)      # (K, F): folds ws into wv
    m1 = fft_block_matrix(w_fft1, L)                     # (L, L)
    m2 = fft_block_matrix(w_fft_out, pred_num)           # (P, L)
    m_cat = jnp.concatenate([m2 @ m1, m2], axis=1)       # (P, 2L) = [m21 | m2]
    return {"wu": wu.astype(jnp.float32), "wv_eff": wv_eff, "m_cat": m_cat}


# --------------------------------- forward ----------------------------------
def f_svd_net_forward(x, params):
    """params must come from init_fsvd_params (weight precompute is hoisted)."""
    x = x.astype(jnp.float32)
    B, L, F = x.shape
    wu, wv_eff, m_cat = params["wu"], params["wv_eff"], params["m_cat"]
    K = wu.shape[1]
    P = m_cat.shape[0]
    # Shape guards: folded formulation assumes reduced SVDs of (L, F) matrices.
    assert K == min(L, F), f"K mismatch: {K} vs min({L},{F})"
    assert wu.shape == (L, K) and wv_eff.shape == (K, F) and m_cat.shape == (P, 2 * L)

    x_last = x[:, -1:, :]
    xc = x - x_last

    # TODO(synk): torch.linalg.svd has no Pallas equivalent; the factorization
    # stays in plain JAX (forward is invariant to paired SVD sign flips).
    u, s, vh = jnp.linalg.svd(xc, full_matrices=False)   # (B,L,K),(B,K),(B,K,F)

    # SVD epilogue (fuses on the XLA side): fold diag(ws*s) and wv into vh.
    ue = u * wu[None]                                    # (B, L, K)
    vh_scaled = s[..., None] * vh * wv_eff[None]         # (B, K, F)

    # Lane-dense packing: batch folded into the lane (last) axis.
    ue_p = jnp.transpose(ue, (1, 0, 2)).reshape(L, B * K).astype(jnp.float32)
    vblk = jnp.einsum('bc,bkf->bkcf', jnp.eye(B, dtype=jnp.float32),
                      vh_scaled).reshape(B * K, B * F).astype(jnp.float32)
    xc_p = jnp.transpose(xc, (1, 0, 2)).reshape(L, B * F)
    xl_p = jnp.transpose(x_last, (1, 0, 2)).reshape(1, B * F)
    data = jnp.concatenate([xc_p, xl_p], axis=0)         # (L+1, B*F)

    vmem = pl.BlockSpec(memory_space=pltpu.MemorySpace.VMEM)
    out_p = pl.pallas_call(
        _fsvd_kernel,
        out_shape=jax.ShapeDtypeStruct((P, B * F), jnp.float32),
        in_specs=[vmem] * 4,
        out_specs=vmem,
        # No grid: single invocation (problem is tiny; avoids per-step overhead).
        # Note (v7x): if many independent windows are batched, add a leading
        # "parallel" grid axis so both TensorCores get work.
    )(data, ue_p, vblk, m_cat)

    return jnp.transpose(out_p.reshape(P, B, F), (1, 0, 2))       # (B, P, F)


# ----------------------------- pure-JAX reference ---------------------------
def _ref_fft1d_block(x, w_fft, n_out):
    x_ft = jnp.fft.fft(x, axis=1)
    y_ft = jnp.einsum('bix,io->box', x_ft, w_fft)
    return jnp.real(jnp.fft.ifft(y_ft, n=n_out, axis=1))


def ref_forward(x, w_fft1, w_svd, w_fft_out, pred_num):
    x_last = x[:, -1:, :]
    xc = x - x_last
    u, s, vh = jnp.linalg.svd(xc, full_matrices=False)
    wu, ws, wv = jnp.linalg.svd(w_svd, full_matrices=False)
    s = ws * s
    u = u * wu
    vh = vh * wv
    out_svd = jnp.sin((u * s[:, None, :]) @ vh)          # u @ diag_embed(s) @ vh
    out1 = _ref_fft1d_block(xc, w_fft1, w_fft1.shape[1]) + out_svd
    out = _ref_fft1d_block(out1, w_fft_out, pred_num)
    return out + x_last


# ---------------------------------- main ------------------------------------
if __name__ == "__main__":
    B, channels, pred_num, F_channels = 2, 8, 4, 16     # x: (B, L=channels, F=F_channels)

    key = jax.random.PRNGKey(0)
    k1, k2, k3, k4, k5, kx = jax.random.split(key, 6)

    scale = 1.0 / (channels * channels)
    # FFT1D_block weights: complex, uniform [0,1) real & imag, scaled (torch.rand cfloat)
    w_fft1 = (scale * (jax.random.uniform(k1, (channels, channels))
                       + 1j * jax.random.uniform(k2, (channels, channels)))).astype(jnp.complex64)
    w_fft_out = (scale * (jax.random.uniform(k4, (channels, channels))
                          + 1j * jax.random.uniform(k5, (channels, channels)))).astype(jnp.complex64)
    # SVD_Block weight: uniform [0,1)
    w_svd = jax.random.uniform(k3, (channels, F_channels), dtype=jnp.float32)

    x = jax.random.uniform(kx, (B, channels, F_channels), dtype=jnp.float32)

    # Weight-only precompute: done once, outside the per-call path.
    params = jax.tree.map(jax.block_until_ready,
                          init_fsvd_params(w_fft1, w_svd, w_fft_out, pred_num))

    fwd = jax.jit(f_svd_net_forward)
    out = jax.block_until_ready(fwd(x, params))

    ref = jax.block_until_ready(ref_forward(x, w_fft1, w_svd, w_fft_out, pred_num))
    assert out.shape == (B, pred_num, F_channels)
    assert jnp.allclose(out, ref, rtol=1e-3, atol=1e-4), (
        f"max abs err {jnp.max(jnp.abs(out - ref))}")

    print("KERNEL_OK")
</pallas_src>

<mosaic_0001>
module attributes {stable_mosaic.version = 11 : i64} {
  func.func @_fsvd_kernel(%arg0: memref<9x32xf32, #tpu.memory_space<vmem>>, %arg1: memref<8x16xf32, #tpu.memory_space<vmem>>, %arg2: memref<16x32xf32, #tpu.memory_space<vmem>>, %arg3: memref<4x16xf32, #tpu.memory_space<vmem>>, %arg4: memref<4x32xf32, #tpu.memory_space<vmem>>) attributes {dimension_semantics = [], scalar_prefetch = 0 : i64, scratch_operands = 0 : i64, tpu.core_type = #tpu.core_type<tc>} {
    %c0 = arith.constant 0 : index
    %c0_0 = arith.constant 0 : index
    %0 = vector.load %arg0[%c0, %c0_0] : memref<9x32xf32, #tpu.memory_space<vmem>>, vector<8x32xf32>
    %c8 = arith.constant 8 : index
    %c0_1 = arith.constant 0 : index
    %1 = vector.load %arg0[%c8, %c0_1] : memref<9x32xf32, #tpu.memory_space<vmem>>, vector<1x32xf32>
    %c0_2 = arith.constant 0 : index
    %c0_3 = arith.constant 0 : index
    %2 = vector.load %arg1[%c0_2, %c0_3] : memref<8x16xf32, #tpu.memory_space<vmem>>, vector<8x16xf32>
    %c0_4 = arith.constant 0 : index
    %c0_5 = arith.constant 0 : index
    %3 = vector.load %arg2[%c0_4, %c0_5] : memref<16x32xf32, #tpu.memory_space<vmem>>, vector<16x32xf32>
    %cst = arith.constant dense<0.000000e+00> : vector<8x32xf32>
    %4 = tpu.matmul %2, %3, %cst {dimension_numbers = #tpu.dot_dimension_numbers<[1], [0], [0], [1], [0, 0, 1, 1], [], []>} : vector<8x16xf32>, vector<16x32xf32>, vector<8x32xf32> -> vector<8x32xf32>
    %5 = math.sin %4 : vector<8x32xf32>
    %6 = tpu.concatenate %0, %5 in 0 : vector<8x32xf32>, vector<8x32xf32> -> vector<16x32xf32>
    %c0_6 = arith.constant 0 : index
    %c0_7 = arith.constant 0 : index
    %7 = vector.load %arg3[%c0_6, %c0_7] : memref<4x16xf32, #tpu.memory_space<vmem>>, vector<4x16xf32>
    %cst_8 = arith.constant dense<0.000000e+00> : vector<4x32xf32>
    %8 = tpu.matmul %7, %6, %cst_8 {dimension_numbers = #tpu.dot_dimension_numbers<[1], [0], [0], [1], [0, 0, 1, 1], [], []>} : vector<4x16xf32>, vector<16x32xf32>, vector<4x32xf32> -> vector<4x32xf32>
    %9 = vector.broadcast %1 : vector<1x32xf32> to vector<4x32xf32>
    %10 = arith.addf %8, %9 : vector<4x32xf32>
    %c0_9 = arith.constant 0 : index
    %c0_10 = arith.constant 0 : index
    %11 = vector.load %arg4[%c0_9, %c0_10] : memref<4x32xf32, #tpu.memory_space<vmem>>, vector<4x32xf32>
    tpu.vector_store %arg4[%c0_9, %c0_10], %10 {strides = array<i32>} : memref<4x32xf32, #tpu.memory_space<vmem>>, vector<4x32xf32>,
    return
  }
}

</mosaic_0001>

<llo_original>
// kernel: custom-call.36
$region0: #{custom-call.36}
  %s0 = inlined_call_operand.vmem [shape: f32[2,16,8], index: 0, kind: input, shape index: {}]
  %s1 = inlined_call_operand.vmem [shape: f32[2,16,8], index: 1, kind: output, shape index: {0}]
  %s2 = inlined_call_operand.vmem [shape: f32[2,8], index: 2, kind: output, shape index: {1}]
  %3 = xla_tuple %s1, %s2
  $region1: #{custom-call.36} parent=0
    #allocation0 [shape = 'u8[16384]{0}', space=vmem, size = 0x4000, scoped, tag = 'operand span for operand 0']
    #allocation1 [shape = 'u8[16384]{0}', space=vmem, size = 0x4000, scoped, tag = 'operand span for operand 1']
    #allocation2 [shape = 'u8[4096]{0}', space=vmem, size = 0x1000, scoped, tag = 'operand span for operand 2']
    #allocation3 [shape = 'u8[2048]{0}', space=vmem, size = 0x800, scoped, tag = 'packed  for operand 2']
    loop: start=0, step=1, limit=4
    $region2: #{custom-call.36} parent=1 // loop_pre_header
      _
    $region3: #{custom-call.36} parent=1 // loop_header
      %s5 = sphi 0, %s9
      %p6 = scmp.ge.s32.totalorder %s5, 4
      %s12 = sphi 0, %s31
      %s13 = sphi 0, %s27
      %s14 = sphi 0, %s23
      %s15 = sphi 0, %s12
      %s16 = sphi 0, %s13
      %s17 = sphi 0, %s14
      %s18 = sphi 0, %s15
      %s19 = sphi 0, %s16
      %s20 = sphi 0, %s17
      %s46 = sphi 0, %s48
      %s49 = sphi 0, %s46
      %s50 = sphi 0, %s49
      %s66 = sphi 0, %s50
    $region4: #{custom-call.36} parent=1 // loop_header_branch
      %8 = sbr.rel (%p6) target = $region8
    $region5: #{custom-call.36} parent=1 // loop_body
      %s10 = ssub.s32 %s5, 1
      %s11 = ssub.s32 %s5, 2
      %s21 = sadd.s32 1, %s14
      %p22 = scmp.ge.s32.totalorder %s21, 1
      %s23 = scalar_select %p22, 0, %s21
      %s24 = sadd.s32 1, %s13
      %s25 = scalar_select %p22, %s24, %s13
      %p26 = scmp.ge.s32.totalorder %s25, 1
      %s27 = scalar_select %p26, 0, %s25
      %s28 = sadd.s32 1, %s12
      %s29 = scalar_select %p26, %s28, %s12
      %p30 = scmp.ge.s32.totalorder %s29, 2
      %s31 = scalar_select %p30, 0, %s29
      %p32 = scmp.lt.s32.totalorder %s12, 0
      %s33 = ssub.s32 0, %s12
      %s34 = scalar_select %p32, %s33, %s12
      %s35 = sshrl.u32 %s34, 3
      %s36 = ssub.s32 0, %s35
      %s37 = scalar_select %p32, %s36, %s35
      %p38 = scmp.lt.s32.totalorder %s31, 0
      %s39 = ssub.s32 0, %s31
      %s40 = scalar_select %p38, %s39, %s31
      %s41 = sshrl.u32 %s40, 3
      %s42 = ssub.s32 0, %s41
      %s43 = scalar_select %p38, %s42, %s41
      %s44 = ssub.s32 %s37, %s43
      %p45 = scmp.eq.s32.totalorder %s44, 0
      %s47 = sadd.s32 %s46, 1
      %s48 = scalar_select %p45, %s46, %s47
      %p51 = pneg %p45
      %p52 = scmp.eq.s32.totalorder %s5, 1
      %p53 = por %p51, %p52
      %p54 = scmp.ne.s32.totalorder %s46, %s49
      %p55 = scmp.eq.s32.totalorder %s5, 0
      %p56 = por %p54, %p55
      %p57 = scmp.ne.s32.totalorder %s46, %s49
      %p58 = scmp.eq.s32.totalorder %s10, 1
      %p59 = por %p57, %p58
      %p60 = scmp.ne.s32.totalorder %s49, %s50
      %p61 = scmp.eq.s32.totalorder %s10, 0
      %p62 = por %p60, %p61
      %p63 = scmp.ne.s32.totalorder %s49, %s50
      %p64 = scmp.eq.s32.totalorder %s11, 1
      %p65 = por %p63, %p64
      %p67 = scmp.ne.s32.totalorder %s50, %s66
      %p68 = scmp.eq.s32.totalorder %s11, 0
      %p69 = por %p67, %p68
      %p70 = scmp.le.s32.totalorder 1, %s5
      %p71 = scmp.lt.s32.totalorder %s5, 3
      %p72 = pnand %p70, %p71
      %p73 = pneg %p72
      // Predicated region
      $region9: #{custom-call.36} parent=5 // pred_check
        _
      $region10: #{custom-call.36} parent=5 // pred_check_branch
        %75 = sbr.rel (%p72) target = $region12
      $region11: #{custom-call.36} parent=5 // pred_region
        %s76 = ssub.s32 %s5, 1
      $region12: #{custom-call.36} parent=5 // pred_fallthru
        _
      %p77 = scmp.lt.s32.totalorder %s5, 2
      // Predicated region
      $region13: #{custom-call.36} parent=5 // pred_check
        %p78 = pneg %p77
      $region14: #{custom-call.36} parent=5 // pred_check_branch
        %80 = sbr.rel (%p78) target = $region16
      $region15: #{custom-call.36} parent=5 // pred_region
        %s81 = sand.u32 %s5, 1
        %s82 = sand.u32 %s5, 1
        %s83 = smul.addr %s82, 16
        %s84 = scalar_lea.vmem [#allocation0], %s83
        %s85 = smul.u32 2, %s13
        %s86 = sadd.s32 %s14, %s85
        %s87 = smul.addr %s12, 2
        %s88 = sadd.s32 %s86, %s87
        %s89 = smul.addr %s88, 8
        %s90 = scalar_lea.vmem %s0, %s89
        // Predicated region
        $region17: #{custom-call.36} parent=15 // pred_check
          _
        $region18: #{custom-call.36} parent=15 // pred_check_branch
          %92 = sbr.rel (0) target = $region20
        $region19: #{custom-call.36} parent=15 // pred_region
          // Predicated region
          $region21: #{custom-call.36} parent=19 // pred_check
            _
          $region22: #{custom-call.36} parent=19 // pred_check_branch
            %94 = sbr.rel (0) target = $region24
          $region23: #{custom-call.36} parent=19 // pred_region
            // Predicated region
            $region36: #{custom-call.36} parent=23 // pred_check
              _
            $region37: #{custom-call.36} parent=23 // pred_check_branch
              %112 = sbr.rel (0) target = $region39
            $region38: #{custom-call.36} parent=23 // pred_region
              loop: start=0, step=1, limit=1
              $region40: #{custom-call.36} parent=38 // loop_pre_header
                _
              $region41: #{custom-call.36} parent=38 // loop_header
                %s114 = sphi 0, %s118
                %p115 = scmp.ge.s32.totalorder %s114, 1
                %s119 = sphi %s90, %s90
                %s120 = sphi %s84, %s84
              $region42: #{custom-call.36} parent=38 // loop_header_branch
                %117 = sbr.rel (%p115) target = $region46
              $region43: #{custom-call.36} parent=38 // loop_body
                %v121 = vld [vmem:[%s119] sm:$0xff]
                %122 = vst [vmem:[%s120] sm:$0xff] %v121
                %v123 = vld [vmem:[%s119 + $0x8] sm:$0xff]
                %124 = vst [vmem:[%s120 + $0x8] sm:$0xff] %v123
              $region44: #{custom-call.36} parent=38 // loop_footer
                %s118 = sadd.s32 1, %s114
              $region45: #{custom-call.36} parent=38 // loop_footer_branch
                %113 = sbr.rel target = $region41
              $region46: #{custom-call.36} parent=38 // loop_exit
                _
            $region39: #{custom-call.36} parent=23 // pred_fallthru
              _
            // Predicated region
            $region47: #{custom-call.36} parent=23 // pred_check
              _
            $region48: #{custom-call.36} parent=23 // pred_check_branch
              %126 = sbr.rel target = $region50
            $region49: #{custom-call.36} parent=23 // pred_region
              _
            $region50: #{custom-call.36} parent=23 // pred_fallthru
              _
          $region24: #{custom-call.36} parent=19 // pred_fallthru
            _
          // Predicated region
          $region25: #{custom-call.36} parent=19 // pred_check
            _
          $region26: #{custom-call.36} parent=19 // pred_check_branch
            %96 = sbr.rel target = $region28
          $region27: #{custom-call.36} parent=19 // pred_region
            %s98 = ssub.s32 256, 1
            loop: start=0, step=1, limit=1
            $region29: #{custom-call.36} parent=27 // loop_pre_header
              _
            $region30: #{custom-call.36} parent=27 // loop_header
              %s100 = sphi 0, %s104
              %p101 = scmp.ge.s32.totalorder %s100, 1
              %s105 = sphi %s90, %s90
              %s106 = sphi %s84, %s84
            $region31: #{custom-call.36} parent=27 // loop_header_branch
              %103 = sbr.rel (%p101) target = $region35
            $region32: #{custom-call.36} parent=27 // loop_body
              %v107 = vld [vmem:[%s105] sm:%s98]
              %108 = vst [vmem:[%s106] sm:%s98] %v107
              %v109 = vld [vmem:[%s105 + $0x8] sm:%s98]
              %110 = vst [vmem:[%s106 + $0x8] sm:%s98] %v109
            $region33: #{custom-call.36} parent=27 // loop_footer
              %s104 = sadd.s32 1, %s100
            $region34: #{custom-call.36} parent=27 // loop_footer_branch
              %99 = sbr.rel target = $region30
            $region35: #{custom-call.36} parent=27 // loop_exit
              _
          $region28: #{custom-call.36} parent=19 // pred_fallthru
            _
        $region20: #{custom-call.36} parent=15 // pred_fallthru
          _
        %127 = vnop
      $region16: #{custom-call.36} parent=5 // pred_fallthru
        _
      %p128 = scmp.le.s32.totalorder 1, %s5
      %p129 = scmp.lt.s32.totalorder %s5, 3
      %p130 = pnand %p128, %p129
      %p131 = pneg %p130
      // Predicated region
      $region51: #{custom-call.36} parent=5 // pred_check
        _
      $region52: #{custom-call.36} parent=5 // pred_check_branch
        %133 = sbr.rel (%p130) target = $region54
      $region53: #{custom-call.36} parent=5 // pred_region
        #allocation4 [shape = 'f32[16,128]{1,0}', space=vmem, size = 0x2000, scoped, tag = 'scratch for Householder reflectors']
        %s134 = ssub.s32 %s5, 1
        %s135 = sand.u32 %s10, 1
        %s136 = sand.u32 %s10, 1
        %s137 = smul.addr %s136, 16
        %s138 = scalar_lea.vmem [#allocation0], %s137
        %s139 = sand.u32 %s10, 1
        %s140 = sand.u32 %s10, 1
        %s141 = smul.addr %s140, 16
        %s142 = scalar_lea.vmem [#allocation0], %s141
        %s143 = sand.u32 %s10, 1
        %s144 = sand.u32 %s10, 1
        %s145 = smul.addr %s144, 16
        %s146 = scalar_lea.vmem [#allocation1], %s145
        %p147 = pneg %p62
        %p148 = pneg %p59
        %s149 = sand.u32 %s49, 1
        %s150 = sand.u32 %s49, 1
        %s151 = smul.addr %s150, 2
        %s152 = scalar_lea.vmem [#allocation3], %s151
        %s153 = smul.u32 2, %s16
        %s154 = smul.u32 2, %s16
        %p155 = scmp.lt.s32.totalorder %s15, 0
        %s156 = ssub.s32 0, %s15
        %s157 = scalar_select %p155, %s156, %s15
        %s158 = sshrl.u32 %s157, 3
        %s159 = ssub.s32 0, %s158
        %s160 = scalar_select %p155, %s159, %s158
        %s161 = sand.u32 %s15, 7
        %s162 = scalar_lea.vmem [#allocation2], %s161
        %v163 = vld [vmem:[%s138] sm:$0xff]
        %164 = vst [vmem:[%s146] sm:$0xff] %v163
        %s165 = scalar_lea.vmem %s146, 8 [#allocation1]
        %s166 = scalar_lea.vmem %s138, 8 [#allocation0]
        %v167 = vld [vmem:[%s166] sm:$0xff]
        %168 = vst [vmem:[%s165] sm:$0xff] %v167
        %169 = vst [vmem:[%s162] sm:$0x1] 0.0
        loop: start=0, step=1, limit=8
        $region55: #{custom-call.36} parent=53 // loop_pre_header
          _
        $region56: #{custom-call.36} parent=53 // loop_header
          %s171 = sphi 0, %s175
          %p172 = scmp.ge.s32.totalorder %s171, 8
        $region57: #{custom-call.36} parent=53 // loop_header_branch
          %174 = sbr.rel (%p172) target = $region61
        $region58: #{custom-call.36} parent=53 // loop_body
          %v176 = vld [vmem:[%s146] sm:$0xff]
          %v177 = vlaneseq
          %v178 = vshrl.u32 %v177, 7
          %v180 = vstv %s171
          %vm181 = vcmp.gt.s32.totalorder %v178, %v180
          %v182 = vsel %vm181, %v176, 0.0
          %v183 = vmul.f32 %v182, %v182
          %s184 = scalar_lea.vmem %s146, 8 [#allocation1]
          %v185 = vld [vmem:[%s184] sm:$0xff]
          %v186 = vlaneseq
          %v187 = vshrl.u32 %v186, 7
          %v188 = vadd.s32 %v187, 8
          %v189 = vstv %s171
          %vm190 = vcmp.gt.s32.totalorder %v188, %v189
          %vm191 = vcmp.lt.s32.totalorder %v188, 16
          %vm192 = vmand %vm190, %vm191
          %v193 = vsel %vm192, %v185, 0.0
          %v194 = vmul.f32 %v193, %v193
          %v195 = vadd.f32 %v183, %v194
          %v196 = vrot.slane %v195, 4
          %v197 = vadd.f32 %v195, %v196
          %v198 = vrot.slane %v197, 2
          %v199 = vadd.f32 %v197, %v198
          %v200 = vrot.slane %v199, 1
          %v201 = vadd.f32 %v199, %v200
          %v202 = vrsqrt.pop %v201
          %v203 = vmul.f32 %v201, %v202
          %vm204 = vcmp.eq.f32.partialorder %v201, inf
          %v205 = vsel %vm204, %v201, %v203
          %vm206 = vcmp.eq.f32.partialorder %v201, 0.0
          %v207 = vand.u32 %v201, 2147483648
          %v208 = vsel %vm206, %v207, %v205
          %vm209 = vcmp.eq.f32.partialorder %v201, 0.0
          %s210 = sshrl.u32 %s171, 3
          %s211 = sand.u32 %s171, 7
          %s212 = smul.addr %s210, 8
          %s213 = sadd.s32 %s211, %s212
          %s214 = scalar_lea.vmem %s146, %s213 [#allocation1]
          %v215 = vld [vmem:[%s214] ss:$0 sm:$0xff]
          %v216 = vand.u32 2147483647, %v215
          %v217 = vmax.f32 %v216, 0.0
          %v218 = vand.u32 2147483647, %v208
          %v219 = vmax.f32 %v217, %v218
          %v220 = vrcp.pop %v219
          %v221 = vmul.f32 %v216, %v220
          %v222 = vmul.f32 %v221, %v221
          %v223 = vrcp.pop %v219
          %v224 = vmul.f32 0.0, %v223
          %v225 = vmul.f32 %v224, %v224
          %v226 = vadd.f32 %v222, %v225
          %v227 = vrcp.pop %v219
          %v228 = vmul.f32 %v218, %v227
          %v229 = vmul.f32 %v228, %v228
          %v230 = vadd.f32 %v226, %v229
          %vm231 = vcmp.eq.f32.partialorder %v219, 0.0
          %v232 = vrsqrt.pop %v230
          %v233 = vmul.f32 %v230, %v232
          %vm234 = vcmp.eq.f32.partialorder %v230, inf
          %v235 = vsel %vm234, %v230, %v233
          %vm236 = vcmp.eq.f32.partialorder %v230, 0.0
          %v237 = vand.u32 %v230, 2147483648
          %v238 = vsel %vm236, %v237, %v235
          %v239 = vmul.f32 %v219, %v238
          %v240 = vsel %vm231, 0.0, %v239
          %vm241 = vcmp.lt.f32.partialorder %v215, 0.0
          %v242 = vxor.u32 %v240, 2147483648
          %v243 = vsel %vm241, %v240, %v242
          %v244 = vsub.f32 %v243, %v215
          %v245 = vrcp.pop %v243
          %v246 = vmul.f32 %v244, %v245
          %v247 = vsel %vm209, %v215, %v243
          %v248 = vsel %vm209, 0.0, %v246
          %v249 = vsub.f32 %v215, %v247
          %s250 = smov %s146
          %v251 = vlaneseq
          %v252 = vshrl.u32 %v251, 7
          %v253 = vmov %v252
          %v254 = vld [vmem:[%s250] sm:$0xff]
          %v256 = vstv %s171
          %vm257 = vcmp.gt.s32.totalorder %v253, %v256
          %v258 = vsel %vm257, %v254, 0.0
          %v259 = vrcp.pop %v249
          %v260 = vmul.f32 %v258, %v259
          %v261 = vsel %vm209, 0.0, %v260
          %v262 = vstv %s171
          %v263 = vlaneseq
          %v264 = vand.u32 %v263, 127
          %vm265 = vcmp.eq.s32.totalorder %v264, %v262
          %v266 = vsel %vm265, %v261, 0.0
          %267 = vadd.xlane.f32.xlu0 %v266
          %v268 = vpop.xlane.xlu0 %267
          %269 = vst [vmem:[#allocation4] sm:$0xff] %v268
          %s270 = scalar_lea.vmem %s250, 8
          %v271 = vld [vmem:[%s270] sm:$0xff]
          %v272 = vadd.s32 %v253, 8
          %v273 = vstv %s171
          %vm274 = vcmp.gt.s32.totalorder %v272, %v273
          %vm275 = vcmp.lt.s32.totalorder %v272, 16
          %vm276 = vmand %vm274, %vm275
          %v277 = vsel %vm276, %v271, 0.0
          %v278 = vrcp.pop %v249
          %v279 = vmul.f32 %v277, %v278
          %v280 = vsel %vm209, 0.0, %v279
          %v281 = vstv %s171
          %v282 = vlaneseq
          %v283 = vand.u32 %v282, 127
          %vm284 = vcmp.eq.s32.totalorder %v283, %v281
          %v285 = vsel %vm284, %v280, 0.0
          %286 = vadd.xlane.f32.xlu0 %v285
          %v287 = vpop.xlane.xlu0 %286
          %s288 = scalar_lea.vmem [#allocation4], 8
          %289 = vst [vmem:[%s288] sm:$0xff] %v287
          %s290 = scalar_lea.vmem [#allocation4], %s171
          %291 = vst [vmem:[%s290] sm:$0x1] 1.0
          %v292 = vstv %s171
          %v293 = vlaneseq
          %v294 = vand.u32 %v293, 127
          %vm295 = vcmp.eq.s32.totalorder %v294, %v292
          %v296 = vsel %vm295, %v248, 0.0
          %297 = vadd.xlane.f32.xlu0 %v296
          %v298 = vpop.xlane.xlu0 %297
          %v299 = vstv %s171
          %v300 = vlaneseq
          %v301 = vand.u32 %v300, 127
          %vm302 = vcmp.eq.s32.totalorder %v301, %v299
          %v303 = vld [vmem:[%s162] ss:$0 sm:$0xff]
          %v304 = vsel %vm302, %v298, %v303
          %305 = vst [vmem:[%s162] sm:$0x1] %v304
          %s306 = smov %s146
          %s307 = smov [#allocation4]
          %v308 = vlaneseq
          %v309 = vshrl.u32 %v308, 7
          %v310 = vmov %v309
          %v312 = vld [vmem:[%s307] sm:$0xff]
          %v313 = vld [vmem:[%s306] sm:$0xff]
          %v314 = vmul.f32 %v312, %v313
          %v315 = vadd.s32 %v310, 8
          %s316 = scalar_lea.vmem %s307, 8
          %v317 = vld [vmem:[%s316] sm:$0xff]
          %s318 = scalar_lea.vmem %s306, 8
          %v319 = vld [vmem:[%s318] sm:$0xff]
          %v320 = vmul.f32 %v317, %v319
          %vm321 = vcmp.lt.s32.totalorder %v315, 16
          %v322 = vsel %vm321, %v320, 0.0
          %v323 = vadd.f32 %v314, %v322
          %v324 = vrot.slane %v323, 4
          %v325 = vadd.f32 %v323, %v324
          %v326 = vrot.slane %v325, 2
          %v327 = vadd.f32 %v325, %v326
          %v328 = vrot.slane %v327, 1
          %v329 = vadd.f32 %v327, %v328
          %s330 = smov %s306
          %s331 = smov %s307
          %v332 = vlaneseq
          %v333 = vshrl.u32 %v332, 7
          %v334 = vmov %v333
          %v335 = vmul.f32 %v329, %v298
          %v337 = vlaneseq
          %v338 = vand.u32 %v337, 127
          %v339 = vld [vmem:[%s331] sm:$0xff]
          %v340 = vmul.f32 %v339, %v335
          %v341 = vld [vmem:[%s330] sm:$0xff]
          %v342 = vstv %s171
          %vm343 = vcmp.gt.s32.totalorder %v338, %v342
          %v344 = vsub.f32 %v341, %v340
          %v345 = vsel %vm343, %v344, %v341
          %v346 = vstv %s171
          %v347 = vlaneseq
          %v348 = vand.u32 %v347, 127
          %vm349 = vcmp.eq.s32.totalorder %v348, %v346
          %v350 = vstv %s171
          %vm351 = vcmp.ge.s32.totalorder %v334, %v350
          %vm352 = vmand %vm349, %vm351
          %v353 = vsel %vm352, %v339, %v345
          %354 = vst [vmem:[%s330] sm:$0xff] %v353
          %v355 = vadd.s32 %v334, 8
          %v356 = vlaneseq
          %v357 = vand.u32 %v356, 127
          %s358 = scalar_lea.vmem %s331, 8
          %v359 = vld [vmem:[%s358] sm:$0xff]
          %v360 = vmul.f32 %v359, %v335
          %s361 = scalar_lea.vmem %s330, 8
          %v362 = vld [vmem:[%s361] sm:$0xff]
          %v363 = vstv %s171
          %vm364 = vcmp.gt.s32.totalorder %v357, %v363
          %v365 = vsub.f32 %v362, %v360
          %v366 = vsel %vm364, %v365, %v362
          %v367 = vstv %s171
          %v368 = vlaneseq
          %v369 = vand.u32 %v368, 127
          %vm370 = vcmp.eq.s32.totalorder %v369, %v367
          %v371 = vstv %s171
          %vm372 = vcmp.ge.s32.totalorder %v355, %v371
          %vm373 = vmand %vm370, %vm372
          %v374 = vsel %vm373, %v359, %v366
          %375 = vst [vmem:[%s361] sm:$0xff] %v374
          %s376 = scalar_lea.vmem %s330, %s171
          %v377 = vld [vmem:[%s376] ss:$0 sm:$0xff]
          %v378 = vstv %s171
          %v379 = vlaneseq
          %v380 = vand.u32 %v379, 127
          %vm381 = vcmp.eq.s32.totalorder %v380, %v378
          %v382 = vsel %vm381, %v247, %v377
          %383 = vst [vmem:[%s376] sm:$0x1] %v382
        $region59: #{custom-call.36} parent=53 // loop_footer
          %s175 = sadd.s32 1, %s171
        $region60: #{custom-call.36} parent=53 // loop_footer_branch
          %170 = sbr.rel target = $region56
        $region61: #{custom-call.36} parent=53 // loop_exit
          _
        %s385 = sshll.u32 1, 2
        %s386 = ssub.s32 %s385, 1
        %v388 = vld [vmem:[#allocation2] sm:%s386]
        %s389 = sshll.u32 1, 2
        %s390 = ssub.s32 %s389, 1
        %391 = vst [vmem:[%s152] sm:%s390] %v388
        %s392 = sand.u32 %s10, 1
        %s393 = sand.u32 %s10, 1
        %s394 = smul.addr %s393, 16
        %s395 = scalar_lea.vmem [#allocation1], %s394
        %s396 = sand.u32 %s49, 1
        %s397 = sand.u32 %s49, 1
        %s398 = smul.addr %s397, 2
        %s399 = scalar_lea.vmem [#allocation3], %s398
        %s400 = smul.u32 2, %s16
        %s401 = sadd.s32 %s17, %s400
        %s402 = smul.addr %s15, 2
        %s403 = sadd.s32 %s401, %s402
        %s404 = smul.addr %s403, 8
        %s405 = scalar_lea.vmem %s1, %s404
        // Predicated region
        $region62: #{custom-call.36} parent=53 // pred_check
          _
        $region63: #{custom-call.36} parent=53 // pred_check_branch
          %407 = sbr.rel (0) target = $region65
        $region64: #{custom-call.36} parent=53 // pred_region
          // Predicated region
          $region66: #{custom-call.36} parent=64 // pred_check
            _
          $region67: #{custom-call.36} parent=64 // pred_check_branch
            %409 = sbr.rel (0) target = $region69
          $region68: #{custom-call.36} parent=64 // pred_region
            // Predicated region
            $region81: #{custom-call.36} parent=68 // pred_check
              _
            $region82: #{custom-call.36} parent=68 // pred_check_branch
              %427 = sbr.rel (0) target = $region84
            $region83: #{custom-call.36} parent=68 // pred_region
              loop: start=0, step=1, limit=1
              $region85: #{custom-call.36} parent=83 // loop_pre_header
                _
              $region86: #{custom-call.36} parent=83 // loop_header
                %s429 = sphi 0, %s433
                %p430 = scmp.ge.s32.totalorder %s429, 1
                %s434 = sphi %s395, %s395
                %s435 = sphi %s405, %s405
              $region87: #{custom-call.36} parent=83 // loop_header_branch
                %432 = sbr.rel (%p430) target = $region91
              $region88: #{custom-call.36} parent=83 // loop_body
                %v436 = vld [vmem:[%s434] sm:$0xff]
                %437 = vst [vmem:[%s435] sm:$0xff] %v436
                %v438 = vld [vmem:[%s434 + $0x8] sm:$0xff]
                %439 = vst [vmem:[%s435 + $0x8] sm:$0xff] %v438
              $region89: #{custom-call.36} parent=83 // loop_footer
                %s433 = sadd.s32 1, %s429
              $region90: #{custom-call.36} parent=83 // loop_footer_branch
                %428 = sbr.rel target = $region86
              $region91: #{custom-call.36} parent=83 // loop_exit
                _
            $region84: #{custom-call.36} parent=68 // pred_fallthru
              _
            // Predicated region
            $region92: #{custom-call.36} parent=68 // pred_check
              _
            $region93: #{custom-call.36} parent=68 // pred_check_branch
              %441 = sbr.rel target = $region95
            $region94: #{custom-call.36} parent=68 // pred_region
              _
            $region95: #{custom-call.36} parent=68 // pred_fallthru
              _
          $region69: #{custom-call.36} parent=64 // pred_fallthru
            _
          // Predicated region
          $region70: #{custom-call.36} parent=64 // pred_check
            _
          $region71: #{custom-call.36} parent=64 // pred_check_branch
            %411 = sbr.rel target = $region73
          $region72: #{custom-call.36} parent=64 // pred_region
            %s413 = ssub.s32 256, 1
            loop: start=0, step=1, limit=1
            $region74: #{custom-call.36} parent=72 // loop_pre_header
              _
            $region75: #{custom-call.36} parent=72 // loop_header
              %s415 = sphi 0, %s419
              %p416 = scmp.ge.s32.totalorder %s415, 1
              %s420 = sphi %s395, %s395
              %s421 = sphi %s405, %s405
            $region76: #{custom-call.36} parent=72 // loop_header_branch
              %418 = sbr.rel (%p416) target = $region80
            $region77: #{custom-call.36} parent=72 // loop_body
              %v422 = vld [vmem:[%s420] sm:%s413]
              %423 = vst [vmem:[%s421] sm:%s413] %v422
              %v424 = vld [vmem:[%s420 + $0x8] sm:%s413]
              %425 = vst [vmem:[%s421 + $0x8] sm:%s413] %v424
            $region78: #{custom-call.36} parent=72 // loop_footer
              %s419 = sadd.s32 1, %s415
            $region79: #{custom-call.36} parent=72 // loop_footer_branch
              %414 = sbr.rel target = $region75
            $region80: #{custom-call.36} parent=72 // loop_exit
              _
          $region73: #{custom-call.36} parent=64 // pred_fallthru
            _
        $region65: #{custom-call.36} parent=53 // pred_fallthru
          _
        %442 = vnop
        // Predicated region
        $region96: #{custom-call.36} parent=53 // pred_check
          %p443 = pneg %p59
        $region97: #{custom-call.36} parent=53 // pred_check_branch
          %445 = sbr.rel (%p443) target = $region99
        $region98: #{custom-call.36} parent=53 // pred_region
          %p446 = scmp.lt.s32.totalorder %s15, 0
          %s447 = ssub.s32 0, %s15
          %s448 = scalar_select %p446, %s447, %s15
          %s449 = sshrl.u32 %s448, 3
          %s450 = ssub.s32 0, %s449
          %s451 = scalar_select %p446, %s450, %s449
          %s452 = smul.addr %s451, 2
          %s453 = scalar_lea.vmem %s2, %s452
          // Predicated region
          $region100: #{custom-call.36} parent=98 // pred_check
            _
          $region101: #{custom-call.36} parent=98 // pred_check_branch
            %455 = sbr.rel (0) target = $region103
          $region102: #{custom-call.36} parent=98 // pred_region
            // Predicated region
            $region104: #{custom-call.36} parent=102 // pred_check
              _
            $region105: #{custom-call.36} parent=102 // pred_check_branch
              %457 = sbr.rel target = $region107
            $region106: #{custom-call.36} parent=102 // pred_region
              // Predicated region
              $region119: #{custom-call.36} parent=106 // pred_check
                _
              $region120: #{custom-call.36} parent=106 // pred_check_branch
                %473 = sbr.rel (0) target = $region122
              $region121: #{custom-call.36} parent=106 // pred_region
                %s475 = ssub.s32 4, 1
                loop: start=0, step=1, limit=1
                $region123: #{custom-call.36} parent=121 // loop_pre_header
                  _
                $region124: #{custom-call.36} parent=121 // loop_header
                  %s477 = sphi 0, %s481
                  %p478 = scmp.ge.s32.totalorder %s477, 1
                  %s482 = sphi %s399, %s399
                  %s483 = sphi %s453, %s453
                $region125: #{custom-call.36} parent=121 // loop_header_branch
                  %480 = sbr.rel (%p478) target = $region129
                $region126: #{custom-call.36} parent=121 // loop_body
                  %v484 = vld [vmem:[%s482] sm:%s475]
                  %485 = vst [vmem:[%s483] sm:%s475] %v484
                $region127: #{custom-call.36} parent=121 // loop_footer
                  %s481 = sadd.s32 1, %s477
                $region128: #{custom-call.36} parent=121 // loop_footer_branch
                  %476 = sbr.rel target = $region124
                $region129: #{custom-call.36} parent=121 // loop_exit
                  _
              $region122: #{custom-call.36} parent=106 // pred_fallthru
                _
            $region107: #{custom-call.36} parent=102 // pred_fallthru
              _
            // Predicated region
            $region108: #{custom-call.36} parent=102 // pred_check
              _
            $region109: #{custom-call.36} parent=102 // pred_check_branch
              %459 = sbr.rel (0) target = $region111
            $region110: #{custom-call.36} parent=102 // pred_region
              %s461 = ssub.s32 4, 1
              loop: start=0, step=1, limit=1
              $region112: #{custom-call.36} parent=110 // loop_pre_header
                _
              $region113: #{custom-call.36} parent=110 // loop_header
                %s463 = sphi 0, %s467
                %p464 = scmp.ge.s32.totalorder %s463, 1
                %s468 = sphi %s399, %s399
                %s469 = sphi %s453, %s453
              $region114: #{custom-call.36} parent=110 // loop_header_branch
                %466 = sbr.rel (%p464) target = $region118
              $region115: #{custom-call.36} parent=110 // loop_body
                %v470 = vld [vmem:[%s468] sm:%s461]
                %471 = vst [vmem:[%s469] sm:%s461] %v470
              $region116: #{custom-call.36} parent=110 // loop_footer
                %s467 = sadd.s32 1, %s463
              $region117: #{custom-call.36} parent=110 // loop_footer_branch
                %462 = sbr.rel target = $region113
              $region118: #{custom-call.36} parent=110 // loop_exit
                _
            $region111: #{custom-call.36} parent=102 // pred_fallthru
              _
          $region103: #{custom-call.36} parent=98 // pred_fallthru
            _
          %486 = vnop
        $region99: #{custom-call.36} parent=53 // pred_fallthru
          _
      $region54: #{custom-call.36} parent=5 // pred_fallthru
        _
      %p487 = scmp.le.s32.totalorder 2, %s5
      // Predicated region
      $region130: #{custom-call.36} parent=5 // pred_check
        %p488 = pneg %p487
      $region131: #{custom-call.36} parent=5 // pred_check_branch
        %490 = sbr.rel (%p488) target = $region133
      $region132: #{custom-call.36} parent=5 // pred_region
        %s491 = ssub.s32 %s5, 2
        %s492 = sand.u32 %s11, 1
        %s493 = sand.u32 %s11, 1
        %s494 = smul.addr %s493, 16
        %s495 = scalar_lea.vmem [#allocation1], %s494
        // Predicated region
        $region134: #{custom-call.36} parent=132 // pred_check
          %p496 = pneg %p65
        $region135: #{custom-call.36} parent=132 // pred_check_branch
          %498 = sbr.rel (%p496) target = $region137
        $region136: #{custom-call.36} parent=132 // pred_region
          %s499 = sand.u32 %s50, 1
          %s500 = sand.u32 %s50, 1
          %s501 = smul.addr %s500, 2
          %s502 = scalar_lea.vmem [#allocation3], %s501
        $region137: #{custom-call.36} parent=132 // pred_fallthru
          _
      $region133: #{custom-call.36} parent=5 // pred_fallthru
        _
    $region6: #{custom-call.36} parent=1 // loop_footer
      %s9 = sadd.s32 1, %s5
    $region7: #{custom-call.36} parent=1 // loop_footer_branch
      %4 = sbr.rel target = $region3
    $region8: #{custom-call.36} parent=1 // loop_exit
      _

// kernel: custom-call.46
$region0: #{custom-call.46}
  %s0 = inlined_call_operand.vmem [shape: f32[2,8,8], index: 0, kind: input, shape index: {}]
  %s1 = inlined_call_operand.vmem [shape: f32[2,8,8], index: 1, kind: output, shape index: {}]
  $region1: #{custom-call.46} parent=0
    #allocation0 [shape = 'u8[8192]{0}', space=vmem, size = 0x2000, scoped, tag = 'operand span for operand 0']
    #allocation1 [shape = 'u8[8192]{0}', space=vmem, size = 0x2000, scoped, tag = 'operand span for operand 1']
    loop: start=0, step=1, limit=4
    $region2: #{custom-call.46} parent=1 // loop_pre_header
      _
    $region3: #{custom-call.46} parent=1 // loop_header
      %s3 = sphi 0, %s7
      %p4 = scmp.ge.s32.totalorder %s3, 4
    $region4: #{custom-call.46} parent=1 // loop_header_branch
      %6 = sbr.rel (%p4) target = $region8
    $region5: #{custom-call.46} parent=1 // loop_body
      %s8 = ssub.s32 %s3, 1
      %s9 = ssub.s32 %s3, 2
      %s10 = sadd.s32 %s3, 1
      %p11 = scmp.le.s32.totalorder 1, %s3
      %p12 = scmp.lt.s32.totalorder %s3, 3
      %p13 = pnand %p11, %p12
      %p14 = pneg %p13
      // Predicated region
      $region9: #{custom-call.46} parent=5 // pred_check
        _
      $region10: #{custom-call.46} parent=5 // pred_check_branch
        %16 = sbr.rel (%p13) target = $region12
      $region11: #{custom-call.46} parent=5 // pred_region
        %s17 = ssub.s32 %s3, 1
      $region12: #{custom-call.46} parent=5 // pred_fallthru
        _
      %p18 = scmp.lt.s32.totalorder %s3, 2
      // Predicated region
      $region13: #{custom-call.46} parent=5 // pred_check
        %p19 = pneg %p18
      $region14: #{custom-call.46} parent=5 // pred_check_branch
        %21 = sbr.rel (%p19) target = $region16
      $region15: #{custom-call.46} parent=5 // pred_region
        %s22 = sand.u32 %s3, 1
        %s23 = sand.u32 %s3, 1
        %s24 = smul.addr %s23, 8
        %s25 = scalar_lea.vmem [#allocation0], %s24
        %s26 = smul.addr %s3, 8
        %s27 = scalar_lea.vmem %s0, %s26
        // Predicated region
        $region17: #{custom-call.46} parent=15 // pred_check
          _
        $region18: #{custom-call.46} parent=15 // pred_check_branch
          %29 = sbr.rel (0) target = $region20
        $region19: #{custom-call.46} parent=15 // pred_region
          // Predicated region
          $region21: #{custom-call.46} parent=19 // pred_check
            _
          $region22: #{custom-call.46} parent=19 // pred_check_branch
            %31 = sbr.rel (0) target = $region24
          $region23: #{custom-call.46} parent=19 // pred_region
            // Predicated region
            $region36: #{custom-call.46} parent=23 // pred_check
              _
            $region37: #{custom-call.46} parent=23 // pred_check_branch
              %47 = sbr.rel (0) target = $region39
            $region38: #{custom-call.46} parent=23 // pred_region
              loop: start=0, step=1, limit=1
              $region40: #{custom-call.46} parent=38 // loop_pre_header
                _
              $region41: #{custom-call.46} parent=38 // loop_header
                %s49 = sphi 0, %s53
                %p50 = scmp.ge.s32.totalorder %s49, 1
                %s54 = sphi %s27, %s27
                %s55 = sphi %s25, %s25
              $region42: #{custom-call.46} parent=38 // loop_header_branch
                %52 = sbr.rel (%p50) target = $region46
              $region43: #{custom-call.46} parent=38 // loop_body
                %v56 = vld [vmem:[%s54] sm:$0xff]
                %57 = vst [vmem:[%s55] sm:$0xff] %v56
              $region44: #{custom-call.46} parent=38 // loop_footer
                %s53 = sadd.s32 1, %s49
              $region45: #{custom-call.46} parent=38 // loop_footer_branch
                %48 = sbr.rel target = $region41
              $region46: #{custom-call.46} parent=38 // loop_exit
                _
            $region39: #{custom-call.46} parent=23 // pred_fallthru
              _
            // Predicated region
            $region47: #{custom-call.46} parent=23 // pred_check
              _
            $region48: #{custom-call.46} parent=23 // pred_check_branch
              %59 = sbr.rel target = $region50
            $region49: #{custom-call.46} parent=23 // pred_region
              _
            $region50: #{custom-call.46} parent=23 // pred_fallthru
              _
          $region24: #{custom-call.46} parent=19 // pred_fallthru
            _
          // Predicated region
          $region25: #{custom-call.46} parent=19 // pred_check
            _
          $region26: #{custom-call.46} parent=19 // pred_check_branch
            %33 = sbr.rel target = $region28
          $region27: #{custom-call.46} parent=19 // pred_region
            %s35 = ssub.s32 256, 1
            loop: start=0, step=1, limit=1
            $region29: #{custom-call.46} parent=27 // loop_pre_header
              _
            $region30: #{custom-call.46} parent=27 // loop_header
              %s37 = sphi 0, %s41
              %p38 = scmp.ge.s32.totalorder %s37, 1
              %s42 = sphi %s27, %s27
              %s43 = sphi %s25, %s25
            $region31: #{custom-call.46} parent=27 // loop_header_branch
              %40 = sbr.rel (%p38) target = $region35
            $region32: #{custom-call.46} parent=27 // loop_body
              %v44 = vld [vmem:[%s42] sm:%s35]
              %45 = vst [vmem:[%s43] sm:%s35] %v44
            $region33: #{custom-call.46} parent=27 // loop_footer
              %s41 = sadd.s32 1, %s37
            $region34: #{custom-call.46} parent=27 // loop_footer_branch
              %36 = sbr.rel target = $region30
            $region35: #{custom-call.46} parent=27 // loop_exit
              _
          $region28: #{custom-call.46} parent=19 // pred_fallthru
            _
        $region20: #{custom-call.46} parent=15 // pred_fallthru
          _
        %60 = vnop
      $region16: #{custom-call.46} parent=5 // pred_fallthru
        _
      %p61 = scmp.le.s32.totalorder 1, %s3
      %p62 = scmp.lt.s32.totalorder %s3, 3
      %p63 = pnand %p61, %p62
      %p64 = pneg %p63
      // Predicated region
      $region51: #{custom-call.46} parent=5 // pred_check
        _
      $region52: #{custom-call.46} parent=5 // pred_check_branch
        %66 = sbr.rel (%p63) target = $region54
      $region53: #{custom-call.46} parent=5 // pred_region
        %s67 = ssub.s32 %s3, 1
        %s68 = sand.u32 %s8, 1
        %s69 = sand.u32 %s8, 1
        %s70 = smul.addr %s69, 8
        %s71 = scalar_lea.vmem [#allocation0], %s70
        %s72 = sand.u32 %s8, 1
        %s73 = sand.u32 %s8, 1
        %s74 = smul.addr %s73, 8
        %s75 = scalar_lea.vmem [#allocation0], %s74
        %s76 = sand.u32 %s8, 1
        %s77 = sand.u32 %s8, 1
        %s78 = smul.addr %s77, 8
        %s79 = scalar_lea.vmem [#allocation1], %s78
        %v80 = vlaneseq
        %v81 = vand.u32 %v80, 127
        %v82 = vlaneseq
        %v83 = vshrl.u32 %v82, 7
        %vm85 = vcmp.eq.s32.totalorder %v81, %v83
        %v86 = vld [vmem:[%s71] sm:$0xff]
        %v87 = vlaneseq
        %v88 = vand.u32 %v87, 127
        %vm89 = vcmp.eq.s32.totalorder %v88, 0
        %v90 = vsel %vm89, %v86, 1.0
        %v91 = vsel %vm85, %v90, 0.0
        %s92 = scalar_lea.vmem %s71, 1 [#allocation0]
        %v93 = vld [vmem:[%s92] ss:$0 sm:$0xff]
        %vm94 = vcmask 64512
        %v95 = vsel %vm94, %v93, 0.0
        %v96 = vlaneseq
        %v97 = vand.u32 %v96, 127
        %vm98 = vcmp.eq.s32.totalorder %v97, 1
        %v99 = vmul.f32 %v95, %v91
        %100 = vadd.xlane.f32.xlu0 %v99
        %v101 = vpop.xlane.xlu0 %100
        %v102 = vsel %vm98, %v101, %v91
        %s103 = scalar_lea.vmem %s71, 2 [#allocation0]
        %v104 = vld [vmem:[%s103] ss:$0 sm:$0xff]
        %vm105 = vcmask 64512
        %v106 = vsel %vm105, %v104, 0.0
        %v107 = vlaneseq
        %v108 = vand.u32 %v107, 127
        %vm109 = vcmp.eq.s32.totalorder %v108, 2
        %v110 = vmul.f32 %v106, %v102
        %111 = vadd.xlane.f32.xlu0 %v110
        %v112 = vpop.xlane.xlu0 %111
        %v113 = vsel %vm109, %v112, %v102
        %s114 = scalar_lea.vmem %s71, 3 [#allocation0]
        %v115 = vld [vmem:[%s114] ss:$0 sm:$0xff]
        %vm116 = vcmask 64512
        %v117 = vsel %vm116, %v115, 0.0
        %v118 = vlaneseq
        %v119 = vand.u32 %v118, 127
        %vm120 = vcmp.eq.s32.totalorder %v119, 3
        %v121 = vmul.f32 %v117, %v113
        %122 = vadd.xlane.f32.xlu0 %v121
        %v123 = vpop.xlane.xlu0 %122
        %v124 = vsel %vm120, %v123, %v113
        %s125 = scalar_lea.vmem %s71, 4 [#allocation0]
        %v126 = vld [vmem:[%s125] ss:$0 sm:$0xff]
        %vm127 = vcmask 64512
        %v128 = vsel %vm127, %v126, 0.0
        %v129 = vlaneseq
        %v130 = vand.u32 %v129, 127
        %vm131 = vcmp.eq.s32.totalorder %v130, 4
        %v132 = vmul.f32 %v128, %v124
        %133 = vadd.xlane.f32.xlu0 %v132
        %v134 = vpop.xlane.xlu0 %133
        %v135 = vsel %vm131, %v134, %v124
        %s136 = scalar_lea.vmem %s71, 5 [#allocation0]
        %v137 = vld [vmem:[%s136] ss:$0 sm:$0xff]
        %vm138 = vcmask 64512
        %v139 = vsel %vm138, %v137, 0.0
        %v140 = vlaneseq
        %v141 = vand.u32 %v140, 127
        %vm142 = vcmp.eq.s32.totalorder %v141, 5
        %v143 = vmul.f32 %v139, %v135
        %144 = vadd.xlane.f32.xlu0 %v143
        %v145 = vpop.xlane.xlu0 %144
        %v146 = vsel %vm142, %v145, %v135
        %s147 = scalar_lea.vmem %s71, 6 [#allocation0]
        %v148 = vld [vmem:[%s147] ss:$0 sm:$0xff]
        %vm149 = vcmask 64512
        %v150 = vsel %vm149, %v148, 0.0
        %v151 = vlaneseq
        %v152 = vand.u32 %v151, 127
        %vm153 = vcmp.eq.s32.totalorder %v152, 6
        %v154 = vmul.f32 %v150, %v146
        %155 = vadd.xlane.f32.xlu0 %v154
        %v156 = vpop.xlane.xlu0 %155
        %v157 = vsel %vm153, %v156, %v146
        %s158 = scalar_lea.vmem %s71, 7 [#allocation0]
        %v159 = vld [vmem:[%s158] ss:$0 sm:$0xff]
        %vm160 = vcmask 64512
        %v161 = vsel %vm160, %v159, 0.0
        %v162 = vlaneseq
        %v163 = vand.u32 %v162, 127
        %vm164 = vcmp.eq.s32.totalorder %v163, 7
        %v165 = vmul.f32 %v161, %v157
        %166 = vadd.xlane.f32.xlu0 %v165
        %v167 = vpop.xlane.xlu0 %166
        %v168 = vsel %vm164, %v167, %v157
        %169 = vst [vmem:[%s79] sm:$0xff] %v168
        %s170 = sand.u32 %s8, 1
        %s171 = sand.u32 %s8, 1
        %s172 = smul.addr %s171, 8
        %s173 = scalar_lea.vmem [#allocation1], %s172
        %s174 = smul.addr %s8, 8
        %s175 = scalar_lea.vmem %s1, %s174
        // Predicated region
        $region55: #{custom-call.46} parent=53 // pred_check
          _
        $region56: #{custom-call.46} parent=53 // pred_check_branch
          %177 = sbr.rel (0) target = $region58
        $region57: #{custom-call.46} parent=53 // pred_region
          // Predicated region
          $region59: #{custom-call.46} parent=57 // pred_check
            _
          $region60: #{custom-call.46} parent=57 // pred_check_branch
            %179 = sbr.rel (0) target = $region62
          $region61: #{custom-call.46} parent=57 // pred_region
            // Predicated region
            $region74: #{custom-call.46} parent=61 // pred_check
              _
            $region75: #{custom-call.46} parent=61 // pred_check_branch
              %195 = sbr.rel (0) target = $region77
            $region76: #{custom-call.46} parent=61 // pred_region
              loop: start=0, step=1, limit=1
              $region78: #{custom-call.46} parent=76 // loop_pre_header
                _
              $region79: #{custom-call.46} parent=76 // loop_header
                %s197 = sphi 0, %s201
                %p198 = scmp.ge.s32.totalorder %s197, 1
                %s202 = sphi %s173, %s173
                %s203 = sphi %s175, %s175
              $region80: #{custom-call.46} parent=76 // loop_header_branch
                %200 = sbr.rel (%p198) target = $region84
              $region81: #{custom-call.46} parent=76 // loop_body
                %v204 = vld [vmem:[%s202] sm:$0xff]
                %205 = vst [vmem:[%s203] sm:$0xff] %v204
              $region82: #{custom-call.46} parent=76 // loop_footer
                %s201 = sadd.s32 1, %s197
              $region83: #{custom-call.46} parent=76 // loop_footer_branch
                %196 = sbr.rel target = $region79
              $region84: #{custom-call.46} parent=76 // loop_exit
                _
            $region77: #{custom-call.46} parent=61 // pred_fallthru
              _
            // Predicated region
            $region85: #{custom-call.46} parent=61 // pred_check
              _
            $region86: #{custom-call.46} parent=61 // pred_check_branch
              %207 = sbr.rel target = $region88
            $region87: #{custom-call.46} parent=61 // pred_region
              _
            $region88: #{custom-call.46} parent=61 // pred_fallthru
              _
          $region62: #{custom-call.46} parent=57 // pred_fallthru
            _
          // Predicated region
          $region63: #{custom-call.46} parent=57 // pred_check
            _
          $region64: #{custom-call.46} parent=57 // pred_check_branch
            %181 = sbr.rel target = $region66
          $region65: #{custom-call.46} parent=57 // pred_region
            %s183 = ssub.s32 256, 1
            loop: start=0, step=1, limit=1
            $region67: #{custom-call.46} parent=65 // loop_pre_header
              _
            $region68: #{custom-call.46} parent=65 // loop_header
              %s185 = sphi 0, %s189
              %p186 = scmp.ge.s32.totalorder %s185, 1
              %s190 = sphi %s173, %s173
              %s191 = sphi %s175, %s175
            $region69: #{custom-call.46} parent=65 // loop_header_branch
              %188 = sbr.rel (%p186) target = $region73
            $region70: #{custom-call.46} parent=65 // loop_body
              %v192 = vld [vmem:[%s190] sm:%s183]
              %193 = vst [vmem:[%s191] sm:%s183] %v192
            $region71: #{custom-call.46} parent=65 // loop_footer
              %s189 = sadd.s32 1, %s185
            $region72: #{custom-call.46} parent=65 // loop_footer_branch
              %184 = sbr.rel target = $region68
            $region73: #{custom-call.46} parent=65 // loop_exit
              _
          $region66: #{custom-call.46} parent=57 // pred_fallthru
            _
        $region58: #{custom-call.46} parent=53 // pred_fallthru
          _
        %208 = vnop
      $region54: #{custom-call.46} parent=5 // pred_fallthru
        _
      %p209 = scmp.le.s32.totalorder 2, %s3
      // Predicated region
      $region89: #{custom-call.46} parent=5 // pred_check
        %p210 = pneg %p209
      $region90: #{custom-call.46} parent=5 // pred_check_branch
        %212 = sbr.rel (%p210) target = $region92
      $region91: #{custom-call.46} parent=5 // pred_region
        %s213 = ssub.s32 %s3, 2
        %s214 = sand.u32 %s9, 1
        %s215 = sand.u32 %s9, 1
        %s216 = smul.addr %s215, 8
        %s217 = scalar_lea.vmem [#allocation1], %s216
      $region92: #{custom-call.46} parent=5 // pred_fallthru
        _
    $region6: #{custom-call.46} parent=1 // loop_footer
      %s7 = sadd.s32 1, %s3
    $region7: #{custom-call.46} parent=1 // loop_footer_branch
      %2 = sbr.rel target = $region3
    $region8: #{custom-call.46} parent=1 // loop_exit
      _

// kernel: custom-call.38
$region0: #{custom-call.38}
  %s0 = inlined_call_operand.hbm [shape: pred[2], index: 0, kind: output, shape index: {}]

// kernel: custom-call.43
$region0: #{custom-call.43}
  %s0 = inlined_call_operand.vmem [shape: f32[2,8,8], index: 0, kind: input, shape index: {}]
  %s1 = inlined_call_operand.vmem [shape: f32[2,8,8], index: 1, kind: output, shape index: {}]
  $region1: #{custom-call.43} parent=0
    #allocation0 [shape = 'u8[8192]{0}', space=vmem, size = 0x2000, scoped, tag = 'operand span for operand 0']
    #allocation1 [shape = 'u8[8192]{0}', space=vmem, size = 0x2000, scoped, tag = 'operand span for operand 1']
    loop: start=0, step=1, limit=4
    $region2: #{custom-call.43} parent=1 // loop_pre_header
      _
    $region3: #{custom-call.43} parent=1 // loop_header
      %s3 = sphi 0, %s7
      %p4 = scmp.ge.s32.totalorder %s3, 4
      %s10 = sphi 0, %s29
      %s11 = sphi 0, %s25
      %s12 = sphi 0, %s21
      %s13 = sphi 0, %s10
      %s14 = sphi 0, %s11
      %s15 = sphi 0, %s12
      %s16 = sphi 0, %s13
      %s17 = sphi 0, %s14
      %s18 = sphi 0, %s15
    $region4: #{custom-call.43} parent=1 // loop_header_branch
      %6 = sbr.rel (%p4) target = $region8
    $region5: #{custom-call.43} parent=1 // loop_body
      %s8 = ssub.s32 %s3, 1
      %s9 = ssub.s32 %s3, 2
      %s19 = sadd.s32 1, %s12
      %p20 = scmp.ge.s32.totalorder %s19, 1
      %s21 = scalar_select %p20, 0, %s19
      %s22 = sadd.s32 1, %s11
      %s23 = scalar_select %p20, %s22, %s11
      %p24 = scmp.ge.s32.totalorder %s23, 1
      %s25 = scalar_select %p24, 0, %s23
      %s26 = sadd.s32 1, %s10
      %s27 = scalar_select %p24, %s26, %s10
      %p28 = scmp.ge.s32.totalorder %s27, 2
      %s29 = scalar_select %p28, 0, %s27
      %p30 = scmp.le.s32.totalorder 1, %s3
      %p31 = scmp.lt.s32.totalorder %s3, 3
      %p32 = pnand %p30, %p31
      %p33 = pneg %p32
      // Predicated region
      $region9: #{custom-call.43} parent=5 // pred_check
        _
      $region10: #{custom-call.43} parent=5 // pred_check_branch
        %35 = sbr.rel (%p32) target = $region12
      $region11: #{custom-call.43} parent=5 // pred_region
        %s36 = ssub.s32 %s3, 1
      $region12: #{custom-call.43} parent=5 // pred_fallthru
        _
      %p37 = scmp.lt.s32.totalorder %s3, 2
      // Predicated region
      $region13: #{custom-call.43} parent=5 // pred_check
        %p38 = pneg %p37
      $region14: #{custom-call.43} parent=5 // pred_check_branch
        %40 = sbr.rel (%p38) target = $region16
      $region15: #{custom-call.43} parent=5 // pred_region
        %s41 = sand.u32 %s3, 1
        %s42 = sand.u32 %s3, 1
        %s43 = smul.addr %s42, 8
        %s44 = scalar_lea.vmem [#allocation0], %s43
        %s45 = sadd.s32 %s12, %s11
        %s46 = sadd.s32 %s45, %s10
        %s47 = smul.addr %s46, 8
        %s48 = scalar_lea.vmem %s0, %s47
        // Predicated region
        $region17: #{custom-call.43} parent=15 // pred_check
          _
        $region18: #{custom-call.43} parent=15 // pred_check_branch
          %50 = sbr.rel (0) target = $region20
        $region19: #{custom-call.43} parent=15 // pred_region
          // Predicated region
          $region21: #{custom-call.43} parent=19 // pred_check
            _
          $region22: #{custom-call.43} parent=19 // pred_check_branch
            %52 = sbr.rel (0) target = $region24
          $region23: #{custom-call.43} parent=19 // pred_region
            // Predicated region
            $region36: #{custom-call.43} parent=23 // pred_check
              _
            $region37: #{custom-call.43} parent=23 // pred_check_branch
              %68 = sbr.rel (0) target = $region39
            $region38: #{custom-call.43} parent=23 // pred_region
              loop: start=0, step=1, limit=1
              $region40: #{custom-call.43} parent=38 // loop_pre_header
                _
              $region41: #{custom-call.43} parent=38 // loop_header
                %s70 = sphi 0, %s74
                %p71 = scmp.ge.s32.totalorder %s70, 1
                %s75 = sphi %s48, %s48
                %s76 = sphi %s44, %s44
              $region42: #{custom-call.43} parent=38 // loop_header_branch
                %73 = sbr.rel (%p71) target = $region46
              $region43: #{custom-call.43} parent=38 // loop_body
                %v77 = vld [vmem:[%s75] sm:$0xff]
                %78 = vst [vmem:[%s76] sm:$0xff] %v77
              $region44: #{custom-call.43} parent=38 // loop_footer
                %s74 = sadd.s32 1, %s70
              $region45: #{custom-call.43} parent=38 // loop_footer_branch
                %69 = sbr.rel target = $region41
              $region46: #{custom-call.43} parent=38 // loop_exit
                _
            $region39: #{custom-call.43} parent=23 // pred_fallthru
              _
            // Predicated region
            $region47: #{custom-call.43} parent=23 // pred_check
              _
            $region48: #{custom-call.43} parent=23 // pred_check_branch
              %80 = sbr.rel target = $region50
            $region49: #{custom-call.43} parent=23 // pred_region
              _
            $region50: #{custom-call.43} parent=23 // pred_fallthru
              _
          $region24: #{custom-call.43} parent=19 // pred_fallthru
            _
          // Predicated region
          $region25: #{custom-call.43} parent=19 // pred_check
            _
          $region26: #{custom-call.43} parent=19 // pred_check_branch
            %54 = sbr.rel target = $region28
          $region27: #{custom-call.43} parent=19 // pred_region
            %s56 = ssub.s32 256, 1
            loop: start=0, step=1, limit=1
            $region29: #{custom-call.43} parent=27 // loop_pre_header
              _
            $region30: #{custom-call.43} parent=27 // loop_header
              %s58 = sphi 0, %s62
              %p59 = scmp.ge.s32.totalorder %s58, 1
              %s63 = sphi %s48, %s48
              %s64 = sphi %s44, %s44
            $region31: #{custom-call.43} parent=27 // loop_header_branch
              %61 = sbr.rel (%p59) target = $region35
            $region32: #{custom-call.43} parent=27 // loop_body
              %v65 = vld [vmem:[%s63] sm:%s56]
              %66 = vst [vmem:[%s64] sm:%s56] %v65
            $region33: #{custom-call.43} parent=27 // loop_footer
              %s62 = sadd.s32 1, %s58
            $region34: #{custom-call.43} parent=27 // loop_footer_branch
              %57 = sbr.rel target = $region30
            $region35: #{custom-call.43} parent=27 // loop_exit
              _
          $region28: #{custom-call.43} parent=19 // pred_fallthru
            _
        $region20: #{custom-call.43} parent=15 // pred_fallthru
          _
        %81 = vnop
      $region16: #{custom-call.43} parent=5 // pred_fallthru
        _
      %p82 = scmp.le.s32.totalorder 1, %s3
      %p83 = scmp.lt.s32.totalorder %s3, 3
      %p84 = pnand %p82, %p83
      %p85 = pneg %p84
      // Predicated region
      $region51: #{custom-call.43} parent=5 // pred_check
        _
      $region52: #{custom-call.43} parent=5 // pred_check_branch
        %87 = sbr.rel (%p84) target = $region54
      $region53: #{custom-call.43} parent=5 // pred_region
        %s88 = ssub.s32 %s3, 1
        %s89 = sand.u32 %s8, 1
        %s90 = sand.u32 %s8, 1
        %s91 = smul.addr %s90, 8
        %s92 = scalar_lea.vmem [#allocation0], %s91
        %s93 = sand.u32 %s8, 1
        %s94 = sand.u32 %s8, 1
        %s95 = smul.addr %s94, 8
        %s96 = scalar_lea.vmem [#allocation0], %s95
        %s97 = sand.u32 %s8, 1
        %s98 = sand.u32 %s8, 1
        %s99 = smul.addr %s98, 8
        %s100 = scalar_lea.vmem [#allocation1], %s99
        %101 = vst [vmem:[%s100] sm:$0xff] 0.0
        %vm102 = vcmask 7168
        %v103 = vld [vmem:[%s100] ss:$0 sm:$0xff]
        %v104 = vld [vmem:[%s92] ss:$0 sm:$0xff]
        %v105 = vmul.f32 %v103, %v103
        %106 = vadd.xlane.f32.xlu0 %v105
        %v107 = vpop.xlane.xlu0 %106
        %v108 = vsub.f32 %v104, %v107
        %v109 = vrsqrt.pop %v108
        %v110 = vld [vmem:[%s92] sm:$0xff]
        %v111 = vld [vmem:[%s100] sm:$0xff]
        %v112 = vmul.f32 %v111, %v103
        %113 = vadd.xlane.f32.xlu0 %v112
        %v114 = vpop.xlane.xlu0 %113
        %v115 = vsub.f32 %v110, %v114
        %v116 = vmul.f32 %v115, %v109
        %v117 = vsel %vm102, %v116, 0.0
        %v118 = vadd.f32 %v111, %v117
        %119 = vst [vmem:[%s100] sm:$0xff] %v118
        %vm120 = vcmask 15368
        %s121 = scalar_lea.vmem %s100, 1 [#allocation1]
        %v122 = vld [vmem:[%s121] ss:$0 sm:$0xff]
        %s123 = scalar_lea.vmem %s92, 1 [#allocation0]
        %v124 = vld [vmem:[%s123] ss:$0 sm:$0xff]
        %v125 = vmul.f32 %v122, %v122
        %126 = vadd.xlane.f32.xlu0 %v125
        %v127 = vpop.xlane.xlu0 %126
        %v128 = vsub.f32 %v124, %v127
        %v129 = vrsqrt.pop %v128
        %v130 = vld [vmem:[%s92] sm:$0xff]
        %v131 = vld [vmem:[%s100] sm:$0xff]
        %v132 = vmul.f32 %v131, %v122
        %133 = vadd.xlane.f32.xlu0 %v132
        %v134 = vpop.xlane.xlu0 %133
        %v135 = vsub.f32 %v130, %v134
        %v136 = vmul.f32 %v135, %v129
        %vm137 = vcmask 1047553
        %vm138 = vmand %vm120, %vm137
        %v139 = vsel %vm138, %v136, 0.0
        %v140 = vadd.f32 %v131, %v139
        %141 = vst [vmem:[%s100] sm:$0xff] %v140
        %vm142 = vcmask 23568
        %s143 = scalar_lea.vmem %s100, 2 [#allocation1]
        %v144 = vld [vmem:[%s143] ss:$0 sm:$0xff]
        %s145 = scalar_lea.vmem %s92, 2 [#allocation0]
        %v146 = vld [vmem:[%s145] ss:$0 sm:$0xff]
        %v147 = vmul.f32 %v144, %v144
        %148 = vadd.xlane.f32.xlu0 %v147
        %v149 = vpop.xlane.xlu0 %148
        %v150 = vsub.f32 %v146, %v149
        %v151 = vrsqrt.pop %v150
        %v152 = vld [vmem:[%s92] sm:$0xff]
        %v153 = vld [vmem:[%s100] sm:$0xff]
        %v154 = vmul.f32 %v153, %v144
        %155 = vadd.xlane.f32.xlu0 %v154
        %v156 = vpop.xlane.xlu0 %155
        %v157 = vsub.f32 %v152, %v156
        %v158 = vmul.f32 %v157, %v151
        %vm159 = vcmask 1047554
        %vm160 = vmand %vm142, %vm159
        %v161 = vsel %vm160, %v158, 0.0
        %v162 = vadd.f32 %v153, %v161
        %163 = vst [vmem:[%s100] sm:$0xff] %v162
        %vm164 = vcmask 31768
        %s165 = scalar_lea.vmem %s100, 3 [#allocation1]
        %v166 = vld [vmem:[%s165] ss:$0 sm:$0xff]
        %s167 = scalar_lea.vmem %s92, 3 [#allocation0]
        %v168 = vld [vmem:[%s167] ss:$0 sm:$0xff]
        %v169 = vmul.f32 %v166, %v166
        %170 = vadd.xlane.f32.xlu0 %v169
        %v171 = vpop.xlane.xlu0 %170
        %v172 = vsub.f32 %v168, %v171
        %v173 = vrsqrt.pop %v172
        %v174 = vld [vmem:[%s92] sm:$0xff]
        %v175 = vld [vmem:[%s100] sm:$0xff]
        %v176 = vmul.f32 %v175, %v166
        %177 = vadd.xlane.f32.xlu0 %v176
        %v178 = vpop.xlane.xlu0 %177
        %v179 = vsub.f32 %v174, %v178
        %v180 = vmul.f32 %v179, %v173
        %vm181 = vcmask 1047555
        %vm182 = vmand %vm164, %vm181
        %v183 = vsel %vm182, %v180, 0.0
        %v184 = vadd.f32 %v175, %v183
        %185 = vst [vmem:[%s100] sm:$0xff] %v184
        %vm186 = vcmask 39968
        %s187 = scalar_lea.vmem %s100, 4 [#allocation1]
        %v188 = vld [vmem:[%s187] ss:$0 sm:$0xff]
        %s189 = scalar_lea.vmem %s92, 4 [#allocation0]
        %v190 = vld [vmem:[%s189] ss:$0 sm:$0xff]
        %v191 = vmul.f32 %v188, %v188
        %192 = vadd.xlane.f32.xlu0 %v191
        %v193 = vpop.xlane.xlu0 %192
        %v194 = vsub.f32 %v190, %v193
        %v195 = vrsqrt.pop %v194
        %v196 = vld [vmem:[%s92] sm:$0xff]
        %v197 = vld [vmem:[%s100] sm:$0xff]
        %v198 = vmul.f32 %v197, %v188
        %199 = vadd.xlane.f32.xlu0 %v198
        %v200 = vpop.xlane.xlu0 %199
        %v201 = vsub.f32 %v196, %v200
        %v202 = vmul.f32 %v201, %v195
        %vm203 = vcmask 1047556
        %vm204 = vmand %vm186, %vm203
        %v205 = vsel %vm204, %v202, 0.0
        %v206 = vadd.f32 %v197, %v205
        %207 = vst [vmem:[%s100] sm:$0xff] %v206
        %vm208 = vcmask 48168
        %s209 = scalar_lea.vmem %s100, 5 [#allocation1]
        %v210 = vld [vmem:[%s209] ss:$0 sm:$0xff]
        %s211 = scalar_lea.vmem %s92, 5 [#allocation0]
        %v212 = vld [vmem:[%s211] ss:$0 sm:$0xff]
        %v213 = vmul.f32 %v210, %v210
        %214 = vadd.xlane.f32.xlu0 %v213
        %v215 = vpop.xlane.xlu0 %214
        %v216 = vsub.f32 %v212, %v215
        %v217 = vrsqrt.pop %v216
        %v218 = vld [vmem:[%s92] sm:$0xff]
        %v219 = vld [vmem:[%s100] sm:$0xff]
        %v220 = vmul.f32 %v219, %v210
        %221 = vadd.xlane.f32.xlu0 %v220
        %v222 = vpop.xlane.xlu0 %221
        %v223 = vsub.f32 %v218, %v222
        %v224 = vmul.f32 %v223, %v217
        %vm225 = vcmask 1047557
        %vm226 = vmand %vm208, %vm225
        %v227 = vsel %vm226, %v224, 0.0
        %v228 = vadd.f32 %v219, %v227
        %229 = vst [vmem:[%s100] sm:$0xff] %v228
        %vm230 = vcmask 56368
        %s231 = scalar_lea.vmem %s100, 6 [#allocation1]
        %v232 = vld [vmem:[%s231] ss:$0 sm:$0xff]
        %s233 = scalar_lea.vmem %s92, 6 [#allocation0]
        %v234 = vld [vmem:[%s233] ss:$0 sm:$0xff]
        %v235 = vmul.f32 %v232, %v232
        %236 = vadd.xlane.f32.xlu0 %v235
        %v237 = vpop.xlane.xlu0 %236
        %v238 = vsub.f32 %v234, %v237
        %v239 = vrsqrt.pop %v238
        %v240 = vld [vmem:[%s92] sm:$0xff]
        %v241 = vld [vmem:[%s100] sm:$0xff]
        %v242 = vmul.f32 %v241, %v232
        %243 = vadd.xlane.f32.xlu0 %v242
        %v244 = vpop.xlane.xlu0 %243
        %v245 = vsub.f32 %v240, %v244
        %v246 = vmul.f32 %v245, %v239
        %vm247 = vcmask 1047558
        %vm248 = vmand %vm230, %vm247
        %v249 = vsel %vm248, %v246, 0.0
        %v250 = vadd.f32 %v241, %v249
        %251 = vst [vmem:[%s100] sm:$0xff] %v250
        %vm252 = vcmask 64568
        %s253 = scalar_lea.vmem %s100, 7 [#allocation1]
        %v254 = vld [vmem:[%s253] ss:$0 sm:$0xff]
        %s255 = scalar_lea.vmem %s92, 7 [#allocation0]
        %v256 = vld [vmem:[%s255] ss:$0 sm:$0xff]
        %v257 = vmul.f32 %v254, %v254
        %258 = vadd.xlane.f32.xlu0 %v257
        %v259 = vpop.xlane.xlu0 %258
        %v260 = vsub.f32 %v256, %v259
        %v261 = vrsqrt.pop %v260
        %v262 = vld [vmem:[%s92] sm:$0xff]
        %v263 = vld [vmem:[%s100] sm:$0xff]
        %v264 = vmul.f32 %v263, %v254
        %265 = vadd.xlane.f32.xlu0 %v264
        %v266 = vpop.xlane.xlu0 %265
        %v267 = vsub.f32 %v262, %v266
        %v268 = vmul.f32 %v267, %v261
        %vm269 = vcmask 1047559
        %vm270 = vmand %vm252, %vm269
        %v271 = vsel %vm270, %v268, 0.0
        %v272 = vadd.f32 %v263, %v271
        %273 = vst [vmem:[%s100] sm:$0xff] %v272
        %s274 = sand.u32 %s8, 1
        %s275 = sand.u32 %s8, 1
        %s276 = smul.addr %s275, 8
        %s277 = scalar_lea.vmem [#allocation1], %s276
        %s278 = sadd.s32 %s15, %s14
        %s279 = sadd.s32 %s278, %s13
        %s280 = smul.addr %s279, 8
        %s281 = scalar_lea.vmem %s1, %s280
        // Predicated region
        $region55: #{custom-call.43} parent=53 // pred_check
          _
        $region56: #{custom-call.43} parent=53 // pred_check_branch
          %283 = sbr.rel (0) target = $region58
        $region57: #{custom-call.43} parent=53 // pred_region
          // Predicated region
          $region59: #{custom-call.43} parent=57 // pred_check
            _
          $region60: #{custom-call.43} parent=57 // pred_check_branch
            %285 = sbr.rel (0) target = $region62
          $region61: #{custom-call.43} parent=57 // pred_region
            // Predicated region
            $region74: #{custom-call.43} parent=61 // pred_check
              _
            $region75: #{custom-call.43} parent=61 // pred_check_branch
              %301 = sbr.rel (0) target = $region77
            $region76: #{custom-call.43} parent=61 // pred_region
              loop: start=0, step=1, limit=1
              $region78: #{custom-call.43} parent=76 // loop_pre_header
                _
              $region79: #{custom-call.43} parent=76 // loop_header
                %s303 = sphi 0, %s307
                %p304 = scmp.ge.s32.totalorder %s303, 1
                %s308 = sphi %s277, %s277
                %s309 = sphi %s281, %s281
              $region80: #{custom-call.43} parent=76 // loop_header_branch
                %306 = sbr.rel (%p304) target = $region84
              $region81: #{custom-call.43} parent=76 // loop_body
                %v310 = vld [vmem:[%s308] sm:$0xff]
                %311 = vst [vmem:[%s309] sm:$0xff] %v310
              $region82: #{custom-call.43} parent=76 // loop_footer
                %s307 = sadd.s32 1, %s303
              $region83: #{custom-call.43} parent=76 // loop_footer_branch
                %302 = sbr.rel target = $region79
              $region84: #{custom-call.43} parent=76 // loop_exit
                _
            $region77: #{custom-call.43} parent=61 // pred_fallthru
              _
            // Predicated region
            $region85: #{custom-call.43} parent=61 // pred_check
              _
            $region86: #{custom-call.43} parent=61 // pred_check_branch
              %313 = sbr.rel target = $region88
            $region87: #{custom-call.43} parent=61 // pred_region
              _
            $region88: #{custom-call.43} parent=61 // pred_fallthru
              _
          $region62: #{custom-call.43} parent=57 // pred_fallthru
            _
          // Predicated region
          $region63: #{custom-call.43} parent=57 // pred_check
            _
          $region64: #{custom-call.43} parent=57 // pred_check_branch
            %287 = sbr.rel target = $region66
          $region65: #{custom-call.43} parent=57 // pred_region
            %s289 = ssub.s32 256, 1
            loop: start=0, step=1, limit=1
            $region67: #{custom-call.43} parent=65 // loop_pre_header
              _
            $region68: #{custom-call.43} parent=65 // loop_header
              %s291 = sphi 0, %s295
              %p292 = scmp.ge.s32.totalorder %s291, 1
              %s296 = sphi %s277, %s277
              %s297 = sphi %s281, %s281
            $region69: #{custom-call.43} parent=65 // loop_header_branch
              %294 = sbr.rel (%p292) target = $region73
            $region70: #{custom-call.43} parent=65 // loop_body
              %v298 = vld [vmem:[%s296] sm:%s289]
              %299 = vst [vmem:[%s297] sm:%s289] %v298
            $region71: #{custom-call.43} parent=65 // loop_footer
              %s295 = sadd.s32 1, %s291
            $region72: #{custom-call.43} parent=65 // loop_footer_branch
              %290 = sbr.rel target = $region68
            $region73: #{custom-call.43} parent=65 // loop_exit
              _
          $region66: #{custom-call.43} parent=57 // pred_fallthru
            _
        $region58: #{custom-call.43} parent=53 // pred_fallthru
          _
        %314 = vnop
      $region54: #{custom-call.43} parent=5 // pred_fallthru
        _
      %p315 = scmp.le.s32.totalorder 2, %s3
      // Predicated region
      $region89: #{custom-call.43} parent=5 // pred_check
        %p316 = pneg %p315
      $region90: #{custom-call.43} parent=5 // pred_check_branch
        %318 = sbr.rel (%p316) target = $region92
      $region91: #{custom-call.43} parent=5 // pred_region
        %s319 = ssub.s32 %s3, 2
        %s320 = sand.u32 %s9, 1
        %s321 = sand.u32 %s9, 1
        %s322 = smul.addr %s321, 8
        %s323 = scalar_lea.vmem [#allocation1], %s322
      $region92: #{custom-call.43} parent=5 // pred_fallthru
        _
    $region6: #{custom-call.43} parent=1 // loop_footer
      %s7 = sadd.s32 1, %s3
    $region7: #{custom-call.43} parent=1 // loop_footer_branch
      %2 = sbr.rel target = $region3
    $region8: #{custom-call.43} parent=1 // loop_exit
      _

// kernel: custom-call.44
$region0: #{custom-call.44}
  %s0 = inlined_call_operand.vmem [shape: f32[2,1,8,8], index: 0, kind: input, shape index: {}]
  %s1 = inlined_call_operand.vmem [shape: f32[2,1,8,8], index: 1, kind: output, shape index: {}]
  $region1: #{custom-call.44} parent=0
    #allocation0 [shape = 'u8[8192]{0}', space=vmem, size = 0x2000, scoped, tag = 'operand span for operand 0']
    #allocation1 [shape = 'u8[8192]{0}', space=vmem, size = 0x2000, scoped, tag = 'operand span for operand 1']
    loop: start=0, step=1, limit=4
    $region2: #{custom-call.44} parent=1 // loop_pre_header
      _
    $region3: #{custom-call.44} parent=1 // loop_header
      %s3 = sphi 0, %s7
      %p4 = scmp.ge.s32.totalorder %s3, 4
      %s10 = sphi 0, %s36
      %s11 = sphi 0, %s32
      %s12 = sphi 0, %s28
      %s13 = sphi 0, %s24
      %s14 = sphi 0, %s10
      %s15 = sphi 0, %s11
      %s16 = sphi 0, %s12
      %s17 = sphi 0, %s13
      %s18 = sphi 0, %s14
      %s19 = sphi 0, %s15
      %s20 = sphi 0, %s16
      %s21 = sphi 0, %s17
    $region4: #{custom-call.44} parent=1 // loop_header_branch
      %6 = sbr.rel (%p4) target = $region8
    $region5: #{custom-call.44} parent=1 // loop_body
      %s8 = ssub.s32 %s3, 1
      %s9 = ssub.s32 %s3, 2
      %s22 = sadd.s32 1, %s13
      %p23 = scmp.ge.s32.totalorder %s22, 1
      %s24 = scalar_select %p23, 0, %s22
      %s25 = sadd.s32 1, %s12
      %s26 = scalar_select %p23, %s25, %s12
      %p27 = scmp.ge.s32.totalorder %s26, 1
      %s28 = scalar_select %p27, 0, %s26
      %s29 = sadd.s32 1, %s11
      %s30 = scalar_select %p27, %s29, %s11
      %p31 = scmp.ge.s32.totalorder %s30, 1
      %s32 = scalar_select %p31, 0, %s30
      %s33 = sadd.s32 1, %s10
      %s34 = scalar_select %p31, %s33, %s10
      %p35 = scmp.ge.s32.totalorder %s34, 2
      %s36 = scalar_select %p35, 0, %s34
      %p37 = scmp.le.s32.totalorder 1, %s3
      %p38 = scmp.lt.s32.totalorder %s3, 3
      %p39 = pnand %p37, %p38
      %p40 = pneg %p39
      // Predicated region
      $region9: #{custom-call.44} parent=5 // pred_check
        _
      $region10: #{custom-call.44} parent=5 // pred_check_branch
        %42 = sbr.rel (%p39) target = $region12
      $region11: #{custom-call.44} parent=5 // pred_region
        %s43 = ssub.s32 %s3, 1
      $region12: #{custom-call.44} parent=5 // pred_fallthru
        _
      %p44 = scmp.lt.s32.totalorder %s3, 2
      // Predicated region
      $region13: #{custom-call.44} parent=5 // pred_check
        %p45 = pneg %p44
      $region14: #{custom-call.44} parent=5 // pred_check_branch
        %47 = sbr.rel (%p45) target = $region16
      $region15: #{custom-call.44} parent=5 // pred_region
        %s48 = sand.u32 %s3, 1
        %s49 = sand.u32 %s3, 1
        %s50 = smul.addr %s49, 8
        %s51 = scalar_lea.vmem [#allocation0], %s50
        %s52 = sadd.s32 %s13, %s12
        %s53 = sadd.s32 %s52, %s11
        %s54 = sadd.s32 %s53, %s10
        %s55 = smul.addr %s54, 8
        %s56 = scalar_lea.vmem %s0, %s55
        // Predicated region
        $region17: #{custom-call.44} parent=15 // pred_check
          _
        $region18: #{custom-call.44} parent=15 // pred_check_branch
          %58 = sbr.rel (0) target = $region20
        $region19: #{custom-call.44} parent=15 // pred_region
          // Predicated region
          $region21: #{custom-call.44} parent=19 // pred_check
            _
          $region22: #{custom-call.44} parent=19 // pred_check_branch
            %60 = sbr.rel (0) target = $region24
          $region23: #{custom-call.44} parent=19 // pred_region
            // Predicated region
            $region36: #{custom-call.44} parent=23 // pred_check
              _
            $region37: #{custom-call.44} parent=23 // pred_check_branch
              %76 = sbr.rel (0) target = $region39
            $region38: #{custom-call.44} parent=23 // pred_region
              loop: start=0, step=1, limit=1
              $region40: #{custom-call.44} parent=38 // loop_pre_header
                _
              $region41: #{custom-call.44} parent=38 // loop_header
                %s78 = sphi 0, %s82
                %p79 = scmp.ge.s32.totalorder %s78, 1
                %s83 = sphi %s56, %s56
                %s84 = sphi %s51, %s51
              $region42: #{custom-call.44} parent=38 // loop_header_branch
                %81 = sbr.rel (%p79) target = $region46
              $region43: #{custom-call.44} parent=38 // loop_body
                %v85 = vld [vmem:[%s83] sm:$0xff]
                %86 = vst [vmem:[%s84] sm:$0xff] %v85
              $region44: #{custom-call.44} parent=38 // loop_footer
                %s82 = sadd.s32 1, %s78
              $region45: #{custom-call.44} parent=38 // loop_footer_branch
                %77 = sbr.rel target = $region41
              $region46: #{custom-call.44} parent=38 // loop_exit
                _
            $region39: #{custom-call.44} parent=23 // pred_fallthru
              _
            // Predicated region
            $region47: #{custom-call.44} parent=23 // pred_check
              _
            $region48: #{custom-call.44} parent=23 // pred_check_branch
              %88 = sbr.rel target = $region50
            $region49: #{custom-call.44} parent=23 // pred_region
              _
            $region50: #{custom-call.44} parent=23 // pred_fallthru
              _
          $region24: #{custom-call.44} parent=19 // pred_fallthru
            _
          // Predicated region
          $region25: #{custom-call.44} parent=19 // pred_check
            _
          $region26: #{custom-call.44} parent=19 // pred_check_branch
            %62 = sbr.rel target = $region28
          $region27: #{custom-call.44} parent=19 // pred_region
            %s64 = ssub.s32 256, 1
            loop: start=0, step=1, limit=1
            $region29: #{custom-call.44} parent=27 // loop_pre_header
              _
            $region30: #{custom-call.44} parent=27 // loop_header
              %s66 = sphi 0, %s70
              %p67 = scmp.ge.s32.totalorder %s66, 1
              %s71 = sphi %s56, %s56
              %s72 = sphi %s51, %s51
            $region31: #{custom-call.44} parent=27 // loop_header_branch
              %69 = sbr.rel (%p67) target = $region35
            $region32: #{custom-call.44} parent=27 // loop_body
              %v73 = vld [vmem:[%s71] sm:%s64]
              %74 = vst [vmem:[%s72] sm:%s64] %v73
            $region33: #{custom-call.44} parent=27 // loop_footer
              %s70 = sadd.s32 1, %s66
            $region34: #{custom-call.44} parent=27 // loop_footer_branch
              %65 = sbr.rel target = $region30
            $region35: #{custom-call.44} parent=27 // loop_exit
              _
          $region28: #{custom-call.44} parent=19 // pred_fallthru
            _
        $region20: #{custom-call.44} parent=15 // pred_fallthru
          _
        %89 = vnop
      $region16: #{custom-call.44} parent=5 // pred_fallthru
        _
      %p90 = scmp.le.s32.totalorder 1, %s3
      %p91 = scmp.lt.s32.totalorder %s3, 3
      %p92 = pnand %p90, %p91
      %p93 = pneg %p92
      // Predicated region
      $region51: #{custom-call.44} parent=5 // pred_check
        _
      $region52: #{custom-call.44} parent=5 // pred_check_branch
        %95 = sbr.rel (%p92) target = $region54
      $region53: #{custom-call.44} parent=5 // pred_region
        #allocation2 [shape = 'f32[8,8]{1,0}', space=vmem, size = 0x1000, scoped, tag = 'rescaled input a']
        %s96 = ssub.s32 %s3, 1
        %s97 = sand.u32 %s8, 1
        %s98 = sand.u32 %s8, 1
        %s99 = smul.addr %s98, 8
        %s100 = scalar_lea.vmem [#allocation0], %s99
        %s101 = sand.u32 %s8, 1
        %s102 = sand.u32 %s8, 1
        %s103 = smul.addr %s102, 8
        %s104 = scalar_lea.vmem [#allocation0], %s103
        %s105 = sand.u32 %s8, 1
        %s106 = sand.u32 %s8, 1
        %s107 = smul.addr %s106, 8
        %s108 = scalar_lea.vmem [#allocation1], %s107
        %v109 = vlaneseq
        %v110 = vand.u32 %v109, 127
        %vm111 = vcmp.lt.s32.totalorder %v110, 8
        %v112 = vlaneseq
        %v113 = vshrl.u32 %v112, 7
        %vm115 = vcmp.eq.s32.totalorder %v113, %v110
        %v116 = vld [vmem:[%s100] sm:$0xff]
        %v117 = vsel %vm115, %v116, 0.0
        %118 = vadd.xlane.f32.xlu0 %v117
        %v119 = vpop.xlane.xlu0 %118
        %vm120 = vcmp.ge.s32.totalorder %v113, %v110
        %vm121 = vmand %vm120, %vm111
        %v122 = vsel %vm121, %v116, 0.0
        %v123 = vrcp.pop %v119
        %v124 = vmul.f32 %v122, %v123
        %125 = vst [vmem:[#allocation2] sm:$0xff] %v124
        %v126 = vlaneseq
        %v127 = vand.u32 %v126, 127
        %v128 = vlaneseq
        %v129 = vshrl.u32 %v128, 7
        %vm131 = vcmp.eq.s32.totalorder %v127, %v129
        %v132 = vlaneseq
        %v133 = vand.u32 %v132, 127
        %vm134 = vcmp.eq.s32.totalorder %v133, 0
        %v135 = vsel %vm134, 1.0, -1.0
        %v136 = vsel %vm131, %v135, 0.0
        %s137 = scalar_lea.vmem [#allocation2], 1
        %v138 = vld [vmem:[%s137] ss:$0 sm:$0xff]
        %v139 = vxor.u32 %v138, 2147483648
        %v140 = vlaneseq
        %v141 = vand.u32 %v140, 127
        %vm142 = vcmp.eq.s32.totalorder %v141, 1
        %v143 = vmul.f32 %v139, %v136
        %144 = vadd.xlane.f32.xlu0 %v143
        %v145 = vpop.xlane.xlu0 %144
        %v146 = vsel %vm142, %v145, %v136
        %s147 = scalar_lea.vmem [#allocation2], 2
        %v148 = vld [vmem:[%s147] ss:$0 sm:$0xff]
        %v149 = vxor.u32 %v148, 2147483648
        %v150 = vlaneseq
        %v151 = vand.u32 %v150, 127
        %vm152 = vcmp.eq.s32.totalorder %v151, 2
        %v153 = vmul.f32 %v149, %v146
        %154 = vadd.xlane.f32.xlu0 %v153
        %v155 = vpop.xlane.xlu0 %154
        %v156 = vsel %vm152, %v155, %v146
        %s157 = scalar_lea.vmem [#allocation2], 3
        %v158 = vld [vmem:[%s157] ss:$0 sm:$0xff]
        %v159 = vxor.u32 %v158, 2147483648
        %v160 = vlaneseq
        %v161 = vand.u32 %v160, 127
        %vm162 = vcmp.eq.s32.totalorder %v161, 3
        %v163 = vmul.f32 %v159, %v156
        %164 = vadd.xlane.f32.xlu0 %v163
        %v165 = vpop.xlane.xlu0 %164
        %v166 = vsel %vm162, %v165, %v156
        %s167 = scalar_lea.vmem [#allocation2], 4
        %v168 = vld [vmem:[%s167] ss:$0 sm:$0xff]
        %v169 = vxor.u32 %v168, 2147483648
        %v170 = vlaneseq
        %v171 = vand.u32 %v170, 127
        %vm172 = vcmp.eq.s32.totalorder %v171, 4
        %v173 = vmul.f32 %v169, %v166
        %174 = vadd.xlane.f32.xlu0 %v173
        %v175 = vpop.xlane.xlu0 %174
        %v176 = vsel %vm172, %v175, %v166
        %s177 = scalar_lea.vmem [#allocation2], 5
        %v178 = vld [vmem:[%s177] ss:$0 sm:$0xff]
        %v179 = vxor.u32 %v178, 2147483648
        %v180 = vlaneseq
        %v181 = vand.u32 %v180, 127
        %vm182 = vcmp.eq.s32.totalorder %v181, 5
        %v183 = vmul.f32 %v179, %v176
        %184 = vadd.xlane.f32.xlu0 %v183
        %v185 = vpop.xlane.xlu0 %184
        %v186 = vsel %vm182, %v185, %v176
        %s187 = scalar_lea.vmem [#allocation2], 6
        %v188 = vld [vmem:[%s187] ss:$0 sm:$0xff]
        %v189 = vxor.u32 %v188, 2147483648
        %v190 = vlaneseq
        %v191 = vand.u32 %v190, 127
        %vm192 = vcmp.eq.s32.totalorder %v191, 6
        %v193 = vmul.f32 %v189, %v186
        %194 = vadd.xlane.f32.xlu0 %v193
        %v195 = vpop.xlane.xlu0 %194
        %v196 = vsel %vm192, %v195, %v186
        %s197 = scalar_lea.vmem [#allocation2], 7
        %v198 = vld [vmem:[%s197] ss:$0 sm:$0xff]
        %v199 = vxor.u32 %v198, 2147483648
        %v200 = vlaneseq
        %v201 = vand.u32 %v200, 127
        %vm202 = vcmp.eq.s32.totalorder %v201, 7
        %v203 = vmul.f32 %v199, %v196
        %204 = vadd.xlane.f32.xlu0 %v203
        %v205 = vpop.xlane.xlu0 %204
        %v206 = vsel %vm202, %v205, %v196
        %v207 = vrcp.pop %v119
        %v208 = vmul.f32 %v206, %v207
        %vm209 = vweird.f32 %v119
        %v210 = vsel %vm209, %v206, %v208
        %211 = vst [vmem:[%s108] sm:$0xff] %v210
        %s212 = sand.u32 %s8, 1
        %s213 = sand.u32 %s8, 1
        %s214 = smul.addr %s213, 8
        %s215 = scalar_lea.vmem [#allocation1], %s214
        %s216 = sadd.s32 %s17, %s16
        %s217 = sadd.s32 %s216, %s15
        %s218 = sadd.s32 %s217, %s14
        %s219 = smul.addr %s218, 8
        %s220 = scalar_lea.vmem %s1, %s219
        // Predicated region
        $region55: #{custom-call.44} parent=53 // pred_check
          _
        $region56: #{custom-call.44} parent=53 // pred_check_branch
          %222 = sbr.rel (0) target = $region58
        $region57: #{custom-call.44} parent=53 // pred_region
          // Predicated region
          $region59: #{custom-call.44} parent=57 // pred_check
            _
          $region60: #{custom-call.44} parent=57 // pred_check_branch
            %224 = sbr.rel (0) target = $region62
          $region61: #{custom-call.44} parent=57 // pred_region
            // Predicated region
            $region74: #{custom-call.44} parent=61 // pred_check
              _
            $region75: #{custom-call.44} parent=61 // pred_check_branch
              %240 = sbr.rel (0) target = $region77
            $region76: #{custom-call.44} parent=61 // pred_region
              loop: start=0, step=1, limit=1
              $region78: #{custom-call.44} parent=76 // loop_pre_header
                _
              $region79: #{custom-call.44} parent=76 // loop_header
                %s242 = sphi 0, %s246
                %p243 = scmp.ge.s32.totalorder %s242, 1
                %s247 = sphi %s215, %s215
                %s248 = sphi %s220, %s220
              $region80: #{custom-call.44} parent=76 // loop_header_branch
                %245 = sbr.rel (%p243) target = $region84
              $region81: #{custom-call.44} parent=76 // loop_body
                %v249 = vld [vmem:[%s247] sm:$0xff]
                %250 = vst [vmem:[%s248] sm:$0xff] %v249
              $region82: #{custom-call.44} parent=76 // loop_footer
                %s246 = sadd.s32 1, %s242
              $region83: #{custom-call.44} parent=76 // loop_footer_branch
                %241 = sbr.rel target = $region79
              $region84: #{custom-call.44} parent=76 // loop_exit
                _
            $region77: #{custom-call.44} parent=61 // pred_fallthru
              _
            // Predicated region
            $region85: #{custom-call.44} parent=61 // pred_check
              _
            $region86: #{custom-call.44} parent=61 // pred_check_branch
              %252 = sbr.rel target = $region88
            $region87: #{custom-call.44} parent=61 // pred_region
              _
            $region88: #{custom-call.44} parent=61 // pred_fallthru
              _
          $region62: #{custom-call.44} parent=57 // pred_fallthru
            _
          // Predicated region
          $region63: #{custom-call.44} parent=57 // pred_check
            _
          $region64: #{custom-call.44} parent=57 // pred_check_branch
            %226 = sbr.rel target = $region66
          $region65: #{custom-call.44} parent=57 // pred_region
            %s228 = ssub.s32 256, 1
            loop: start=0, step=1, limit=1
            $region67: #{custom-call.44} parent=65 // loop_pre_header
              _
            $region68: #{custom-call.44} parent=65 // loop_header
              %s230 = sphi 0, %s234
              %p231 = scmp.ge.s32.totalorder %s230, 1
              %s235 = sphi %s215, %s215
              %s236 = sphi %s220, %s220
            $region69: #{custom-call.44} parent=65 // loop_header_branch
              %233 = sbr.rel (%p231) target = $region73
            $region70: #{custom-call.44} parent=65 // loop_body
              %v237 = vld [vmem:[%s235] sm:%s228]
              %238 = vst [vmem:[%s236] sm:%s228] %v237
            $region71: #{custom-call.44} parent=65 // loop_footer
              %s234 = sadd.s32 1, %s230
            $region72: #{custom-call.44} parent=65 // loop_footer_branch
              %229 = sbr.rel target = $region68
            $region73: #{custom-call.44} parent=65 // loop_exit
              _
          $region66: #{custom-call.44} parent=57 // pred_fallthru
            _
        $region58: #{custom-call.44} parent=53 // pred_fallthru
          _
        %253 = vnop
      $region54: #{custom-call.44} parent=5 // pred_fallthru
        _
      %p254 = scmp.le.s32.totalorder 2, %s3
      // Predicated region
      $region89: #{custom-call.44} parent=5 // pred_check
        %p255 = pneg %p254
      $region90: #{custom-call.44} parent=5 // pred_check_branch
        %257 = sbr.rel (%p255) target = $region92
      $region91: #{custom-call.44} parent=5 // pred_region
        %s258 = ssub.s32 %s3, 2
        %s259 = sand.u32 %s9, 1
        %s260 = sand.u32 %s9, 1
        %s261 = smul.addr %s260, 8
        %s262 = scalar_lea.vmem [#allocation1], %s261
      $region92: #{custom-call.44} parent=5 // pred_fallthru
        _
    $region6: #{custom-call.44} parent=1 // loop_footer
      %s7 = sadd.s32 1, %s3
    $region7: #{custom-call.44} parent=1 // loop_footer_branch
      %2 = sbr.rel target = $region3
    $region8: #{custom-call.44} parent=1 // loop_exit
      _

// kernel: reverse
$region0: #{reverse}
  %s0 = inlined_call_operand.vmem [shape: f32[2,8], index: 0, kind: input, shape index: {}]
  %s1 = inlined_call_operand.vmem [shape: f32[2,8], index: 1, kind: output, shape index: {}]
  %v2 = vlaneseq
  %v3 = vsub.s32 7, %v2
  %4 = vset.pattern.permute.xlu0 %v3
  $region1: #{reverse} parent=0
    #allocation0 [shape = 'u8[4096]{0}', space=vmem, size = 0x1000, scoped, tag = 'operand span for operand 0']
    #allocation1 [shape = 'u8[1024]{0}', space=vmem, size = 0x400, scoped, tag = 'packed  for operand 0']
    #allocation2 [shape = 'u8[4096]{0}', space=vmem, size = 0x1000, scoped, tag = 'operand span for operand 1']
    #allocation3 [shape = 'u8[1024]{0}', space=vmem, size = 0x400, scoped, tag = 'packed  for operand 1']
    // Predicated region
    $region2: #{reverse} parent=1 // pred_check
      _
    $region3: #{reverse} parent=1 // pred_check_branch
      %6 = sbr.rel (0) target = $region5
    $region4: #{reverse} parent=1 // pred_region
      // Predicated region
      $region6: #{reverse} parent=4 // pred_check
        _
      $region7: #{reverse} parent=4 // pred_check_branch
        %8 = sbr.rel target = $region9
      $region8: #{reverse} parent=4 // pred_region
        // Predicated region
        $region21: #{reverse} parent=8 // pred_check
          _
        $region22: #{reverse} parent=8 // pred_check_branch
          %24 = sbr.rel (0) target = $region24
        $region23: #{reverse} parent=8 // pred_region
          %s26 = ssub.s32 4, 1
          loop: start=0, step=1, limit=1
          $region25: #{reverse} parent=23 // loop_pre_header
            _
          $region26: #{reverse} parent=23 // loop_header
            %s28 = sphi 0, %s32
            %p29 = scmp.ge.s32.totalorder %s28, 1
            %s33 = sphi %s0, %s0
            %s34 = sphi [#allocation1], [#allocation1]
          $region27: #{reverse} parent=23 // loop_header_branch
            %31 = sbr.rel (%p29) target = $region31
          $region28: #{reverse} parent=23 // loop_body
            %v35 = vld [vmem:[%s33] sm:%s26]
            %36 = vst [vmem:[%s34] sm:%s26] %v35
          $region29: #{reverse} parent=23 // loop_footer
            %s32 = sadd.s32 1, %s28
          $region30: #{reverse} parent=23 // loop_footer_branch
            %27 = sbr.rel target = $region26
          $region31: #{reverse} parent=23 // loop_exit
            _
        $region24: #{reverse} parent=8 // pred_fallthru
          _
      $region9: #{reverse} parent=4 // pred_fallthru
        _
      // Predicated region
      $region10: #{reverse} parent=4 // pred_check
        _
      $region11: #{reverse} parent=4 // pred_check_branch
        %10 = sbr.rel (0) target = $region13
      $region12: #{reverse} parent=4 // pred_region
        %s12 = ssub.s32 4, 1
        loop: start=0, step=1, limit=1
        $region14: #{reverse} parent=12 // loop_pre_header
          _
        $region15: #{reverse} parent=12 // loop_header
          %s14 = sphi 0, %s18
          %p15 = scmp.ge.s32.totalorder %s14, 1
          %s19 = sphi %s0, %s0
          %s20 = sphi [#allocation1], [#allocation1]
        $region16: #{reverse} parent=12 // loop_header_branch
          %17 = sbr.rel (%p15) target = $region20
        $region17: #{reverse} parent=12 // loop_body
          %v21 = vld [vmem:[%s19] sm:%s12]
          %22 = vst [vmem:[%s20] sm:%s12] %v21
        $region18: #{reverse} parent=12 // loop_footer
          %s18 = sadd.s32 1, %s14
        $region19: #{reverse} parent=12 // loop_footer_branch
          %13 = sbr.rel target = $region15
        $region20: #{reverse} parent=12 // loop_exit
          _
      $region13: #{reverse} parent=4 // pred_fallthru
        _
    $region5: #{reverse} parent=1 // pred_fallthru
      _
    %37 = vnop
    %s39 = sshll.u32 1, 2
    %s40 = ssub.s32 %s39, 1
    %v41 = vld [vmem:[#allocation1] sm:%s40]
    %42 = vst [vmem:[#allocation0] sm:%s40] %v41
    %v43 = vld [vmem:[#allocation0] sm:$0xff]
    %44 = vperm.xlu0 %4, %v43
    %v45 = vpop.permute.xlu0 %44
    %46 = vst [vmem:[#allocation2] sm:$0xff] %v45
    %s48 = sshll.u32 1, 2
    %s49 = ssub.s32 %s48, 1
    %v51 = vld [vmem:[#allocation2] sm:%s49]
    %s52 = sshll.u32 1, 2
    %s53 = ssub.s32 %s52, 1
    %54 = vst [vmem:[#allocation3] sm:%s53] %v51
    // Predicated region
    $region32: #{reverse} parent=1 // pred_check
      _
    $region33: #{reverse} parent=1 // pred_check_branch
      %56 = sbr.rel (0) target = $region35
    $region34: #{reverse} parent=1 // pred_region
      // Predicated region
      $region36: #{reverse} parent=34 // pred_check
        _
      $region37: #{reverse} parent=34 // pred_check_branch
        %58 = sbr.rel target = $region39
      $region38: #{reverse} parent=34 // pred_region
        // Predicated region
        $region51: #{reverse} parent=38 // pred_check
          _
        $region52: #{reverse} parent=38 // pred_check_branch
          %74 = sbr.rel (0) target = $region54
        $region53: #{reverse} parent=38 // pred_region
          %s76 = ssub.s32 4, 1
          loop: start=0, step=1, limit=1
          $region55: #{reverse} parent=53 // loop_pre_header
            _
          $region56: #{reverse} parent=53 // loop_header
            %s78 = sphi 0, %s82
            %p79 = scmp.ge.s32.totalorder %s78, 1
            %s83 = sphi [#allocation3], [#allocation3]
            %s84 = sphi %s1, %s1
          $region57: #{reverse} parent=53 // loop_header_branch
            %81 = sbr.rel (%p79) target = $region61
          $region58: #{reverse} parent=53 // loop_body
            %v85 = vld [vmem:[%s83] sm:%s76]
            %86 = vst [vmem:[%s84] sm:%s76] %v85
          $region59: #{reverse} parent=53 // loop_footer
            %s82 = sadd.s32 1, %s78
          $region60: #{reverse} parent=53 // loop_footer_branch
            %77 = sbr.rel target = $region56
          $region61: #{reverse} parent=53 // loop_exit
            _
        $region54: #{reverse} parent=38 // pred_fallthru
          _
      $region39: #{reverse} parent=34 // pred_fallthru
        _
      // Predicated region
      $region40: #{reverse} parent=34 // pred_check
        _
      $region41: #{reverse} parent=34 // pred_check_branch
        %60 = sbr.rel (0) target = $region43
      $region42: #{reverse} parent=34 // pred_region
        %s62 = ssub.s32 4, 1
        loop: start=0, step=1, limit=1
        $region44: #{reverse} parent=42 // loop_pre_header
          _
        $region45: #{reverse} parent=42 // loop_header
          %s64 = sphi 0, %s68
          %p65 = scmp.ge.s32.totalorder %s64, 1
          %s69 = sphi [#allocation3], [#allocation3]
          %s70 = sphi %s1, %s1
        $region46: #{reverse} parent=42 // loop_header_branch
          %67 = sbr.rel (%p65) target = $region50
        $region47: #{reverse} parent=42 // loop_body
          %v71 = vld [vmem:[%s69] sm:%s62]
          %72 = vst [vmem:[%s70] sm:%s62] %v71
        $region48: #{reverse} parent=42 // loop_footer
          %s68 = sadd.s32 1, %s64
        $region49: #{reverse} parent=42 // loop_footer_branch
          %63 = sbr.rel target = $region45
        $region50: #{reverse} parent=42 // loop_exit
          _
      $region43: #{reverse} parent=34 // pred_fallthru
        _
    $region35: #{reverse} parent=1 // pred_fallthru
      _
    %87 = vnop

// kernel: custom-call.16
$region0: #{custom-call.16}
  %s0 = inlined_call_operand.vmem [shape: f32[2,4,4], index: 0, kind: input, shape index: {}]
  %s1 = inlined_call_operand.vmem [shape: f32[2,4,4], index: 1, kind: input, shape index: {}]
  %s2 = inlined_call_operand.vmem [shape: f32[2,4,4], index: 2, kind: input, shape index: {}]
  %s3 = inlined_call_operand.vmem [shape: f32[2,4,4], index: 3, kind: input, shape index: {}]
  %s4 = inlined_call_operand.vmem [shape: f32[2,4], index: 4, kind: output, shape index: {0}]
  %s5 = inlined_call_operand.vmem [shape: f32[2,4], index: 5, kind: output, shape index: {1}]
  %s6 = inlined_call_operand.vmem [shape: f32[2,4,4], index: 6, kind: output, shape index: {2}]
  %s7 = inlined_call_operand.vmem [shape: f32[2,4,4], index: 7, kind: output, shape index: {3}]
  %s8 = inlined_call_operand.vmem [shape: f32[2,4,4], index: 8, kind: output, shape index: {4}]
  %s9 = inlined_call_operand.vmem [shape: f32[2,4,4], index: 9, kind: output, shape index: {5}]
  %10 = xla_tuple %s4, %s5, %s6, %s7, %s8, %s9
  $region1: #{custom-call.16} parent=0
    #allocation0 [shape = 'u8[4096]{0}', space=vmem, size = 0x1000, scoped, tag = 'operand span for operand 0']
    #allocation1 [shape = 'u8[4096]{0}', space=vmem, size = 0x1000, scoped, tag = 'packed  for operand 0']
    #allocation2 [shape = 'u8[4096]{0}', space=vmem, size = 0x1000, scoped, tag = 'operand span for operand 1']
    #allocation3 [shape = 'u8[4096]{0}', space=vmem, size = 0x1000, scoped, tag = 'packed  for operand 1']
    #allocation4 [shape = 'u8[4096]{0}', space=vmem, size = 0x1000, scoped, tag = 'operand span for operand 2']
    #allocation5 [shape = 'u8[4096]{0}', space=vmem, size = 0x1000, scoped, tag = 'packed  for operand 2']
    #allocation6 [shape = 'u8[4096]{0}', space=vmem, size = 0x1000, scoped, tag = 'operand span for operand 3']
    #allocation7 [shape = 'u8[4096]{0}', space=vmem, size = 0x1000, scoped, tag = 'packed  for operand 3']
    #allocation8 [shape = 'u8[4096]{0}', space=vmem, size = 0x1000, scoped, tag = 'operand span for operand 4']
    #allocation9 [shape = 'u8[2048]{0}', space=vmem, size = 0x800, scoped, tag = 'packed  for operand 4']
    #allocation10 [shape = 'u8[4096]{0}', space=vmem, size = 0x1000, scoped, tag = 'operand span for operand 5']
    #allocation11 [shape = 'u8[2048]{0}', space=vmem, size = 0x800, scoped, tag = 'packed  for operand 5']
    #allocation12 [shape = 'u8[4096]{0}', space=vmem, size = 0x1000, scoped, tag = 'operand span for operand 6']
    #allocation13 [shape = 'u8[4096]{0}', space=vmem, size = 0x1000, scoped, tag = 'packed  for operand 6']
    #allocation14 [shape = 'u8[4096]{0}', space=vmem, size = 0x1000, scoped, tag = 'operand span for operand 7']
    #allocation15 [shape = 'u8[4096]{0}', space=vmem, size = 0x1000, scoped, tag = 'packed  for operand 7']
    #allocation16 [shape = 'u8[4096]{0}', space=vmem, size = 0x1000, scoped, tag = 'operand span for operand 8']
    #allocation17 [shape = 'u8[4096]{0}', space=vmem, size = 0x1000, scoped, tag = 'packed  for operand 8']
    #allocation18 [shape = 'u8[4096]{0}', space=vmem, size = 0x1000, scoped, tag = 'operand span for operand 9']
    #allocation19 [shape = 'u8[4096]{0}', space=vmem, size = 0x1000, scoped, tag = 'packed  for operand 9']
    loop: start=0, step=1, limit=4
    $region2: #{custom-call.16} parent=1 // loop_pre_header
      _
    $region3: #{custom-call.16} parent=1 // loop_header
      %s12 = sphi 0, %s16
      %p13 = scmp.ge.s32.totalorder %s12, 4
      %s24 = sphi 0, %s26
      %s27 = sphi 0, %s24
      %s28 = sphi 0, %s27
      %s44 = sphi 0, %s28
      %s52 = sphi 0, %s54
      %s55 = sphi 0, %s52
      %s56 = sphi 0, %s55
      %s72 = sphi 0, %s56
    $region4: #{custom-call.16} parent=1 // loop_header_branch
      %15 = sbr.rel (%p13) target = $region8
    $region5: #{custom-call.16} parent=1 // loop_body
      %s17 = ssub.s32 %s12, 1
      %s18 = ssub.s32 %s12, 2
      %s19 = sadd.s32 %s12, 1
      %s20 = sshrl.u32 %s12, 3
      %s21 = sshrl.u32 %s19, 3
      %s22 = ssub.s32 %s20, %s21
      %p23 = scmp.eq.s32.totalorder %s22, 0
      %s25 = sadd.s32 %s24, 1
      %s26 = scalar_select %p23, %s24, %s25
      %p29 = pneg %p23
      %p30 = scmp.eq.s32.totalorder %s12, 1
      %p31 = por %p29, %p30
      %p32 = scmp.ne.s32.totalorder %s24, %s27
      %p33 = scmp.eq.s32.totalorder %s12, 0
      %p34 = por %p32, %p33
      %p35 = scmp.ne.s32.totalorder %s24, %s27
      %p36 = scmp.eq.s32.totalorder %s17, 1
      %p37 = por %p35, %p36
      %p38 = scmp.ne.s32.totalorder %s27, %s28
      %p39 = scmp.eq.s32.totalorder %s17, 0
      %p40 = por %p38, %p39
      %p41 = scmp.ne.s32.totalorder %s27, %s28
      %p42 = scmp.eq.s32.totalorder %s18, 1
      %p43 = por %p41, %p42
      %p45 = scmp.ne.s32.totalorder %s28, %s44
      %p46 = scmp.eq.s32.totalorder %s18, 0
      %p47 = por %p45, %p46
      %s48 = sshrl.u32 %s12, 3
      %s49 = sshrl.u32 %s19, 3
      %s50 = ssub.s32 %s48, %s49
      %p51 = scmp.eq.s32.totalorder %s50, 0
      %s53 = sadd.s32 %s52, 1
      %s54 = scalar_select %p51, %s52, %s53
      %p57 = pneg %p51
      %p58 = scmp.eq.s32.totalorder %s12, 1
      %p59 = por %p57, %p58
      %p60 = scmp.ne.s32.totalorder %s52, %s55
      %p61 = scmp.eq.s32.totalorder %s12, 0
      %p62 = por %p60, %p61
      %p63 = scmp.ne.s32.totalorder %s52, %s55
      %p64 = scmp.eq.s32.totalorder %s17, 1
      %p65 = por %p63, %p64
      %p66 = scmp.ne.s32.totalorder %s55, %s56
      %p67 = scmp.eq.s32.totalorder %s17, 0
      %p68 = por %p66, %p67
      %p69 = scmp.ne.s32.totalorder %s55, %s56
      %p70 = scmp.eq.s32.totalorder %s18, 1
      %p71 = por %p69, %p70
      %p73 = scmp.ne.s32.totalorder %s56, %s72
      %p74 = scmp.eq.s32.totalorder %s18, 0
      %p75 = por %p73, %p74
      %p76 = scmp.le.s32.totalorder 1, %s12
      %p77 = scmp.lt.s32.totalorder %s12, 3
      %p78 = pnand %p76, %p77
      %p79 = pneg %p78
      // Predicated region
      $region9: #{custom-call.16} parent=5 // pred_check
        _
      $region10: #{custom-call.16} parent=5 // pred_check_branch
        %81 = sbr.rel (%p78) target = $region12
      $region11: #{custom-call.16} parent=5 // pred_region
        %s82 = ssub.s32 %s12, 1
      $region12: #{custom-call.16} parent=5 // pred_fallthru
        _
      %p83 = scmp.lt.s32.totalorder %s12, 2
      // Predicated region
      $region13: #{custom-call.16} parent=5 // pred_check
        %p84 = pneg %p83
      $region14: #{custom-call.16} parent=5 // pred_check_branch
        %86 = sbr.rel (%p84) target = $region16
      $region15: #{custom-call.16} parent=5 // pred_region
        %s87 = sand.u32 %s12, 1
        %s88 = sand.u32 %s12, 1
        %s89 = smul.addr %s88, 4
        %s90 = scalar_lea.vmem [#allocation1], %s89
        %s91 = smul.addr %s12, 4
        %s92 = scalar_lea.vmem %s0, %s91
        // Predicated region
        $region17: #{custom-call.16} parent=15 // pred_check
          _
        $region18: #{custom-call.16} parent=15 // pred_check_branch
          %94 = sbr.rel (0) target = $region20
        $region19: #{custom-call.16} parent=15 // pred_region
          // Predicated region
          $region21: #{custom-call.16} parent=19 // pred_check
            _
          $region22: #{custom-call.16} parent=19 // pred_check_branch
            %96 = sbr.rel target = $region24
          $region23: #{custom-call.16} parent=19 // pred_region
            // Predicated region
            $region36: #{custom-call.16} parent=23 // pred_check
              _
            $region37: #{custom-call.16} parent=23 // pred_check_branch
              %112 = sbr.rel (0) target = $region39
            $region38: #{custom-call.16} parent=23 // pred_region
              %s114 = ssub.s32 16, 1
              loop: start=0, step=1, limit=1
              $region40: #{custom-call.16} parent=38 // loop_pre_header
                _
              $region41: #{custom-call.16} parent=38 // loop_header
                %s116 = sphi 0, %s120
                %p117 = scmp.ge.s32.totalorder %s116, 1
                %s121 = sphi %s92, %s92
                %s122 = sphi %s90, %s90
              $region42: #{custom-call.16} parent=38 // loop_header_branch
                %119 = sbr.rel (%p117) target = $region46
              $region43: #{custom-call.16} parent=38 // loop_body
                %v123 = vld [vmem:[%s121] sm:%s114]
                %124 = vst [vmem:[%s122] sm:%s114] %v123
              $region44: #{custom-call.16} parent=38 // loop_footer
                %s120 = sadd.s32 1, %s116
              $region45: #{custom-call.16} parent=38 // loop_footer_branch
                %115 = sbr.rel target = $region41
              $region46: #{custom-call.16} parent=38 // loop_exit
                _
            $region39: #{custom-call.16} parent=23 // pred_fallthru
              _
          $region24: #{custom-call.16} parent=19 // pred_fallthru
            _
          // Predicated region
          $region25: #{custom-call.16} parent=19 // pred_check
            _
          $region26: #{custom-call.16} parent=19 // pred_check_branch
            %98 = sbr.rel (0) target = $region28
          $region27: #{custom-call.16} parent=19 // pred_region
            %s100 = ssub.s32 16, 1
            loop: start=0, step=1, limit=1
            $region29: #{custom-call.16} parent=27 // loop_pre_header
              _
            $region30: #{custom-call.16} parent=27 // loop_header
              %s102 = sphi 0, %s106
              %p103 = scmp.ge.s32.totalorder %s102, 1
              %s107 = sphi %s92, %s92
              %s108 = sphi %s90, %s90
            $region31: #{custom-call.16} parent=27 // loop_header_branch
              %105 = sbr.rel (%p103) target = $region35
            $region32: #{custom-call.16} parent=27 // loop_body
              %v109 = vld [vmem:[%s107] sm:%s100]
              %110 = vst [vmem:[%s108] sm:%s100] %v109
            $region33: #{custom-call.16} parent=27 // loop_footer
              %s106 = sadd.s32 1, %s102
            $region34: #{custom-call.16} parent=27 // loop_footer_branch
              %101 = sbr.rel target = $region30
            $region35: #{custom-call.16} parent=27 // loop_exit
              _
          $region28: #{custom-call.16} parent=19 // pred_fallthru
            _
        $region20: #{custom-call.16} parent=15 // pred_fallthru
          _
        %125 = vnop
        %s126 = sand.u32 %s12, 1
        %s127 = sand.u32 %s12, 1
        %s128 = smul.addr %s127, 4
        %s129 = scalar_lea.vmem [#allocation3], %s128
        %s130 = smul.addr %s12, 4
        %s131 = scalar_lea.vmem %s1, %s130
        // Predicated region
        $region47: #{custom-call.16} parent=15 // pred_check
          _
        $region48: #{custom-call.16} parent=15 // pred_check_branch
          %133 = sbr.rel (0) target = $region50
        $region49: #{custom-call.16} parent=15 // pred_region
          // Predicated region
          $region51: #{custom-call.16} parent=49 // pred_check
            _
          $region52: #{custom-call.16} parent=49 // pred_check_branch
            %135 = sbr.rel target = $region54
          $region53: #{custom-call.16} parent=49 // pred_region
            // Predicated region
            $region66: #{custom-call.16} parent=53 // pred_check
              _
            $region67: #{custom-call.16} parent=53 // pred_check_branch
              %151 = sbr.rel (0) target = $region69
            $region68: #{custom-call.16} parent=53 // pred_region
              %s153 = ssub.s32 16, 1
              loop: start=0, step=1, limit=1
              $region70: #{custom-call.16} parent=68 // loop_pre_header
                _
              $region71: #{custom-call.16} parent=68 // loop_header
                %s155 = sphi 0, %s159
                %p156 = scmp.ge.s32.totalorder %s155, 1
                %s160 = sphi %s131, %s131
                %s161 = sphi %s129, %s129
              $region72: #{custom-call.16} parent=68 // loop_header_branch
                %158 = sbr.rel (%p156) target = $region76
              $region73: #{custom-call.16} parent=68 // loop_body
                %v162 = vld [vmem:[%s160] sm:%s153]
                %163 = vst [vmem:[%s161] sm:%s153] %v162
              $region74: #{custom-call.16} parent=68 // loop_footer
                %s159 = sadd.s32 1, %s155
              $region75: #{custom-call.16} parent=68 // loop_footer_branch
                %154 = sbr.rel target = $region71
              $region76: #{custom-call.16} parent=68 // loop_exit
                _
            $region69: #{custom-call.16} parent=53 // pred_fallthru
              _
          $region54: #{custom-call.16} parent=49 // pred_fallthru
            _
          // Predicated region
          $region55: #{custom-call.16} parent=49 // pred_check
            _
          $region56: #{custom-call.16} parent=49 // pred_check_branch
            %137 = sbr.rel (0) target = $region58
          $region57: #{custom-call.16} parent=49 // pred_region
            %s139 = ssub.s32 16, 1
            loop: start=0, step=1, limit=1
            $region59: #{custom-call.16} parent=57 // loop_pre_header
              _
            $region60: #{custom-call.16} parent=57 // loop_header
              %s141 = sphi 0, %s145
              %p142 = scmp.ge.s32.totalorder %s141, 1
              %s146 = sphi %s131, %s131
              %s147 = sphi %s129, %s129
            $region61: #{custom-call.16} parent=57 // loop_header_branch
              %144 = sbr.rel (%p142) target = $region65
            $region62: #{custom-call.16} parent=57 // loop_body
              %v148 = vld [vmem:[%s146] sm:%s139]
              %149 = vst [vmem:[%s147] sm:%s139] %v148
            $region63: #{custom-call.16} parent=57 // loop_footer
              %s145 = sadd.s32 1, %s141
            $region64: #{custom-call.16} parent=57 // loop_footer_branch
              %140 = sbr.rel target = $region60
            $region65: #{custom-call.16} parent=57 // loop_exit
              _
          $region58: #{custom-call.16} parent=49 // pred_fallthru
            _
        $region50: #{custom-call.16} parent=15 // pred_fallthru
          _
        %164 = vnop
        %s165 = sand.u32 %s12, 1
        %s166 = sand.u32 %s12, 1
        %s167 = smul.addr %s166, 4
        %s168 = scalar_lea.vmem [#allocation5], %s167
        %s169 = smul.addr %s12, 4
        %s170 = scalar_lea.vmem %s2, %s169
        // Predicated region
        $region77: #{custom-call.16} parent=15 // pred_check
          _
        $region78: #{custom-call.16} parent=15 // pred_check_branch
          %172 = sbr.rel (0) target = $region80
        $region79: #{custom-call.16} parent=15 // pred_region
          // Predicated region
          $region81: #{custom-call.16} parent=79 // pred_check
            _
          $region82: #{custom-call.16} parent=79 // pred_check_branch
            %174 = sbr.rel target = $region84
          $region83: #{custom-call.16} parent=79 // pred_region
            // Predicated region
            $region96: #{custom-call.16} parent=83 // pred_check
              _
            $region97: #{custom-call.16} parent=83 // pred_check_branch
              %190 = sbr.rel (0) target = $region99
            $region98: #{custom-call.16} parent=83 // pred_region
              %s192 = ssub.s32 16, 1
              loop: start=0, step=1, limit=1
              $region100: #{custom-call.16} parent=98 // loop_pre_header
                _
              $region101: #{custom-call.16} parent=98 // loop_header
                %s194 = sphi 0, %s198
                %p195 = scmp.ge.s32.totalorder %s194, 1
                %s199 = sphi %s170, %s170
                %s200 = sphi %s168, %s168
              $region102: #{custom-call.16} parent=98 // loop_header_branch
                %197 = sbr.rel (%p195) target = $region106
              $region103: #{custom-call.16} parent=98 // loop_body
                %v201 = vld [vmem:[%s199] sm:%s192]
                %202 = vst [vmem:[%s200] sm:%s192] %v201
              $region104: #{custom-call.16} parent=98 // loop_footer
                %s198 = sadd.s32 1, %s194
              $region105: #{custom-call.16} parent=98 // loop_footer_branch
                %193 = sbr.rel target = $region101
              $region106: #{custom-call.16} parent=98 // loop_exit
                _
            $region99: #{custom-call.16} parent=83 // pred_fallthru
              _
          $region84: #{custom-call.16} parent=79 // pred_fallthru
            _
          // Predicated region
          $region85: #{custom-call.16} parent=79 // pred_check
            _
          $region86: #{custom-call.16} parent=79 // pred_check_branch
            %176 = sbr.rel (0) target = $region88
          $region87: #{custom-call.16} parent=79 // pred_region
            %s178 = ssub.s32 16, 1
            loop: start=0, step=1, limit=1
            $region89: #{custom-call.16} parent=87 // loop_pre_header
              _
            $region90: #{custom-call.16} parent=87 // loop_header
              %s180 = sphi 0, %s184
              %p181 = scmp.ge.s32.totalorder %s180, 1
              %s185 = sphi %s170, %s170
              %s186 = sphi %s168, %s168
            $region91: #{custom-call.16} parent=87 // loop_header_branch
              %183 = sbr.rel (%p181) target = $region95
            $region92: #{custom-call.16} parent=87 // loop_body
              %v187 = vld [vmem:[%s185] sm:%s178]
              %188 = vst [vmem:[%s186] sm:%s178] %v187
            $region93: #{custom-call.16} parent=87 // loop_footer
              %s184 = sadd.s32 1, %s180
            $region94: #{custom-call.16} parent=87 // loop_footer_branch
              %179 = sbr.rel target = $region90
            $region95: #{custom-call.16} parent=87 // loop_exit
              _
          $region88: #{custom-call.16} parent=79 // pred_fallthru
            _
        $region80: #{custom-call.16} parent=15 // pred_fallthru
          _
        %203 = vnop
        %s204 = sand.u32 %s12, 1
        %s205 = sand.u32 %s12, 1
        %s206 = smul.addr %s205, 4
        %s207 = scalar_lea.vmem [#allocation7], %s206
        %s208 = smul.addr %s12, 4
        %s209 = scalar_lea.vmem %s3, %s208
        // Predicated region
        $region107: #{custom-call.16} parent=15 // pred_check
          _
        $region108: #{custom-call.16} parent=15 // pred_check_branch
          %211 = sbr.rel (0) target = $region110
        $region109: #{custom-call.16} parent=15 // pred_region
          // Predicated region
          $region111: #{custom-call.16} parent=109 // pred_check
            _
          $region112: #{custom-call.16} parent=109 // pred_check_branch
            %213 = sbr.rel target = $region114
          $region113: #{custom-call.16} parent=109 // pred_region
            // Predicated region
            $region126: #{custom-call.16} parent=113 // pred_check
              _
            $region127: #{custom-call.16} parent=113 // pred_check_branch
              %229 = sbr.rel (0) target = $region129
            $region128: #{custom-call.16} parent=113 // pred_region
              %s231 = ssub.s32 16, 1
              loop: start=0, step=1, limit=1
              $region130: #{custom-call.16} parent=128 // loop_pre_header
                _
              $region131: #{custom-call.16} parent=128 // loop_header
                %s233 = sphi 0, %s237
                %p234 = scmp.ge.s32.totalorder %s233, 1
                %s238 = sphi %s209, %s209
                %s239 = sphi %s207, %s207
              $region132: #{custom-call.16} parent=128 // loop_header_branch
                %236 = sbr.rel (%p234) target = $region136
              $region133: #{custom-call.16} parent=128 // loop_body
                %v240 = vld [vmem:[%s238] sm:%s231]
                %241 = vst [vmem:[%s239] sm:%s231] %v240
              $region134: #{custom-call.16} parent=128 // loop_footer
                %s237 = sadd.s32 1, %s233
              $region135: #{custom-call.16} parent=128 // loop_footer_branch
                %232 = sbr.rel target = $region131
              $region136: #{custom-call.16} parent=128 // loop_exit
                _
            $region129: #{custom-call.16} parent=113 // pred_fallthru
              _
          $region114: #{custom-call.16} parent=109 // pred_fallthru
            _
          // Predicated region
          $region115: #{custom-call.16} parent=109 // pred_check
            _
          $region116: #{custom-call.16} parent=109 // pred_check_branch
            %215 = sbr.rel (0) target = $region118
          $region117: #{custom-call.16} parent=109 // pred_region
            %s217 = ssub.s32 16, 1
            loop: start=0, step=1, limit=1
            $region119: #{custom-call.16} parent=117 // loop_pre_header
              _
            $region120: #{custom-call.16} parent=117 // loop_header
              %s219 = sphi 0, %s223
              %p220 = scmp.ge.s32.totalorder %s219, 1
              %s224 = sphi %s209, %s209
              %s225 = sphi %s207, %s207
            $region121: #{custom-call.16} parent=117 // loop_header_branch
              %222 = sbr.rel (%p220) target = $region125
            $region122: #{custom-call.16} parent=117 // loop_body
              %v226 = vld [vmem:[%s224] sm:%s217]
              %227 = vst [vmem:[%s225] sm:%s217] %v226
            $region123: #{custom-call.16} parent=117 // loop_footer
              %s223 = sadd.s32 1, %s219
            $region124: #{custom-call.16} parent=117 // loop_footer_branch
              %218 = sbr.rel target = $region120
            $region125: #{custom-call.16} parent=117 // loop_exit
              _
          $region118: #{custom-call.16} parent=109 // pred_fallthru
            _
        $region110: #{custom-call.16} parent=15 // pred_fallthru
          _
        %242 = vnop
      $region16: #{custom-call.16} parent=5 // pred_fallthru
        _
      %p243 = scmp.le.s32.totalorder 1, %s12
      %p244 = scmp.lt.s32.totalorder %s12, 3
      %p245 = pnand %p243, %p244
      %p246 = pneg %p245
      // Predicated region
      $region137: #{custom-call.16} parent=5 // pred_check
        _
      $region138: #{custom-call.16} parent=5 // pred_check_branch
        %248 = sbr.rel (%p245) target = $region140
      $region139: #{custom-call.16} parent=5 // pred_region
        #allocation20 [shape = 'f32[4,4]{1,0}', space=vmem, size = 0x1000, scoped, tag = 'a top-left matrix']
        #allocation21 [shape = 'f32[4,4]{1,0}', space=vmem, size = 0x1000, scoped, tag = 'a top-right matrix']
        #allocation22 [shape = 'f32[4,4]{1,0}', space=vmem, size = 0x1000, scoped, tag = 'a bottom-left matrix']
        #allocation23 [shape = 'f32[4,4]{1,0}', space=vmem, size = 0x1000, scoped, tag = 'a bottom-right matrix']
        %s249 = ssub.s32 %s12, 1
        %s250 = sand.u32 %s17, 1
        %s251 = sand.u32 %s17, 1
        %s252 = smul.addr %s251, 4
        %s253 = scalar_lea.vmem [#allocation1], %s252
        %s254 = sand.u32 %s17, 1
        %s255 = sand.u32 %s17, 1
        %s256 = smul.addr %s255, 4
        %s257 = scalar_lea.vmem [#allocation3], %s256
        %s258 = sand.u32 %s17, 1
        %s259 = sand.u32 %s17, 1
        %s260 = smul.addr %s259, 4
        %s261 = scalar_lea.vmem [#allocation5], %s260
        %s262 = sand.u32 %s17, 1
        %s263 = sand.u32 %s17, 1
        %s264 = smul.addr %s263, 4
        %s265 = scalar_lea.vmem [#allocation7], %s264
        %s266 = sand.u32 %s17, 1
        %s267 = sand.u32 %s17, 1
        %s268 = smul.addr %s267, 4
        %s269 = scalar_lea.vmem [#allocation1], %s268
        %s270 = sand.u32 %s17, 1
        %s271 = sand.u32 %s17, 1
        %s272 = smul.addr %s271, 4
        %s273 = scalar_lea.vmem [#allocation3], %s272
        %s274 = sand.u32 %s17, 1
        %s275 = sand.u32 %s17, 1
        %s276 = smul.addr %s275, 4
        %s277 = scalar_lea.vmem [#allocation5], %s276
        %s278 = sand.u32 %s17, 1
        %s279 = sand.u32 %s17, 1
        %s280 = smul.addr %s279, 4
        %s281 = scalar_lea.vmem [#allocation7], %s280
        %p282 = pneg %p40
        %p283 = pneg %p37
        %s284 = sand.u32 %s27, 1
        %s285 = sand.u32 %s27, 1
        %s286 = smul.addr %s285, 2
        %s287 = scalar_lea.vmem [#allocation9], %s286
        %p288 = pneg %p68
        %p289 = pneg %p65
        %s290 = sand.u32 %s55, 1
        %s291 = sand.u32 %s55, 1
        %s292 = smul.addr %s291, 2
        %s293 = scalar_lea.vmem [#allocation11], %s292
        %s294 = sand.u32 %s17, 1
        %s295 = sand.u32 %s17, 1
        %s296 = smul.addr %s295, 4
        %s297 = scalar_lea.vmem [#allocation13], %s296
        %s298 = sand.u32 %s17, 1
        %s299 = sand.u32 %s17, 1
        %s300 = smul.addr %s299, 4
        %s301 = scalar_lea.vmem [#allocation15], %s300
        %s302 = sand.u32 %s17, 1
        %s303 = sand.u32 %s17, 1
        %s304 = smul.addr %s303, 4
        %s305 = scalar_lea.vmem [#allocation17], %s304
        %s306 = sand.u32 %s17, 1
        %s307 = sand.u32 %s17, 1
        %s308 = smul.addr %s307, 4
        %s309 = scalar_lea.vmem [#allocation19], %s308
        %s311 = sshll.u32 1, 4
        %s312 = ssub.s32 %s311, 1
        %v313 = vld [vmem:[%s269] sm:%s312]
        %314 = vst [vmem:[#allocation0] sm:%s312] %v313
        %s316 = sshll.u32 1, 4
        %s317 = ssub.s32 %s316, 1
        %v318 = vld [vmem:[%s273] sm:%s317]
        %319 = vst [vmem:[#allocation2] sm:%s317] %v318
        %s321 = sshll.u32 1, 4
        %s322 = ssub.s32 %s321, 1
        %v323 = vld [vmem:[%s277] sm:%s322]
        %324 = vst [vmem:[#allocation4] sm:%s322] %v323
        %s326 = sshll.u32 1, 4
        %s327 = ssub.s32 %s326, 1
        %v328 = vld [vmem:[%s281] sm:%s327]
        %329 = vst [vmem:[#allocation6] sm:%s327] %v328
        %s330 = sshrl.u32 %s17, 3
        %s331 = sshrl.u32 %s17, 3
        %s332 = smov [#allocation20]
        %v333 = vld [vmem:[#allocation0] sm:$0xff]
        %334 = vst [vmem:[%s332] sm:$0xff] %v333
        %s335 = smov [#allocation21]
        %v336 = vld [vmem:[#allocation2] sm:$0xff]
        %337 = vst [vmem:[%s335] sm:$0xff] %v336
        %s338 = smov [#allocation22]
        %v339 = vld [vmem:[#allocation4] sm:$0xff]
        %340 = vst [vmem:[%s338] sm:$0xff] %v339
        %s341 = smov [#allocation23]
        %v342 = vld [vmem:[#allocation6] sm:$0xff]
        %343 = vst [vmem:[%s341] sm:$0xff] %v342
        %344 = vst [vmem:[#allocation12] sm:$0xff] 0.0
        %345 = vst [vmem:[#allocation14] sm:$0xff] 0.0
        %346 = vst [vmem:[#allocation16] sm:$0xff] 0.0
        %347 = vst [vmem:[#allocation18] sm:$0xff] 0.0
        %s348 = smov [#allocation12]
        %v349 = vlaneseq
        %v350 = vand.u32 %v349, 127
        %v351 = vmov %v350
        %v352 = vlaneseq
        %v353 = vshrl.u32 %v352, 7
        %v354 = vmov %v353
        %v355 = vld [vmem:[%s348] sm:$0xf]
        %vm358 = vcmp.eq.s32.totalorder %v354, %v351
        %v359 = vsel %vm358, 1.0, %v355
        %360 = vst [vmem:[%s348] sm:$0xf] %v359
        %s361 = smov [#allocation18]
        %v362 = vlaneseq
        %v363 = vand.u32 %v362, 127
        %v364 = vmov %v363
        %v365 = vlaneseq
        %v366 = vshrl.u32 %v365, 7
        %v367 = vmov %v366
        %v368 = vld [vmem:[%s361] sm:$0xf]
        %vm371 = vcmp.eq.s32.totalorder %v367, %v364
        %v372 = vsel %vm371, 1.0, %v368
        %373 = vst [vmem:[%s361] sm:$0xf] %v372
        // While loop
        $region141: #{custom-call.16} parent=139 // loop_pre_header
          _
        $region142: #{custom-call.16} parent=139 // loop_header
          %s375 = sphi 0, %s917
          %v376 = vlaneseq
          %v377 = vand.u32 %v376, 127
          %v378 = vmov %v377
          %v379 = vlaneseq
          %v380 = vshrl.u32 %v379, 7
          %v381 = vmov %v380
          %s382 = smov [#allocation20]
          %v383 = vlaneseq
          %v384 = vand.u32 %v383, 127
          %vm385 = vcmp.ge.s32.totalorder %v384, 0
          %vm386 = vcmp.lt.s32.totalorder %v384, 4
          %vm387 = vmand %vm385, %vm386
          %v388 = vld [vmem:[%s382] sm:$0xf]
          %v389 = vsel %vm387, %v388, 0.0
          %v390 = vmul.f32 %v389, %v389
          %vm393 = vcmp.eq.s32.totalorder %v381, %v378
          %v394 = vsel %vm393, 0.0, %v390
          %v395 = vlaneseq
          %v396 = vand.u32 %v395, 127
          %v397 = vmov %v396
          %v398 = vlaneseq
          %v399 = vshrl.u32 %v398, 7
          %v400 = vmov %v399
          %s401 = smov [#allocation21]
          %v402 = vlaneseq
          %v403 = vand.u32 %v402, 127
          %vm404 = vcmp.ge.s32.totalorder %v403, 0
          %vm405 = vcmp.lt.s32.totalorder %v403, 4
          %vm406 = vmand %vm404, %vm405
          %v407 = vld [vmem:[%s401] sm:$0xf]
          %v408 = vsel %vm406, %v407, 0.0
          %v409 = vmul.f32 %v408, %v408
          %v410 = vadd.f32 %v394, %v409
          %v411 = vadd.f32 %v390, %v409
          %v412 = vlaneseq
          %v413 = vand.u32 %v412, 127
          %v414 = vmov %v413
          %v415 = vlaneseq
          %v416 = vshrl.u32 %v415, 7
          %v417 = vmov %v416
          %s418 = smov [#allocation22]
          %v419 = vlaneseq
          %v420 = vand.u32 %v419, 127
          %vm421 = vcmp.ge.s32.totalorder %v420, 0
          %vm422 = vcmp.lt.s32.totalorder %v420, 4
          %vm423 = vmand %vm421, %vm422
          %v424 = vld [vmem:[%s418] sm:$0xf]
          %v425 = vsel %vm423, %v424, 0.0
          %v426 = vmul.f32 %v425, %v425
          %v427 = vadd.f32 %v410, %v426
          %v428 = vadd.f32 %v411, %v426
          %v429 = vlaneseq
          %v430 = vand.u32 %v429, 127
          %v431 = vmov %v430
          %v432 = vlaneseq
          %v433 = vshrl.u32 %v432, 7
          %v434 = vmov %v433
          %s435 = smov [#allocation23]
          %v436 = vlaneseq
          %v437 = vand.u32 %v436, 127
          %vm438 = vcmp.ge.s32.totalorder %v437, 0
          %vm439 = vcmp.lt.s32.totalorder %v437, 4
          %vm440 = vmand %vm438, %vm439
          %v441 = vld [vmem:[%s435] sm:$0xf]
          %v442 = vsel %vm440, %v441, 0.0
          %v443 = vmul.f32 %v442, %v442
          %vm446 = vcmp.eq.s32.totalorder %v434, %v431
          %v447 = vsel %vm446, 0.0, %v443
          %v448 = vadd.f32 %v427, %v447
          %v449 = vadd.f32 %v428, %v443
          %450 = vadd.xlane.f32.xlu0 %v449
          %v451 = vpop.xlane.xlu0 %450
          %v452 = vrot.slane %v451, 4
          %v453 = vadd.f32 %v451, %v452
          %v454 = vrot.slane %v453, 2
          %v455 = vadd.f32 %v453, %v454
          %v456 = vrot.slane %v455, 1
          %v457 = vadd.f32 %v455, %v456
          %458 = vadd.xlane.f32.xlu0 %v448
          %v459 = vpop.xlane.xlu0 %458
          %v460 = vrot.slane %v459, 4
          %v461 = vadd.f32 %v459, %v460
          %v462 = vrot.slane %v461, 2
          %v463 = vadd.f32 %v461, %v462
          %v464 = vrot.slane %v463, 1
          %v465 = vadd.f32 %v463, %v464
          %s466 = vtos %v465
          %s467 = vtos %v457
          %s468 = smul.f32 1e-10, %s467
          %p469 = scmp.le.f32.partialorder %s466, %s468
          %p470 = scmp.ge.s32.totalorder %s375, 15
          %p471 = por %p469, %p470
        $region143: #{custom-call.16} parent=139 // loop_header_branch
          %919 = sbr.rel (%p471) target = $region147
        $region144: #{custom-call.16} parent=139 // loop_body
          loop: start=0, step=1, limit=7
          $region148: #{custom-call.16} parent=144 // loop_pre_header
            _
          $region149: #{custom-call.16} parent=144 // loop_header
            %s473 = sphi 0, %s477
            %p474 = scmp.ge.s32.totalorder %s473, 7
          $region150: #{custom-call.16} parent=144 // loop_header_branch
            %476 = sbr.rel (%p474) target = $region154
          $region151: #{custom-call.16} parent=144 // loop_body
            #allocation24 [shape = 'f32[1024]{0}', space=vmem, size = 0x1000, scoped, tag = 'a_tl_diag vmem']
            #allocation25 [shape = 'f32[1024]{0}', space=vmem, size = 0x1000, scoped, tag = 'a_tr_diag vmem']
            #allocation26 [shape = 'f32[1024]{0}', space=vmem, size = 0x1000, scoped, tag = 'a_br_diag vmem']
            #allocation27 [shape = 'f32[1024]{0}', space=vmem, size = 0x1000, scoped, tag = 'rt1 vmem']
            #allocation28 [shape = 'f32[1024]{0}', space=vmem, size = 0x1000, scoped, tag = 'rt2 vmem']
            #allocation29 [shape = 'f32[1024]{0}', space=vmem, size = 0x1000, scoped, tag = 'c vmem']
            #allocation30 [shape = 'f32[1024]{0}', space=vmem, size = 0x1000, scoped, tag = 's vmem']
            #allocation31 [shape = 'f32[4096]{0}', space=vmem, size = 0x4000, scoped, tag = 'c broadcast']
            #allocation32 [shape = 'f32[4096]{0}', space=vmem, size = 0x4000, scoped, tag = 's broadcast']
            %s478 = smov [#allocation20]
            %s479 = smov [#allocation24]
            %v480 = vlaneseq
            %v481 = vand.u32 %v480, 127
            %v482 = vmov %v481
            %v483 = vlaneseq
            %v484 = vshrl.u32 %v483, 7
            %v485 = vmov %v484
            %v486 = vld [vmem:[%s478] sm:$0xf]
            %vm489 = vcmp.eq.s32.totalorder %v485, %v482
            %v490 = vsel %vm489, %v486, 0.0
            %v491 = vrot.slane %v490, 4
            %v492 = vadd.f32 %v490, %v491
            %v493 = vrot.slane %v492, 2
            %v494 = vadd.f32 %v492, %v493
            %v495 = vrot.slane %v494, 1
            %v496 = vadd.f32 %v494, %v495
            %497 = vst [vmem:[%s479] sm:$0x1] %v496
            %s498 = smov [#allocation21]
            %s499 = smov [#allocation25]
            %v500 = vlaneseq
            %v501 = vand.u32 %v500, 127
            %v502 = vmov %v501
            %v503 = vlaneseq
            %v504 = vshrl.u32 %v503, 7
            %v505 = vmov %v504
            %v506 = vld [vmem:[%s498] sm:$0xf]
            %vm509 = vcmp.eq.s32.totalorder %v505, %v502
            %v510 = vsel %vm509, %v506, 0.0
            %v511 = vrot.slane %v510, 4
            %v512 = vadd.f32 %v510, %v511
            %v513 = vrot.slane %v512, 2
            %v514 = vadd.f32 %v512, %v513
            %v515 = vrot.slane %v514, 1
            %v516 = vadd.f32 %v514, %v515
            %517 = vst [vmem:[%s499] sm:$0x1] %v516
            %s518 = smov [#allocation23]
            %s519 = smov [#allocation26]
            %v520 = vlaneseq
            %v521 = vand.u32 %v520, 127
            %v522 = vmov %v521
            %v523 = vlaneseq
            %v524 = vshrl.u32 %v523, 7
            %v525 = vmov %v524
            %v526 = vld [vmem:[%s518] sm:$0xf]
            %vm529 = vcmp.eq.s32.totalorder %v525, %v522
            %v530 = vsel %vm529, %v526, 0.0
            %v531 = vrot.slane %v530, 4
            %v532 = vadd.f32 %v530, %v531
            %v533 = vrot.slane %v532, 2
            %v534 = vadd.f32 %v532, %v533
            %v535 = vrot.slane %v534, 1
            %v536 = vadd.f32 %v534, %v535
            %537 = vst [vmem:[%s519] sm:$0x1] %v536
            %s538 = smov [#allocation29]
            %s539 = smov [#allocation30]
            %s540 = smov [#allocation24]
            %v541 = vld [vmem:[%s540] sm:$0xff]
            %s542 = smov [#allocation25]
            %v543 = vld [vmem:[%s542] sm:$0xff]
            %s544 = smov [#allocation26]
            %v545 = vld [vmem:[%s544] sm:$0xff]
            %v546 = vsub.f32 %v545, %v541
            %v547 = vmul.f32 2.0, %v543
            %v548 = vrcp.pop %v547
            %v549 = vmul.f32 %v546, %v548
            %vm550 = vcmp.ge.f32.partialorder %v549, 0.0
            %v551 = vmul.f32 %v549, %v549
            %v552 = vadd.f32 1.0, %v551
            %v553 = vrsqrt.pop %v552
            %v554 = vmul.f32 %v552, %v553
            %vm555 = vcmp.eq.f32.partialorder %v552, inf
            %v556 = vsel %vm555, %v552, %v554
            %vm557 = vcmp.eq.f32.partialorder %v552, 0.0
            %v558 = vand.u32 %v552, 2147483648
            %v559 = vsel %vm557, %v558, %v556
            %v560 = vxor.u32 %v559, 2147483648
            %v561 = vsel %vm550, %v559, %v560
            %v562 = vadd.f32 %v549, %v561
            %v563 = vrcp.pop %v562
            %v564 = vand.u32 2147483647, %v541
            %v565 = vand.u32 2147483647, %v543
            %v566 = vand.u32 2147483647, %v545
            %v567 = vmin.f32 %v564, %v566
            %v568 = vmul.f32 1.1920929e-08, %v567
            %vm569 = vcmp.le.f32.partialorder %v565, %v568
            %v570 = vsel %vm569, 0.0, %v563
            %v571 = vmul.f32 %v570, %v570
            %v572 = vadd.f32 1.0, %v571
            %v573 = vrsqrt.pop %v572
            %v574 = vmul.f32 %v570, %v573
            %v575 = vmul.f32 %v570, %v543
            %v576 = vsub.f32 %v541, %v575
            %v577 = vmul.f32 %v570, %v543
            %v578 = vadd.f32 %v545, %v577
            %s579 = smov [#allocation27]
            %580 = vst [vmem:[%s579] sm:$0xff] %v576
            %s581 = smov [#allocation28]
            %582 = vst [vmem:[%s581] sm:$0xff] %v578
            %s583 = smov %s538
            %584 = vst [vmem:[%s583] sm:$0xff] %v573
            %s585 = smov %s539
            %586 = vst [vmem:[%s585] sm:$0xff] %v574
            %s587 = smov [#allocation29]
            %v588 = vld [vmem:[%s587] ss:$0 sm:$0xff]
            %v589 = vlaneseq
            %v590 = vand.u32 %v589, 127
            %v591 = vmov %v590
            %v592 = vlaneseq
            %v593 = vshrl.u32 %v592, 7
            %v594 = vmov %v593
            %vm596 = vcmp.eq.s32.totalorder %v594, %v591
            %v597 = vsel %vm596, %v588, 0.0
            %598 = vadd.xlane.f32.xlu0 %v597
            %v599 = vpop.xlane.xlu0 %598
            %s600 = smov [#allocation31]
            %601 = vst [vmem:[%s600] sm:$0xff] %v599
            %s602 = smov [#allocation30]
            %v603 = vld [vmem:[%s602] ss:$0 sm:$0xff]
            %v604 = vlaneseq
            %v605 = vand.u32 %v604, 127
            %v606 = vmov %v605
            %v607 = vlaneseq
            %v608 = vshrl.u32 %v607, 7
            %v609 = vmov %v608
            %vm611 = vcmp.eq.s32.totalorder %v609, %v606
            %v612 = vsel %vm611, %v603, 0.0
            %613 = vadd.xlane.f32.xlu0 %v612
            %v614 = vpop.xlane.xlu0 %613
            %s615 = smov [#allocation32]
            %616 = vst [vmem:[%s615] sm:$0xff] %v614
            %s617 = smov [#allocation31]
            %v618 = vld [vmem:[%s617] sm:$0xff]
            %s619 = smov [#allocation32]
            %v620 = vld [vmem:[%s619] sm:$0xff]
            %s621 = smov [#allocation20]
            %s622 = smov [#allocation21]
            %s623 = smov [#allocation22]
            %s624 = smov [#allocation23]
            %v625 = vld [vmem:[%s621] sm:$0xf]
            %v626 = vld [vmem:[%s622] sm:$0xf]
            %v627 = vld [vmem:[%s623] sm:$0xf]
            %v628 = vld [vmem:[%s624] sm:$0xf]
            %v629 = vmul.f32 %v618, %v625
            %v630 = vmul.f32 %v620, %v627
            %v631 = vsub.f32 %v629, %v630
            %v632 = vmul.f32 %v618, %v626
            %v633 = vmul.f32 %v620, %v628
            %v634 = vsub.f32 %v632, %v633
            %v635 = vmul.f32 %v620, %v625
            %v636 = vmul.f32 %v618, %v627
            %v637 = vadd.f32 %v635, %v636
            %v638 = vmul.f32 %v620, %v626
            %v639 = vmul.f32 %v618, %v628
            %v640 = vadd.f32 %v638, %v639
            %641 = vst [vmem:[%s621] sm:$0xf] %v631
            %642 = vst [vmem:[%s622] sm:$0xf] %v634
            %643 = vst [vmem:[%s623] sm:$0xf] %v637
            %644 = vst [vmem:[%s624] sm:$0xf] %v640
            %s645 = smov [#allocation29]
            %v646 = vld [vmem:[%s645] ss:$0 sm:$0xff]
            %s647 = smov [#allocation30]
            %v648 = vld [vmem:[%s647] ss:$0 sm:$0xff]
            %s649 = smov [#allocation20]
            %s650 = smov [#allocation21]
            %s651 = smov [#allocation22]
            %s652 = smov [#allocation23]
            %v653 = vld [vmem:[%s649] sm:$0xf]
            %v654 = vld [vmem:[%s650] sm:$0xf]
            %v655 = vld [vmem:[%s651] sm:$0xf]
            %v656 = vld [vmem:[%s652] sm:$0xf]
            %v657 = vmul.f32 %v646, %v653
            %v658 = vmul.f32 %v648, %v654
            %v659 = vsub.f32 %v657, %v658
            %v660 = vmul.f32 %v648, %v653
            %v661 = vmul.f32 %v646, %v654
            %v662 = vadd.f32 %v660, %v661
            %v663 = vmul.f32 %v646, %v655
            %v664 = vmul.f32 %v648, %v656
            %v665 = vsub.f32 %v663, %v664
            %v666 = vmul.f32 %v648, %v655
            %v667 = vmul.f32 %v646, %v656
            %v668 = vadd.f32 %v666, %v667
            %669 = vst [vmem:[%s649] sm:$0xf] %v659
            %670 = vst [vmem:[%s650] sm:$0xf] %v662
            %671 = vst [vmem:[%s651] sm:$0xf] %v665
            %672 = vst [vmem:[%s652] sm:$0xf] %v668
            %s673 = smov [#allocation20]
            %s674 = smov [#allocation27]
            %v675 = vlaneseq
            %v676 = vand.u32 %v675, 127
            %v677 = vmov %v676
            %v678 = vlaneseq
            %v679 = vshrl.u32 %v678, 7
            %v680 = vmov %v679
            %v681 = vld [vmem:[%s674] ss:$0 sm:$0xff]
            %v682 = vld [vmem:[%s673] sm:$0xf]
            %vm685 = vcmp.eq.s32.totalorder %v680, %v677
            %v686 = vsel %vm685, %v681, %v682
            %687 = vst [vmem:[%s673] sm:$0xf] %v686
            %s688 = smov [#allocation21]
            %v689 = vlaneseq
            %v690 = vand.u32 %v689, 127
            %v691 = vmov %v690
            %v692 = vlaneseq
            %v693 = vshrl.u32 %v692, 7
            %v694 = vmov %v693
            %v695 = vld [vmem:[%s688] sm:$0xf]
            %vm698 = vcmp.eq.s32.totalorder %v694, %v691
            %v699 = vsel %vm698, 0.0, %v695
            %700 = vst [vmem:[%s688] sm:$0xf] %v699
            %s701 = smov [#allocation22]
            %v702 = vlaneseq
            %v703 = vand.u32 %v702, 127
            %v704 = vmov %v703
            %v705 = vlaneseq
            %v706 = vshrl.u32 %v705, 7
            %v707 = vmov %v706
            %v708 = vld [vmem:[%s701] sm:$0xf]
            %vm711 = vcmp.eq.s32.totalorder %v707, %v704
            %v712 = vsel %vm711, 0.0, %v708
            %713 = vst [vmem:[%s701] sm:$0xf] %v712
            %s714 = smov [#allocation23]
            %s715 = smov [#allocation28]
            %v716 = vlaneseq
            %v717 = vand.u32 %v716, 127
            %v718 = vmov %v717
            %v719 = vlaneseq
            %v720 = vshrl.u32 %v719, 7
            %v721 = vmov %v720
            %v722 = vld [vmem:[%s715] ss:$0 sm:$0xff]
            %v723 = vld [vmem:[%s714] sm:$0xf]
            %vm726 = vcmp.eq.s32.totalorder %v721, %v718
            %v727 = vsel %vm726, %v722, %v723
            %728 = vst [vmem:[%s714] sm:$0xf] %v727
            %s729 = smov [#allocation20]
            %s730 = smov [#allocation21]
            %v731 = vld [vmem:[%s730] sm:$0xf]
            %732 = vrot.lane.b32.xlu0 %v731, 1
            %v733 = vpop.permute.xlu0 %732
            %v734 = vld [vmem:[%s729] sm:$0xf]
            %v735 = vld [vmem:[%s729] sm:$0xf]
            %736 = vrot.lane.b32.xlu0 %v735, 1
            %v737 = vpop.permute.xlu0 %736
            %v738 = vlaneseq
            %v739 = vand.u32 %v738, 127
            %vm740 = vcmp.eq.s32.totalorder %v739, 0
            %v741 = vsel %vm740, %v735, %v737
            %v742 = vlaneseq
            %v743 = vand.u32 %v742, 127
            %vm744 = vcmp.eq.s32.totalorder %v743, 1
            %v745 = vsel %vm744, %v733, %v741
            %v746 = vlaneseq
            %v747 = vand.u32 %v746, 127
            %vm748 = vcmp.ge.s32.totalorder %v747, 0
            %vm749 = vcmp.lt.s32.totalorder %v747, 4
            %vm750 = vmand %vm748, %vm749
            %v751 = vsel %vm750, %v745, 0.0
            %v752 = vld [vmem:[%s730] sm:$0xf]
            %753 = vrot.lane.b32.xlu0 %v752, 127
            %v754 = vpop.permute.xlu0 %753
            %v755 = vlaneseq
            %v756 = vand.u32 %v755, 127
            %vm757 = vcmp.eq.s32.totalorder %v756, 3
            %v758 = vsel %vm757, %v734, %v754
            %759 = vst [vmem:[%s729] sm:$0xf] %v751
            %760 = vst [vmem:[%s730] sm:$0xf] %v758
            %s761 = smov [#allocation22]
            %s762 = smov [#allocation23]
            %v763 = vld [vmem:[%s762] sm:$0xf]
            %764 = vrot.lane.b32.xlu0 %v763, 1
            %v765 = vpop.permute.xlu0 %764
            %v766 = vld [vmem:[%s761] sm:$0xf]
            %v767 = vld [vmem:[%s761] sm:$0xf]
            %768 = vrot.lane.b32.xlu0 %v767, 1
            %v769 = vpop.permute.xlu0 %768
            %v770 = vlaneseq
            %v771 = vand.u32 %v770, 127
            %vm772 = vcmp.eq.s32.totalorder %v771, 0
            %v773 = vsel %vm772, %v767, %v769
            %v774 = vlaneseq
            %v775 = vand.u32 %v774, 127
            %vm776 = vcmp.eq.s32.totalorder %v775, 1
            %v777 = vsel %vm776, %v765, %v773
            %v778 = vlaneseq
            %v779 = vand.u32 %v778, 127
            %vm780 = vcmp.ge.s32.totalorder %v779, 0
            %vm781 = vcmp.lt.s32.totalorder %v779, 4
            %vm782 = vmand %vm780, %vm781
            %v783 = vsel %vm782, %v777, 0.0
            %v784 = vld [vmem:[%s762] sm:$0xf]
            %785 = vrot.lane.b32.xlu0 %v784, 127
            %v786 = vpop.permute.xlu0 %785
            %v787 = vlaneseq
            %v788 = vand.u32 %v787, 127
            %vm789 = vcmp.eq.s32.totalorder %v788, 3
            %v790 = vsel %vm789, %v766, %v786
            %791 = vst [vmem:[%s761] sm:$0xf] %v783
            %792 = vst [vmem:[%s762] sm:$0xf] %v790
            %s793 = smov [#allocation20]
            %s794 = smov [#allocation22]
            %v795 = vld [vmem:[%s793] ss:$0 sm:$0xff]
            %s797 = scalar_lea.vmem %s793, 4294967295
            %v798 = vld [vmem:[%s797] sm:$0xe]
            %v799 = vlaneseq
            %v800 = vshrl.u32 %v799, 7
            %vm801 = vcmp.eq.s32.totalorder %v800, 0
            %v802 = vsel %vm801, %v795, %v798
            %s803 = scalar_lea.vmem %s793, 3
            %v804 = vld [vmem:[%s803] ss:$0 sm:$0xff]
            %805 = vst [vmem:[%s793] sm:$0xf] %v802
            %v806 = vld [vmem:[%s794] ss:$0 sm:$0xff]
            %s807 = scalar_lea.vmem %s793, 1
            %808 = vst [vmem:[%s807] sm:$0x1] %v806
            %s809 = scalar_lea.vmem %s794, 1
            %v810 = vld [vmem:[%s809] sm:$0x7]
            %v811 = vlaneseq
            %v812 = vshrl.u32 %v811, 7
            %vm813 = vcmp.eq.s32.totalorder %v812, 3
            %v814 = vsel %vm813, %v804, %v810
            %v815 = vld [vmem:[%s794] ss:$0 sm:$0xff]
            %816 = vst [vmem:[%s794] sm:$0xf] %v814
            %s817 = smov [#allocation21]
            %s818 = smov [#allocation23]
            %v819 = vld [vmem:[%s817] ss:$0 sm:$0xff]
            %s821 = scalar_lea.vmem %s817, 4294967295
            %v822 = vld [vmem:[%s821] sm:$0xe]
            %v823 = vlaneseq
            %v824 = vshrl.u32 %v823, 7
            %vm825 = vcmp.eq.s32.totalorder %v824, 0
            %v826 = vsel %vm825, %v819, %v822
            %s827 = scalar_lea.vmem %s817, 3
            %v828 = vld [vmem:[%s827] ss:$0 sm:$0xff]
            %829 = vst [vmem:[%s817] sm:$0xf] %v826
            %v830 = vld [vmem:[%s818] ss:$0 sm:$0xff]
            %s831 = scalar_lea.vmem %s817, 1
            %832 = vst [vmem:[%s831] sm:$0x1] %v830
            %s833 = scalar_lea.vmem %s818, 1
            %v834 = vld [vmem:[%s833] sm:$0x7]
            %v835 = vlaneseq
            %v836 = vshrl.u32 %v835, 7
            %vm837 = vcmp.eq.s32.totalorder %v836, 3
            %v838 = vsel %vm837, %v828, %v834
            %v839 = vld [vmem:[%s818] ss:$0 sm:$0xff]
            %840 = vst [vmem:[%s818] sm:$0xf] %v838
            %s841 = smov [#allocation31]
            %v842 = vld [vmem:[%s841] sm:$0xff]
            %s843 = smov [#allocation32]
            %v844 = vld [vmem:[%s843] sm:$0xff]
            %s845 = smov [#allocation12]
            %s846 = smov [#allocation14]
            %s847 = smov [#allocation16]
            %s848 = smov [#allocation18]
            %v849 = vld [vmem:[%s845] sm:$0xf]
            %v850 = vld [vmem:[%s846] sm:$0xf]
            %v851 = vld [vmem:[%s847] sm:$0xf]
            %v852 = vld [vmem:[%s848] sm:$0xf]
            %v853 = vmul.f32 %v842, %v849
            %v854 = vmul.f32 %v844, %v851
            %v855 = vsub.f32 %v853, %v854
            %v856 = vmul.f32 %v842, %v850
            %v857 = vmul.f32 %v844, %v852
            %v858 = vsub.f32 %v856, %v857
            %v859 = vmul.f32 %v844, %v849
            %v860 = vmul.f32 %v842, %v851
            %v861 = vadd.f32 %v859, %v860
            %v862 = vmul.f32 %v844, %v850
            %v863 = vmul.f32 %v842, %v852
            %v864 = vadd.f32 %v862, %v863
            %865 = vst [vmem:[%s845] sm:$0xf] %v855
            %866 = vst [vmem:[%s846] sm:$0xf] %v858
            %867 = vst [vmem:[%s847] sm:$0xf] %v861
            %868 = vst [vmem:[%s848] sm:$0xf] %v864
            %s869 = smov [#allocation12]
            %s870 = smov [#allocation16]
            %v871 = vld [vmem:[%s869] ss:$0 sm:$0xff]
            %s873 = scalar_lea.vmem %s869, 4294967295
            %v874 = vld [vmem:[%s873] sm:$0xe]
            %v875 = vlaneseq
            %v876 = vshrl.u32 %v875, 7
            %vm877 = vcmp.eq.s32.totalorder %v876, 0
            %v878 = vsel %vm877, %v871, %v874
            %s879 = scalar_lea.vmem %s869, 3
            %v880 = vld [vmem:[%s879] ss:$0 sm:$0xff]
            %881 = vst [vmem:[%s869] sm:$0xf] %v878
            %v882 = vld [vmem:[%s870] ss:$0 sm:$0xff]
            %s883 = scalar_lea.vmem %s869, 1
            %884 = vst [vmem:[%s883] sm:$0x1] %v882
            %s885 = scalar_lea.vmem %s870, 1
            %v886 = vld [vmem:[%s885] sm:$0x7]
            %v887 = vlaneseq
            %v888 = vshrl.u32 %v887, 7
            %vm889 = vcmp.eq.s32.totalorder %v888, 3
            %v890 = vsel %vm889, %v880, %v886
            %v891 = vld [vmem:[%s870] ss:$0 sm:$0xff]
            %892 = vst [vmem:[%s870] sm:$0xf] %v890
            %s893 = smov [#allocation14]
            %s894 = smov [#allocation18]
            %v895 = vld [vmem:[%s893] ss:$0 sm:$0xff]
            %s897 = scalar_lea.vmem %s893, 4294967295
            %v898 = vld [vmem:[%s897] sm:$0xe]
            %v899 = vlaneseq
            %v900 = vshrl.u32 %v899, 7
            %vm901 = vcmp.eq.s32.totalorder %v900, 0
            %v902 = vsel %vm901, %v895, %v898
            %s903 = scalar_lea.vmem %s893, 3
            %v904 = vld [vmem:[%s903] ss:$0 sm:$0xff]
            %905 = vst [vmem:[%s893] sm:$0xf] %v902
            %v906 = vld [vmem:[%s894] ss:$0 sm:$0xff]
            %s907 = scalar_lea.vmem %s893, 1
            %908 = vst [vmem:[%s907] sm:$0x1] %v906
            %s909 = scalar_lea.vmem %s894, 1
            %v910 = vld [vmem:[%s909] sm:$0x7]
            %v911 = vlaneseq
            %v912 = vshrl.u32 %v911, 7
            %vm913 = vcmp.eq.s32.totalorder %v912, 3
            %v914 = vsel %vm913, %v904, %v910
            %v915 = vld [vmem:[%s894] ss:$0 sm:$0xff]
            %916 = vst [vmem:[%s894] sm:$0xf] %v914
          $region152: #{custom-call.16} parent=144 // loop_footer
            %s477 = sadd.s32 1, %s473
          $region153: #{custom-call.16} parent=144 // loop_footer_branch
            %472 = sbr.rel target = $region149
          $region154: #{custom-call.16} parent=144 // loop_exit
            _
          %s917 = sadd.s32 %s375, 1
        $region145: #{custom-call.16} parent=139 // loop_footer
          _
        $region146: #{custom-call.16} parent=139 // loop_footer_branch
          %374 = sbr.rel target = $region142
        $region147: #{custom-call.16} parent=139 // loop_exit
          _
        %s920 = sand.u32 %s17, 7
        %s921 = scalar_lea.vmem [#allocation8], %s920
        %s922 = sand.u32 %s17, 7
        %s923 = scalar_lea.vmem [#allocation10], %s922
        %s924 = smov [#allocation20]
        %s925 = smov %s921
        %v926 = vlaneseq
        %v927 = vand.u32 %v926, 127
        %v928 = vmov %v927
        %v929 = vlaneseq
        %v930 = vshrl.u32 %v929, 7
        %v931 = vmov %v930
        %v932 = vld [vmem:[%s924] sm:$0xf]
        %vm935 = vcmp.eq.s32.totalorder %v931, %v928
        %v936 = vsel %vm935, %v932, 0.0
        %v937 = vrot.slane %v936, 4
        %v938 = vadd.f32 %v936, %v937
        %v939 = vrot.slane %v938, 2
        %v940 = vadd.f32 %v938, %v939
        %v941 = vrot.slane %v940, 1
        %v942 = vadd.f32 %v940, %v941
        %943 = vst [vmem:[%s925] sm:$0x1] %v942
        %s944 = smov [#allocation23]
        %s945 = smov %s923
        %v946 = vlaneseq
        %v947 = vand.u32 %v946, 127
        %v948 = vmov %v947
        %v949 = vlaneseq
        %v950 = vshrl.u32 %v949, 7
        %v951 = vmov %v950
        %v952 = vld [vmem:[%s944] sm:$0xf]
        %vm955 = vcmp.eq.s32.totalorder %v951, %v948
        %v956 = vsel %vm955, %v952, 0.0
        %v957 = vrot.slane %v956, 4
        %v958 = vadd.f32 %v956, %v957
        %v959 = vrot.slane %v958, 2
        %v960 = vadd.f32 %v958, %v959
        %v961 = vrot.slane %v960, 1
        %v962 = vadd.f32 %v960, %v961
        %963 = vst [vmem:[%s945] sm:$0x1] %v962
        %s965 = sshll.u32 1, 2
        %s966 = ssub.s32 %s965, 1
        %v968 = vld [vmem:[#allocation8] sm:%s966]
        %s969 = sshll.u32 1, 2
        %s970 = ssub.s32 %s969, 1
        %971 = vst [vmem:[%s287] sm:%s970] %v968
        %s973 = sshll.u32 1, 2
        %s974 = ssub.s32 %s973, 1
        %v976 = vld [vmem:[#allocation10] sm:%s974]
        %s977 = sshll.u32 1, 2
        %s978 = ssub.s32 %s977, 1
        %979 = vst [vmem:[%s293] sm:%s978] %v976
        %s981 = sshll.u32 1, 4
        %s982 = ssub.s32 %s981, 1
        %v984 = vld [vmem:[#allocation12] sm:%s982]
        %s985 = sshll.u32 1, 4
        %s986 = ssub.s32 %s985, 1
        %987 = vst [vmem:[%s297] sm:%s986] %v984
        %s989 = sshll.u32 1, 4
        %s990 = ssub.s32 %s989, 1
        %v992 = vld [vmem:[#allocation14] sm:%s990]
        %s993 = sshll.u32 1, 4
        %s994 = ssub.s32 %s993, 1
        %995 = vst [vmem:[%s301] sm:%s994] %v992
        %s997 = sshll.u32 1, 4
        %s998 = ssub.s32 %s997, 1
        %v1000 = vld [vmem:[#allocation16] sm:%s998]
        %s1001 = sshll.u32 1, 4
        %s1002 = ssub.s32 %s1001, 1
        %1003 = vst [vmem:[%s305] sm:%s1002] %v1000
        %s1005 = sshll.u32 1, 4
        %s1006 = ssub.s32 %s1005, 1
        %v1008 = vld [vmem:[#allocation18] sm:%s1006]
        %s1009 = sshll.u32 1, 4
        %s1010 = ssub.s32 %s1009, 1
        %1011 = vst [vmem:[%s309] sm:%s1010] %v1008
        %s1012 = sand.u32 %s27, 1
        %s1013 = sand.u32 %s27, 1
        %s1014 = smul.addr %s1013, 2
        %s1015 = scalar_lea.vmem [#allocation9], %s1014
        %s1016 = sand.u32 %s55, 1
        %s1017 = sand.u32 %s55, 1
        %s1018 = smul.addr %s1017, 2
        %s1019 = scalar_lea.vmem [#allocation11], %s1018
        %s1020 = sand.u32 %s17, 1
        %s1021 = sand.u32 %s17, 1
        %s1022 = smul.addr %s1021, 4
        %s1023 = scalar_lea.vmem [#allocation13], %s1022
        %s1024 = sand.u32 %s17, 1
        %s1025 = sand.u32 %s17, 1
        %s1026 = smul.addr %s1025, 4
        %s1027 = scalar_lea.vmem [#allocation15], %s1026
        %s1028 = sand.u32 %s17, 1
        %s1029 = sand.u32 %s17, 1
        %s1030 = smul.addr %s1029, 4
        %s1031 = scalar_lea.vmem [#allocation17], %s1030
        %s1032 = sand.u32 %s17, 1
        %s1033 = sand.u32 %s17, 1
        %s1034 = smul.addr %s1033, 4
        %s1035 = scalar_lea.vmem [#allocation19], %s1034
        // Predicated region
        $region155: #{custom-call.16} parent=139 // pred_check
          %p1036 = pneg %p37
        $region156: #{custom-call.16} parent=139 // pred_check_branch
          %1038 = sbr.rel (%p1036) target = $region158
        $region157: #{custom-call.16} parent=139 // pred_region
          %s1039 = sshrl.u32 %s17, 3
          %s1040 = smul.addr %s1039, 2
          %s1041 = scalar_lea.vmem %s4, %s1040
          // Predicated region
          $region159: #{custom-call.16} parent=157 // pred_check
            _
          $region160: #{custom-call.16} parent=157 // pred_check_branch
            %1043 = sbr.rel (0) target = $region162
          $region161: #{custom-call.16} parent=157 // pred_region
            // Predicated region
            $region163: #{custom-call.16} parent=161 // pred_check
              _
            $region164: #{custom-call.16} parent=161 // pred_check_branch
              %1045 = sbr.rel target = $region166
            $region165: #{custom-call.16} parent=161 // pred_region
              // Predicated region
              $region178: #{custom-call.16} parent=165 // pred_check
                _
              $region179: #{custom-call.16} parent=165 // pred_check_branch
                %1061 = sbr.rel (0) target = $region181
              $region180: #{custom-call.16} parent=165 // pred_region
                %s1063 = ssub.s32 4, 1
                loop: start=0, step=1, limit=1
                $region182: #{custom-call.16} parent=180 // loop_pre_header
                  _
                $region183: #{custom-call.16} parent=180 // loop_header
                  %s1065 = sphi 0, %s1069
                  %p1066 = scmp.ge.s32.totalorder %s1065, 1
                  %s1070 = sphi %s1015, %s1015
                  %s1071 = sphi %s1041, %s1041
                $region184: #{custom-call.16} parent=180 // loop_header_branch
                  %1068 = sbr.rel (%p1066) target = $region188
                $region185: #{custom-call.16} parent=180 // loop_body
                  %v1072 = vld [vmem:[%s1070] sm:%s1063]
                  %1073 = vst [vmem:[%s1071] sm:%s1063] %v1072
                $region186: #{custom-call.16} parent=180 // loop_footer
                  %s1069 = sadd.s32 1, %s1065
                $region187: #{custom-call.16} parent=180 // loop_footer_branch
                  %1064 = sbr.rel target = $region183
                $region188: #{custom-call.16} parent=180 // loop_exit
                  _
              $region181: #{custom-call.16} parent=165 // pred_fallthru
                _
            $region166: #{custom-call.16} parent=161 // pred_fallthru
              _
            // Predicated region
            $region167: #{custom-call.16} parent=161 // pred_check
              _
            $region168: #{custom-call.16} parent=161 // pred_check_branch
              %1047 = sbr.rel (0) target = $region170
            $region169: #{custom-call.16} parent=161 // pred_region
              %s1049 = ssub.s32 4, 1
              loop: start=0, step=1, limit=1
              $region171: #{custom-call.16} parent=169 // loop_pre_header
                _
              $region172: #{custom-call.16} parent=169 // loop_header
                %s1051 = sphi 0, %s1055
                %p1052 = scmp.ge.s32.totalorder %s1051, 1
                %s1056 = sphi %s1015, %s1015
                %s1057 = sphi %s1041, %s1041
              $region173: #{custom-call.16} parent=169 // loop_header_branch
                %1054 = sbr.rel (%p1052) target = $region177
              $region174: #{custom-call.16} parent=169 // loop_body
                %v1058 = vld [vmem:[%s1056] sm:%s1049]
                %1059 = vst [vmem:[%s1057] sm:%s1049] %v1058
              $region175: #{custom-call.16} parent=169 // loop_footer
                %s1055 = sadd.s32 1, %s1051
              $region176: #{custom-call.16} parent=169 // loop_footer_branch
                %1050 = sbr.rel target = $region172
              $region177: #{custom-call.16} parent=169 // loop_exit
                _
            $region170: #{custom-call.16} parent=161 // pred_fallthru
              _
          $region162: #{custom-call.16} parent=157 // pred_fallthru
            _
          %1074 = vnop
        $region158: #{custom-call.16} parent=139 // pred_fallthru
          _
        // Predicated region
        $region189: #{custom-call.16} parent=139 // pred_check
          %p1075 = pneg %p65
        $region190: #{custom-call.16} parent=139 // pred_check_branch
          %1077 = sbr.rel (%p1075) target = $region192
        $region191: #{custom-call.16} parent=139 // pred_region
          %s1078 = sshrl.u32 %s17, 3
          %s1079 = smul.addr %s1078, 2
          %s1080 = scalar_lea.vmem %s5, %s1079
          // Predicated region
          $region193: #{custom-call.16} parent=191 // pred_check
            _
          $region194: #{custom-call.16} parent=191 // pred_check_branch
            %1082 = sbr.rel (0) target = $region196
          $region195: #{custom-call.16} parent=191 // pred_region
            // Predicated region
            $region197: #{custom-call.16} parent=195 // pred_check
              _
            $region198: #{custom-call.16} parent=195 // pred_check_branch
              %1084 = sbr.rel target = $region200
            $region199: #{custom-call.16} parent=195 // pred_region
              // Predicated region
              $region212: #{custom-call.16} parent=199 // pred_check
                _
              $region213: #{custom-call.16} parent=199 // pred_check_branch
                %1100 = sbr.rel (0) target = $region215
              $region214: #{custom-call.16} parent=199 // pred_region
                %s1102 = ssub.s32 4, 1
                loop: start=0, step=1, limit=1
                $region216: #{custom-call.16} parent=214 // loop_pre_header
                  _
                $region217: #{custom-call.16} parent=214 // loop_header
                  %s1104 = sphi 0, %s1108
                  %p1105 = scmp.ge.s32.totalorder %s1104, 1
                  %s1109 = sphi %s1019, %s1019
                  %s1110 = sphi %s1080, %s1080
                $region218: #{custom-call.16} parent=214 // loop_header_branch
                  %1107 = sbr.rel (%p1105) target = $region222
                $region219: #{custom-call.16} parent=214 // loop_body
                  %v1111 = vld [vmem:[%s1109] sm:%s1102]
                  %1112 = vst [vmem:[%s1110] sm:%s1102] %v1111
                $region220: #{custom-call.16} parent=214 // loop_footer
                  %s1108 = sadd.s32 1, %s1104
                $region221: #{custom-call.16} parent=214 // loop_footer_branch
                  %1103 = sbr.rel target = $region217
                $region222: #{custom-call.16} parent=214 // loop_exit
                  _
              $region215: #{custom-call.16} parent=199 // pred_fallthru
                _
            $region200: #{custom-call.16} parent=195 // pred_fallthru
              _
            // Predicated region
            $region201: #{custom-call.16} parent=195 // pred_check
              _
            $region202: #{custom-call.16} parent=195 // pred_check_branch
              %1086 = sbr.rel (0) target = $region204
            $region203: #{custom-call.16} parent=195 // pred_region
              %s1088 = ssub.s32 4, 1
              loop: start=0, step=1, limit=1
              $region205: #{custom-call.16} parent=203 // loop_pre_header
                _
              $region206: #{custom-call.16} parent=203 // loop_header
                %s1090 = sphi 0, %s1094
                %p1091 = scmp.ge.s32.totalorder %s1090, 1
                %s1095 = sphi %s1019, %s1019
                %s1096 = sphi %s1080, %s1080
              $region207: #{custom-call.16} parent=203 // loop_header_branch
                %1093 = sbr.rel (%p1091) target = $region211
              $region208: #{custom-call.16} parent=203 // loop_body
                %v1097 = vld [vmem:[%s1095] sm:%s1088]
                %1098 = vst [vmem:[%s1096] sm:%s1088] %v1097
              $region209: #{custom-call.16} parent=203 // loop_footer
                %s1094 = sadd.s32 1, %s1090
              $region210: #{custom-call.16} parent=203 // loop_footer_branch
                %1089 = sbr.rel target = $region206
              $region211: #{custom-call.16} parent=203 // loop_exit
                _
            $region204: #{custom-call.16} parent=195 // pred_fallthru
              _
          $region196: #{custom-call.16} parent=191 // pred_fallthru
            _
          %1113 = vnop
        $region192: #{custom-call.16} parent=139 // pred_fallthru
          _
        %s1114 = smul.addr %s17, 4
        %s1115 = scalar_lea.vmem %s6, %s1114
        // Predicated region
        $region223: #{custom-call.16} parent=139 // pred_check
          _
        $region224: #{custom-call.16} parent=139 // pred_check_branch
          %1117 = sbr.rel (0) target = $region226
        $region225: #{custom-call.16} parent=139 // pred_region
          // Predicated region
          $region227: #{custom-call.16} parent=225 // pred_check
            _
          $region228: #{custom-call.16} parent=225 // pred_check_branch
            %1119 = sbr.rel target = $region230
          $region229: #{custom-call.16} parent=225 // pred_region
            // Predicated region
            $region242: #{custom-call.16} parent=229 // pred_check
              _
            $region243: #{custom-call.16} parent=229 // pred_check_branch
              %1135 = sbr.rel (0) target = $region245
            $region244: #{custom-call.16} parent=229 // pred_region
              %s1137 = ssub.s32 16, 1
              loop: start=0, step=1, limit=1
              $region246: #{custom-call.16} parent=244 // loop_pre_header
                _
              $region247: #{custom-call.16} parent=244 // loop_header
                %s1139 = sphi 0, %s1143
                %p1140 = scmp.ge.s32.totalorder %s1139, 1
                %s1144 = sphi %s1023, %s1023
                %s1145 = sphi %s1115, %s1115
              $region248: #{custom-call.16} parent=244 // loop_header_branch
                %1142 = sbr.rel (%p1140) target = $region252
              $region249: #{custom-call.16} parent=244 // loop_body
                %v1146 = vld [vmem:[%s1144] sm:%s1137]
                %1147 = vst [vmem:[%s1145] sm:%s1137] %v1146
              $region250: #{custom-call.16} parent=244 // loop_footer
                %s1143 = sadd.s32 1, %s1139
              $region251: #{custom-call.16} parent=244 // loop_footer_branch
                %1138 = sbr.rel target = $region247
              $region252: #{custom-call.16} parent=244 // loop_exit
                _
            $region245: #{custom-call.16} parent=229 // pred_fallthru
              _
          $region230: #{custom-call.16} parent=225 // pred_fallthru
            _
          // Predicated region
          $region231: #{custom-call.16} parent=225 // pred_check
            _
          $region232: #{custom-call.16} parent=225 // pred_check_branch
            %1121 = sbr.rel (0) target = $region234
          $region233: #{custom-call.16} parent=225 // pred_region
            %s1123 = ssub.s32 16, 1
            loop: start=0, step=1, limit=1
            $region235: #{custom-call.16} parent=233 // loop_pre_header
              _
            $region236: #{custom-call.16} parent=233 // loop_header
              %s1125 = sphi 0, %s1129
              %p1126 = scmp.ge.s32.totalorder %s1125, 1
              %s1130 = sphi %s1023, %s1023
              %s1131 = sphi %s1115, %s1115
            $region237: #{custom-call.16} parent=233 // loop_header_branch
              %1128 = sbr.rel (%p1126) target = $region241
            $region238: #{custom-call.16} parent=233 // loop_body
              %v1132 = vld [vmem:[%s1130] sm:%s1123]
              %1133 = vst [vmem:[%s1131] sm:%s1123] %v1132
            $region239: #{custom-call.16} parent=233 // loop_footer
              %s1129 = sadd.s32 1, %s1125
            $region240: #{custom-call.16} parent=233 // loop_footer_branch
              %1124 = sbr.rel target = $region236
            $region241: #{custom-call.16} parent=233 // loop_exit
              _
          $region234: #{custom-call.16} parent=225 // pred_fallthru
            _
        $region226: #{custom-call.16} parent=139 // pred_fallthru
          _
        %1148 = vnop
        %s1149 = smul.addr %s17, 4
        %s1150 = scalar_lea.vmem %s7, %s1149
        // Predicated region
        $region253: #{custom-call.16} parent=139 // pred_check
          _
        $region254: #{custom-call.16} parent=139 // pred_check_branch
          %1152 = sbr.rel (0) target = $region256
        $region255: #{custom-call.16} parent=139 // pred_region
          // Predicated region
          $region257: #{custom-call.16} parent=255 // pred_check
            _
          $region258: #{custom-call.16} parent=255 // pred_check_branch
            %1154 = sbr.rel target = $region260
          $region259: #{custom-call.16} parent=255 // pred_region
            // Predicated region
            $region272: #{custom-call.16} parent=259 // pred_check
              _
            $region273: #{custom-call.16} parent=259 // pred_check_branch
              %1170 = sbr.rel (0) target = $region275
            $region274: #{custom-call.16} parent=259 // pred_region
              %s1172 = ssub.s32 16, 1
              loop: start=0, step=1, limit=1
              $region276: #{custom-call.16} parent=274 // loop_pre_header
                _
              $region277: #{custom-call.16} parent=274 // loop_header
                %s1174 = sphi 0, %s1178
                %p1175 = scmp.ge.s32.totalorder %s1174, 1
                %s1179 = sphi %s1027, %s1027
                %s1180 = sphi %s1150, %s1150
              $region278: #{custom-call.16} parent=274 // loop_header_branch
                %1177 = sbr.rel (%p1175) target = $region282
              $region279: #{custom-call.16} parent=274 // loop_body
                %v1181 = vld [vmem:[%s1179] sm:%s1172]
                %1182 = vst [vmem:[%s1180] sm:%s1172] %v1181
              $region280: #{custom-call.16} parent=274 // loop_footer
                %s1178 = sadd.s32 1, %s1174
              $region281: #{custom-call.16} parent=274 // loop_footer_branch
                %1173 = sbr.rel target = $region277
              $region282: #{custom-call.16} parent=274 // loop_exit
                _
            $region275: #{custom-call.16} parent=259 // pred_fallthru
              _
          $region260: #{custom-call.16} parent=255 // pred_fallthru
            _
          // Predicated region
          $region261: #{custom-call.16} parent=255 // pred_check
            _
          $region262: #{custom-call.16} parent=255 // pred_check_branch
            %1156 = sbr.rel (0) target = $region264
          $region263: #{custom-call.16} parent=255 // pred_region
            %s1158 = ssub.s32 16, 1
            loop: start=0, step=1, limit=1
            $region265: #{custom-call.16} parent=263 // loop_pre_header
              _
            $region266: #{custom-call.16} parent=263 // loop_header
              %s1160 = sphi 0, %s1164
              %p1161 = scmp.ge.s32.totalorder %s1160, 1
              %s1165 = sphi %s1027, %s1027
              %s1166 = sphi %s1150, %s1150
            $region267: #{custom-call.16} parent=263 // loop_header_branch
              %1163 = sbr.rel (%p1161) target = $region271
            $region268: #{custom-call.16} parent=263 // loop_body
              %v1167 = vld [vmem:[%s1165] sm:%s1158]
              %1168 = vst [vmem:[%s1166] sm:%s1158] %v1167
            $region269: #{custom-call.16} parent=263 // loop_footer
              %s1164 = sadd.s32 1, %s1160
            $region270: #{custom-call.16} parent=263 // loop_footer_branch
              %1159 = sbr.rel target = $region266
            $region271: #{custom-call.16} parent=263 // loop_exit
              _
          $region264: #{custom-call.16} parent=255 // pred_fallthru
            _
        $region256: #{custom-call.16} parent=139 // pred_fallthru
          _
        %1183 = vnop
        %s1184 = smul.addr %s17, 4
        %s1185 = scalar_lea.vmem %s8, %s1184
        // Predicated region
        $region283: #{custom-call.16} parent=139 // pred_check
          _
        $region284: #{custom-call.16} parent=139 // pred_check_branch
          %1187 = sbr.rel (0) target = $region286
        $region285: #{custom-call.16} parent=139 // pred_region
          // Predicated region
          $region287: #{custom-call.16} parent=285 // pred_check
            _
          $region288: #{custom-call.16} parent=285 // pred_check_branch
            %1189 = sbr.rel target = $region290
          $region289: #{custom-call.16} parent=285 // pred_region
            // Predicated region
            $region302: #{custom-call.16} parent=289 // pred_check
              _
            $region303: #{custom-call.16} parent=289 // pred_check_branch
              %1205 = sbr.rel (0) target = $region305
            $region304: #{custom-call.16} parent=289 // pred_region
              %s1207 = ssub.s32 16, 1
              loop: start=0, step=1, limit=1
              $region306: #{custom-call.16} parent=304 // loop_pre_header
                _
              $region307: #{custom-call.16} parent=304 // loop_header
                %s1209 = sphi 0, %s1213
                %p1210 = scmp.ge.s32.totalorder %s1209, 1
                %s1214 = sphi %s1031, %s1031
                %s1215 = sphi %s1185, %s1185
              $region308: #{custom-call.16} parent=304 // loop_header_branch
                %1212 = sbr.rel (%p1210) target = $region312
              $region309: #{custom-call.16} parent=304 // loop_body
                %v1216 = vld [vmem:[%s1214] sm:%s1207]
                %1217 = vst [vmem:[%s1215] sm:%s1207] %v1216
              $region310: #{custom-call.16} parent=304 // loop_footer
                %s1213 = sadd.s32 1, %s1209
              $region311: #{custom-call.16} parent=304 // loop_footer_branch
                %1208 = sbr.rel target = $region307
              $region312: #{custom-call.16} parent=304 // loop_exit
                _
            $region305: #{custom-call.16} parent=289 // pred_fallthru
              _
          $region290: #{custom-call.16} parent=285 // pred_fallthru
            _
          // Predicated region
          $region291: #{custom-call.16} parent=285 // pred_check
            _
          $region292: #{custom-call.16} parent=285 // pred_check_branch
            %1191 = sbr.rel (0) target = $region294
          $region293: #{custom-call.16} parent=285 // pred_region
            %s1193 = ssub.s32 16, 1
            loop: start=0, step=1, limit=1
            $region295: #{custom-call.16} parent=293 // loop_pre_header
              _
            $region296: #{custom-call.16} parent=293 // loop_header
              %s1195 = sphi 0, %s1199
              %p1196 = scmp.ge.s32.totalorder %s1195, 1
              %s1200 = sphi %s1031, %s1031
              %s1201 = sphi %s1185, %s1185
            $region297: #{custom-call.16} parent=293 // loop_header_branch
              %1198 = sbr.rel (%p1196) target = $region301
            $region298: #{custom-call.16} parent=293 // loop_body
              %v1202 = vld [vmem:[%s1200] sm:%s1193]
              %1203 = vst [vmem:[%s1201] sm:%s1193] %v1202
            $region299: #{custom-call.16} parent=293 // loop_footer
              %s1199 = sadd.s32 1, %s1195
            $region300: #{custom-call.16} parent=293 // loop_footer_branch
              %1194 = sbr.rel target = $region296
            $region301: #{custom-call.16} parent=293 // loop_exit
              _
          $region294: #{custom-call.16} parent=285 // pred_fallthru
            _
        $region286: #{custom-call.16} parent=139 // pred_fallthru
          _
        %1218 = vnop
        %s1219 = smul.addr %s17, 4
        %s1220 = scalar_lea.vmem %s9, %s1219
        // Predicated region
        $region313: #{custom-call.16} parent=139 // pred_check
          _
        $region314: #{custom-call.16} parent=139 // pred_check_branch
          %1222 = sbr.rel (0) target = $region316
        $region315: #{custom-call.16} parent=139 // pred_region
          // Predicated region
          $region317: #{custom-call.16} parent=315 // pred_check
            _
          $region318: #{custom-call.16} parent=315 // pred_check_branch
            %1224 = sbr.rel target = $region320
          $region319: #{custom-call.16} parent=315 // pred_region
            // Predicated region
            $region332: #{custom-call.16} parent=319 // pred_check
              _
            $region333: #{custom-call.16} parent=319 // pred_check_branch
              %1240 = sbr.rel (0) target = $region335
            $region334: #{custom-call.16} parent=319 // pred_region
              %s1242 = ssub.s32 16, 1
              loop: start=0, step=1, limit=1
              $region336: #{custom-call.16} parent=334 // loop_pre_header
                _
              $region337: #{custom-call.16} parent=334 // loop_header
                %s1244 = sphi 0, %s1248
                %p1245 = scmp.ge.s32.totalorder %s1244, 1
                %s1249 = sphi %s1035, %s1035
                %s1250 = sphi %s1220, %s1220
              $region338: #{custom-call.16} parent=334 // loop_header_branch
                %1247 = sbr.rel (%p1245) target = $region342
              $region339: #{custom-call.16} parent=334 // loop_body
                %v1251 = vld [vmem:[%s1249] sm:%s1242]
                %1252 = vst [vmem:[%s1250] sm:%s1242] %v1251
              $region340: #{custom-call.16} parent=334 // loop_footer
                %s1248 = sadd.s32 1, %s1244
              $region341: #{custom-call.16} parent=334 // loop_footer_branch
                %1243 = sbr.rel target = $region337
              $region342: #{custom-call.16} parent=334 // loop_exit
                _
            $region335: #{custom-call.16} parent=319 // pred_fallthru
              _
          $region320: #{custom-call.16} parent=315 // pred_fallthru
            _
          // Predicated region
          $region321: #{custom-call.16} parent=315 // pred_check
            _
          $region322: #{custom-call.16} parent=315 // pred_check_branch
            %1226 = sbr.rel (0) target = $region324
          $region323: #{custom-call.16} parent=315 // pred_region
            %s1228 = ssub.s32 16, 1
            loop: start=0, step=1, limit=1
            $region325: #{custom-call.16} parent=323 // loop_pre_header
              _
            $region326: #{custom-call.16} parent=323 // loop_header
              %s1230 = sphi 0, %s1234
              %p1231 = scmp.ge.s32.totalorder %s1230, 1
              %s1235 = sphi %s1035, %s1035
              %s1236 = sphi %s1220, %s1220
            $region327: #{custom-call.16} parent=323 // loop_header_branch
              %1233 = sbr.rel (%p1231) target = $region331
            $region328: #{custom-call.16} parent=323 // loop_body
              %v1237 = vld [vmem:[%s1235] sm:%s1228]
              %1238 = vst [vmem:[%s1236] sm:%s1228] %v1237
            $region329: #{custom-call.16} parent=323 // loop_footer
              %s1234 = sadd.s32 1, %s1230
            $region330: #{custom-call.16} parent=323 // loop_footer_branch
              %1229 = sbr.rel target = $region326
            $region331: #{custom-call.16} parent=323 // loop_exit
              _
          $region324: #{custom-call.16} parent=315 // pred_fallthru
            _
        $region316: #{custom-call.16} parent=139 // pred_fallthru
          _
        %1253 = vnop
      $region140: #{custom-call.16} parent=5 // pred_fallthru
        _
      %p1254 = scmp.le.s32.totalorder 2, %s12
      // Predicated region
      $region343: #{custom-call.16} parent=5 // pred_check
        %p1255 = pneg %p1254
      $region344: #{custom-call.16} parent=5 // pred_check_branch
        %1257 = sbr.rel (%p1255) target = $region346
      $region345: #{custom-call.16} parent=5 // pred_region
        %s1258 = ssub.s32 %s12, 2
        // Predicated region
        $region347: #{custom-call.16} parent=345 // pred_check
          %p1259 = pneg %p43
        $region348: #{custom-call.16} parent=345 // pred_check_branch
          %1261 = sbr.rel (%p1259) target = $region350
        $region349: #{custom-call.16} parent=345 // pred_region
          %s1262 = sand.u32 %s28, 1
          %s1263 = sand.u32 %s28, 1
          %s1264 = smul.addr %s1263, 2
          %s1265 = scalar_lea.vmem [#allocation9], %s1264
        $region350: #{custom-call.16} parent=345 // pred_fallthru
          _
        // Predicated region
        $region351: #{custom-call.16} parent=345 // pred_check
          %p1266 = pneg %p71
        $region352: #{custom-call.16} parent=345 // pred_check_branch
          %1268 = sbr.rel (%p1266) target = $region354
        $region353: #{custom-call.16} parent=345 // pred_region
          %s1269 = sand.u32 %s56, 1
          %s1270 = sand.u32 %s56, 1
          %s1271 = smul.addr %s1270, 2
          %s1272 = scalar_lea.vmem [#allocation11], %s1271
        $region354: #{custom-call.16} parent=345 // pred_fallthru
          _
        %s1273 = sand.u32 %s18, 1
        %s1274 = sand.u32 %s18, 1
        %s1275 = smul.addr %s1274, 4
        %s1276 = scalar_lea.vmem [#allocation13], %s1275
        %s1277 = sand.u32 %s18, 1
        %s1278 = sand.u32 %s18, 1
        %s1279 = smul.addr %s1278, 4
        %s1280 = scalar_lea.vmem [#allocation15], %s1279
        %s1281 = sand.u32 %s18, 1
        %s1282 = sand.u32 %s18, 1
        %s1283 = smul.addr %s1282, 4
        %s1284 = scalar_lea.vmem [#allocation17], %s1283
        %s1285 = sand.u32 %s18, 1
        %s1286 = sand.u32 %s18, 1
        %s1287 = smul.addr %s1286, 4
        %s1288 = scalar_lea.vmem [#allocation19], %s1287
      $region346: #{custom-call.16} parent=5 // pred_fallthru
        _
    $region6: #{custom-call.16} parent=1 // loop_footer
      %s16 = sadd.s32 1, %s12
    $region7: #{custom-call.16} parent=1 // loop_footer_branch
      %11 = sbr.rel target = $region3
    $region8: #{custom-call.16} parent=1 // loop_exit
      _

// kernel: custom-call.10
$region0: #{custom-call.10}
  %s0 = inlined_call_operand.vmem [shape: f32[2,8,8], index: 0, kind: input, shape index: {}]
  %s1 = inlined_call_operand.vmem [shape: f32[2,8,8], index: 1, kind: output, shape index: {0}]
  %s2 = inlined_call_operand.vmem [shape: f32[2,8], index: 2, kind: output, shape index: {1}]
  %3 = xla_tuple %s1, %s2
  $region1: #{custom-call.10} parent=0
    #allocation0 [shape = 'u8[8192]{0}', space=vmem, size = 0x2000, scoped, tag = 'operand span for operand 0']
    #allocation1 [shape = 'u8[8192]{0}', space=vmem, size = 0x2000, scoped, tag = 'operand span for operand 1']
    #allocation2 [shape = 'u8[4096]{0}', space=vmem, size = 0x1000, scoped, tag = 'operand span for operand 2']
    #allocation3 [shape = 'u8[2048]{0}', space=vmem, size = 0x800, scoped, tag = 'packed  for operand 2']
    loop: start=0, step=1, limit=4
    $region2: #{custom-call.10} parent=1 // loop_pre_header
      _
    $region3: #{custom-call.10} parent=1 // loop_header
      %s5 = sphi 0, %s9
      %p6 = scmp.ge.s32.totalorder %s5, 4
      %s12 = sphi 0, %s31
      %s13 = sphi 0, %s27
      %s14 = sphi 0, %s23
      %s15 = sphi 0, %s12
      %s16 = sphi 0, %s13
      %s17 = sphi 0, %s14
      %s18 = sphi 0, %s15
      %s19 = sphi 0, %s16
      %s20 = sphi 0, %s17
      %s46 = sphi 0, %s48
      %s49 = sphi 0, %s46
      %s50 = sphi 0, %s49
      %s66 = sphi 0, %s50
    $region4: #{custom-call.10} parent=1 // loop_header_branch
      %8 = sbr.rel (%p6) target = $region8
    $region5: #{custom-call.10} parent=1 // loop_body
      %s10 = ssub.s32 %s5, 1
      %s11 = ssub.s32 %s5, 2
      %s21 = sadd.s32 1, %s14
      %p22 = scmp.ge.s32.totalorder %s21, 1
      %s23 = scalar_select %p22, 0, %s21
      %s24 = sadd.s32 1, %s13
      %s25 = scalar_select %p22, %s24, %s13
      %p26 = scmp.ge.s32.totalorder %s25, 1
      %s27 = scalar_select %p26, 0, %s25
      %s28 = sadd.s32 1, %s12
      %s29 = scalar_select %p26, %s28, %s12
      %p30 = scmp.ge.s32.totalorder %s29, 2
      %s31 = scalar_select %p30, 0, %s29
      %p32 = scmp.lt.s32.totalorder %s12, 0
      %s33 = ssub.s32 0, %s12
      %s34 = scalar_select %p32, %s33, %s12
      %s35 = sshrl.u32 %s34, 3
      %s36 = ssub.s32 0, %s35
      %s37 = scalar_select %p32, %s36, %s35
      %p38 = scmp.lt.s32.totalorder %s31, 0
      %s39 = ssub.s32 0, %s31
      %s40 = scalar_select %p38, %s39, %s31
      %s41 = sshrl.u32 %s40, 3
      %s42 = ssub.s32 0, %s41
      %s43 = scalar_select %p38, %s42, %s41
      %s44 = ssub.s32 %s37, %s43
      %p45 = scmp.eq.s32.totalorder %s44, 0
      %s47 = sadd.s32 %s46, 1
      %s48 = scalar_select %p45, %s46, %s47
      %p51 = pneg %p45
      %p52 = scmp.eq.s32.totalorder %s5, 1
      %p53 = por %p51, %p52
      %p54 = scmp.ne.s32.totalorder %s46, %s49
      %p55 = scmp.eq.s32.totalorder %s5, 0
      %p56 = por %p54, %p55
      %p57 = scmp.ne.s32.totalorder %s46, %s49
      %p58 = scmp.eq.s32.totalorder %s10, 1
      %p59 = por %p57, %p58
      %p60 = scmp.ne.s32.totalorder %s49, %s50
      %p61 = scmp.eq.s32.totalorder %s10, 0
      %p62 = por %p60, %p61
      %p63 = scmp.ne.s32.totalorder %s49, %s50
      %p64 = scmp.eq.s32.totalorder %s11, 1
      %p65 = por %p63, %p64
      %p67 = scmp.ne.s32.totalorder %s50, %s66
      %p68 = scmp.eq.s32.totalorder %s11, 0
      %p69 = por %p67, %p68
      %p70 = scmp.le.s32.totalorder 1, %s5
      %p71 = scmp.lt.s32.totalorder %s5, 3
      %p72 = pnand %p70, %p71
      %p73 = pneg %p72
      // Predicated region
      $region9: #{custom-call.10} parent=5 // pred_check
        _
      $region10: #{custom-call.10} parent=5 // pred_check_branch
        %75 = sbr.rel (%p72) target = $region12
      $region11: #{custom-call.10} parent=5 // pred_region
        %s76 = ssub.s32 %s5, 1
      $region12: #{custom-call.10} parent=5 // pred_fallthru
        _
      %p77 = scmp.lt.s32.totalorder %s5, 2
      // Predicated region
      $region13: #{custom-call.10} parent=5 // pred_check
        %p78 = pneg %p77
      $region14: #{custom-call.10} parent=5 // pred_check_branch
        %80 = sbr.rel (%p78) target = $region16
      $region15: #{custom-call.10} parent=5 // pred_region
        %s81 = sand.u32 %s5, 1
        %s82 = sand.u32 %s5, 1
        %s83 = smul.addr %s82, 8
        %s84 = scalar_lea.vmem [#allocation0], %s83
        %s85 = sadd.s32 %s14, %s13
        %s86 = sadd.s32 %s85, %s12
        %s87 = smul.addr %s86, 8
        %s88 = scalar_lea.vmem %s0, %s87
        // Predicated region
        $region17: #{custom-call.10} parent=15 // pred_check
          _
        $region18: #{custom-call.10} parent=15 // pred_check_branch
          %90 = sbr.rel (0) target = $region20
        $region19: #{custom-call.10} parent=15 // pred_region
          // Predicated region
          $region21: #{custom-call.10} parent=19 // pred_check
            _
          $region22: #{custom-call.10} parent=19 // pred_check_branch
            %92 = sbr.rel (0) target = $region24
          $region23: #{custom-call.10} parent=19 // pred_region
            // Predicated region
            $region36: #{custom-call.10} parent=23 // pred_check
              _
            $region37: #{custom-call.10} parent=23 // pred_check_branch
              %108 = sbr.rel (0) target = $region39
            $region38: #{custom-call.10} parent=23 // pred_region
              loop: start=0, step=1, limit=1
              $region40: #{custom-call.10} parent=38 // loop_pre_header
                _
              $region41: #{custom-call.10} parent=38 // loop_header
                %s110 = sphi 0, %s114
                %p111 = scmp.ge.s32.totalorder %s110, 1
                %s115 = sphi %s88, %s88
                %s116 = sphi %s84, %s84
              $region42: #{custom-call.10} parent=38 // loop_header_branch
                %113 = sbr.rel (%p111) target = $region46
              $region43: #{custom-call.10} parent=38 // loop_body
                %v117 = vld [vmem:[%s115] sm:$0xff]
                %118 = vst [vmem:[%s116] sm:$0xff] %v117
              $region44: #{custom-call.10} parent=38 // loop_footer
                %s114 = sadd.s32 1, %s110
              $region45: #{custom-call.10} parent=38 // loop_footer_branch
                %109 = sbr.rel target = $region41
              $region46: #{custom-call.10} parent=38 // loop_exit
                _
            $region39: #{custom-call.10} parent=23 // pred_fallthru
              _
            // Predicated region
            $region47: #{custom-call.10} parent=23 // pred_check
              _
            $region48: #{custom-call.10} parent=23 // pred_check_branch
              %120 = sbr.rel target = $region50
            $region49: #{custom-call.10} parent=23 // pred_region
              _
            $region50: #{custom-call.10} parent=23 // pred_fallthru
              _
          $region24: #{custom-call.10} parent=19 // pred_fallthru
            _
          // Predicated region
          $region25: #{custom-call.10} parent=19 // pred_check
            _
          $region26: #{custom-call.10} parent=19 // pred_check_branch
            %94 = sbr.rel target = $region28
          $region27: #{custom-call.10} parent=19 // pred_region
            %s96 = ssub.s32 256, 1
            loop: start=0, step=1, limit=1
            $region29: #{custom-call.10} parent=27 // loop_pre_header
              _
            $region30: #{custom-call.10} parent=27 // loop_header
              %s98 = sphi 0, %s102
              %p99 = scmp.ge.s32.totalorder %s98, 1
              %s103 = sphi %s88, %s88
              %s104 = sphi %s84, %s84
            $region31: #{custom-call.10} parent=27 // loop_header_branch
              %101 = sbr.rel (%p99) target = $region35
            $region32: #{custom-call.10} parent=27 // loop_body
              %v105 = vld [vmem:[%s103] sm:%s96]
              %106 = vst [vmem:[%s104] sm:%s96] %v105
            $region33: #{custom-call.10} parent=27 // loop_footer
              %s102 = sadd.s32 1, %s98
            $region34: #{custom-call.10} parent=27 // loop_footer_branch
              %97 = sbr.rel target = $region30
            $region35: #{custom-call.10} parent=27 // loop_exit
              _
          $region28: #{custom-call.10} parent=19 // pred_fallthru
            _
        $region20: #{custom-call.10} parent=15 // pred_fallthru
          _
        %121 = vnop
      $region16: #{custom-call.10} parent=5 // pred_fallthru
        _
      %p122 = scmp.le.s32.totalorder 1, %s5
      %p123 = scmp.lt.s32.totalorder %s5, 3
      %p124 = pnand %p122, %p123
      %p125 = pneg %p124
      // Predicated region
      $region51: #{custom-call.10} parent=5 // pred_check
        _
      $region52: #{custom-call.10} parent=5 // pred_check_branch
        %127 = sbr.rel (%p124) target = $region54
      $region53: #{custom-call.10} parent=5 // pred_region
        #allocation4 [shape = 'f32[8,128]{1,0}', space=vmem, size = 0x1000, scoped, tag = 'scratch for Householder reflectors']
        %s128 = ssub.s32 %s5, 1
        %s129 = sand.u32 %s10, 1
        %s130 = sand.u32 %s10, 1
        %s131 = smul.addr %s130, 8
        %s132 = scalar_lea.vmem [#allocation0], %s131
        %s133 = sand.u32 %s10, 1
        %s134 = sand.u32 %s10, 1
        %s135 = smul.addr %s134, 8
        %s136 = scalar_lea.vmem [#allocation0], %s135
        %s137 = sand.u32 %s10, 1
        %s138 = sand.u32 %s10, 1
        %s139 = smul.addr %s138, 8
        %s140 = scalar_lea.vmem [#allocation1], %s139
        %p141 = pneg %p62
        %p142 = pneg %p59
        %s143 = sand.u32 %s49, 1
        %s144 = sand.u32 %s49, 1
        %s145 = smul.addr %s144, 2
        %s146 = scalar_lea.vmem [#allocation3], %s145
        %p147 = scmp.lt.s32.totalorder %s15, 0
        %s148 = ssub.s32 0, %s15
        %s149 = scalar_select %p147, %s148, %s15
        %s150 = sshrl.u32 %s149, 3
        %s151 = ssub.s32 0, %s150
        %s152 = scalar_select %p147, %s151, %s150
        %s153 = sand.u32 %s15, 7
        %s154 = scalar_lea.vmem [#allocation2], %s153
        %v155 = vld [vmem:[%s132] sm:$0xff]
        %156 = vst [vmem:[%s140] sm:$0xff] %v155
        %157 = vst [vmem:[%s154] sm:$0x1] 0.0
        loop: start=0, step=1, limit=8
        $region55: #{custom-call.10} parent=53 // loop_pre_header
          _
        $region56: #{custom-call.10} parent=53 // loop_header
          %s159 = sphi 0, %s163
          %p160 = scmp.ge.s32.totalorder %s159, 8
        $region57: #{custom-call.10} parent=53 // loop_header_branch
          %162 = sbr.rel (%p160) target = $region61
        $region58: #{custom-call.10} parent=53 // loop_body
          %v164 = vld [vmem:[%s140] sm:$0xff]
          %v165 = vlaneseq
          %v166 = vshrl.u32 %v165, 7
          %v168 = vstv %s159
          %vm169 = vcmp.gt.s32.totalorder %v166, %v168
          %vm170 = vcmp.lt.s32.totalorder %v166, 8
          %vm171 = vmand %vm169, %vm170
          %v172 = vsel %vm171, %v164, 0.0
          %v173 = vmul.f32 %v172, %v172
          %v174 = vrot.slane %v173, 4
          %v175 = vadd.f32 %v173, %v174
          %v176 = vrot.slane %v175, 2
          %v177 = vadd.f32 %v175, %v176
          %v178 = vrot.slane %v177, 1
          %v179 = vadd.f32 %v177, %v178
          %v180 = vrsqrt.pop %v179
          %v181 = vmul.f32 %v179, %v180
          %vm182 = vcmp.eq.f32.partialorder %v179, inf
          %v183 = vsel %vm182, %v179, %v181
          %vm184 = vcmp.eq.f32.partialorder %v179, 0.0
          %v185 = vand.u32 %v179, 2147483648
          %v186 = vsel %vm184, %v185, %v183
          %vm187 = vcmp.eq.f32.partialorder %v179, 0.0
          %s188 = sshrl.u32 %s159, 3
          %s189 = sand.u32 %s159, 7
          %s190 = smul.addr %s188, 8
          %s191 = sadd.s32 %s189, %s190
          %s192 = scalar_lea.vmem %s140, %s191 [#allocation1]
          %v193 = vld [vmem:[%s192] ss:$0 sm:$0xff]
          %v194 = vand.u32 2147483647, %v193
          %v195 = vmax.f32 %v194, 0.0
          %v196 = vand.u32 2147483647, %v186
          %v197 = vmax.f32 %v195, %v196
          %v198 = vrcp.pop %v197
          %v199 = vmul.f32 %v194, %v198
          %v200 = vmul.f32 %v199, %v199
          %v201 = vrcp.pop %v197
          %v202 = vmul.f32 0.0, %v201
          %v203 = vmul.f32 %v202, %v202
          %v204 = vadd.f32 %v200, %v203
          %v205 = vrcp.pop %v197
          %v206 = vmul.f32 %v196, %v205
          %v207 = vmul.f32 %v206, %v206
          %v208 = vadd.f32 %v204, %v207
          %vm209 = vcmp.eq.f32.partialorder %v197, 0.0
          %v210 = vrsqrt.pop %v208
          %v211 = vmul.f32 %v208, %v210
          %vm212 = vcmp.eq.f32.partialorder %v208, inf
          %v213 = vsel %vm212, %v208, %v211
          %vm214 = vcmp.eq.f32.partialorder %v208, 0.0
          %v215 = vand.u32 %v208, 2147483648
          %v216 = vsel %vm214, %v215, %v213
          %v217 = vmul.f32 %v197, %v216
          %v218 = vsel %vm209, 0.0, %v217
          %vm219 = vcmp.lt.f32.partialorder %v193, 0.0
          %v220 = vxor.u32 %v218, 2147483648
          %v221 = vsel %vm219, %v218, %v220
          %v222 = vsub.f32 %v221, %v193
          %v223 = vrcp.pop %v221
          %v224 = vmul.f32 %v222, %v223
          %v225 = vsel %vm187, %v193, %v221
          %v226 = vsel %vm187, 0.0, %v224
          %v227 = vsub.f32 %v193, %v225
          %s228 = smov %s140
          %v229 = vlaneseq
          %v230 = vshrl.u32 %v229, 7
          %v231 = vmov %v230
          %v232 = vld [vmem:[%s228] sm:$0xff]
          %v234 = vstv %s159
          %vm235 = vcmp.gt.s32.totalorder %v231, %v234
          %vm236 = vcmp.lt.s32.totalorder %v231, 8
          %vm237 = vmand %vm235, %vm236
          %v238 = vsel %vm237, %v232, 0.0
          %v239 = vrcp.pop %v227
          %v240 = vmul.f32 %v238, %v239
          %v241 = vsel %vm187, 0.0, %v240
          %v242 = vstv %s159
          %v243 = vlaneseq
          %v244 = vand.u32 %v243, 127
          %vm245 = vcmp.eq.s32.totalorder %v244, %v242
          %v246 = vsel %vm245, %v241, 0.0
          %247 = vadd.xlane.f32.xlu0 %v246
          %v248 = vpop.xlane.xlu0 %247
          %249 = vst [vmem:[#allocation4] sm:$0xff] %v248
          %s250 = scalar_lea.vmem [#allocation4], %s159
          %251 = vst [vmem:[%s250] sm:$0x1] 1.0
          %v252 = vstv %s159
          %v253 = vlaneseq
          %v254 = vand.u32 %v253, 127
          %vm255 = vcmp.eq.s32.totalorder %v254, %v252
          %v256 = vsel %vm255, %v226, 0.0
          %257 = vadd.xlane.f32.xlu0 %v256
          %v258 = vpop.xlane.xlu0 %257
          %v259 = vstv %s159
          %v260 = vlaneseq
          %v261 = vand.u32 %v260, 127
          %vm262 = vcmp.eq.s32.totalorder %v261, %v259
          %v263 = vld [vmem:[%s154] ss:$0 sm:$0xff]
          %v264 = vsel %vm262, %v258, %v263
          %265 = vst [vmem:[%s154] sm:$0x1] %v264
          %s266 = smov %s140
          %s267 = smov [#allocation4]
          %v268 = vlaneseq
          %v269 = vshrl.u32 %v268, 7
          %v270 = vmov %v269
          %v272 = vld [vmem:[%s267] sm:$0xff]
          %v273 = vld [vmem:[%s266] sm:$0xff]
          %v274 = vmul.f32 %v272, %v273
          %vm275 = vcmp.lt.s32.totalorder %v270, 8
          %v276 = vsel %vm275, %v274, 0.0
          %v277 = vrot.slane %v276, 4
          %v278 = vadd.f32 %v276, %v277
          %v279 = vrot.slane %v278, 2
          %v280 = vadd.f32 %v278, %v279
          %v281 = vrot.slane %v280, 1
          %v282 = vadd.f32 %v280, %v281
          %s283 = smov %s266
          %s284 = smov %s267
          %v285 = vlaneseq
          %v286 = vshrl.u32 %v285, 7
          %v287 = vmov %v286
          %v288 = vmul.f32 %v282, %v258
          %v290 = vlaneseq
          %v291 = vand.u32 %v290, 127
          %v292 = vld [vmem:[%s284] sm:$0xff]
          %v293 = vmul.f32 %v292, %v288
          %v294 = vld [vmem:[%s283] sm:$0xff]
          %v295 = vstv %s159
          %vm296 = vcmp.gt.s32.totalorder %v291, %v295
          %v297 = vsub.f32 %v294, %v293
          %v298 = vsel %vm296, %v297, %v294
          %v299 = vstv %s159
          %v300 = vlaneseq
          %v301 = vand.u32 %v300, 127
          %vm302 = vcmp.eq.s32.totalorder %v301, %v299
          %v303 = vstv %s159
          %vm304 = vcmp.ge.s32.totalorder %v287, %v303
          %vm305 = vmand %vm302, %vm304
          %v306 = vsel %vm305, %v292, %v298
          %307 = vst [vmem:[%s283] sm:$0xff] %v306
          %s308 = scalar_lea.vmem %s283, %s159
          %v309 = vld [vmem:[%s308] ss:$0 sm:$0xff]
          %v310 = vstv %s159
          %v311 = vlaneseq
          %v312 = vand.u32 %v311, 127
          %vm313 = vcmp.eq.s32.totalorder %v312, %v310
          %v314 = vsel %vm313, %v225, %v309
          %315 = vst [vmem:[%s308] sm:$0x1] %v314
        $region59: #{custom-call.10} parent=53 // loop_footer
          %s163 = sadd.s32 1, %s159
        $region60: #{custom-call.10} parent=53 // loop_footer_branch
          %158 = sbr.rel target = $region56
        $region61: #{custom-call.10} parent=53 // loop_exit
          _
        %s317 = sshll.u32 1, 2
        %s318 = ssub.s32 %s317, 1
        %v320 = vld [vmem:[#allocation2] sm:%s318]
        %s321 = sshll.u32 1, 2
        %s322 = ssub.s32 %s321, 1
        %323 = vst [vmem:[%s146] sm:%s322] %v320
        %s324 = sand.u32 %s10, 1
        %s325 = sand.u32 %s10, 1
        %s326 = smul.addr %s325, 8
        %s327 = scalar_lea.vmem [#allocation1], %s326
        %s328 = sand.u32 %s49, 1
        %s329 = sand.u32 %s49, 1
        %s330 = smul.addr %s329, 2
        %s331 = scalar_lea.vmem [#allocation3], %s330
        %s332 = sadd.s32 %s17, %s16
        %s333 = sadd.s32 %s332, %s15
        %s334 = smul.addr %s333, 8
        %s335 = scalar_lea.vmem %s1, %s334
        // Predicated region
        $region62: #{custom-call.10} parent=53 // pred_check
          _
        $region63: #{custom-call.10} parent=53 // pred_check_branch
          %337 = sbr.rel (0) target = $region65
        $region64: #{custom-call.10} parent=53 // pred_region
          // Predicated region
          $region66: #{custom-call.10} parent=64 // pred_check
            _
          $region67: #{custom-call.10} parent=64 // pred_check_branch
            %339 = sbr.rel (0) target = $region69
          $region68: #{custom-call.10} parent=64 // pred_region
            // Predicated region
            $region81: #{custom-call.10} parent=68 // pred_check
              _
            $region82: #{custom-call.10} parent=68 // pred_check_branch
              %355 = sbr.rel (0) target = $region84
            $region83: #{custom-call.10} parent=68 // pred_region
              loop: start=0, step=1, limit=1
              $region85: #{custom-call.10} parent=83 // loop_pre_header
                _
              $region86: #{custom-call.10} parent=83 // loop_header
                %s357 = sphi 0, %s361
                %p358 = scmp.ge.s32.totalorder %s357, 1
                %s362 = sphi %s327, %s327
                %s363 = sphi %s335, %s335
              $region87: #{custom-call.10} parent=83 // loop_header_branch
                %360 = sbr.rel (%p358) target = $region91
              $region88: #{custom-call.10} parent=83 // loop_body
                %v364 = vld [vmem:[%s362] sm:$0xff]
                %365 = vst [vmem:[%s363] sm:$0xff] %v364
              $region89: #{custom-call.10} parent=83 // loop_footer
                %s361 = sadd.s32 1, %s357
              $region90: #{custom-call.10} parent=83 // loop_footer_branch
                %356 = sbr.rel target = $region86
              $region91: #{custom-call.10} parent=83 // loop_exit
                _
            $region84: #{custom-call.10} parent=68 // pred_fallthru
              _
            // Predicated region
            $region92: #{custom-call.10} parent=68 // pred_check
              _
            $region93: #{custom-call.10} parent=68 // pred_check_branch
              %367 = sbr.rel target = $region95
            $region94: #{custom-call.10} parent=68 // pred_region
              _
            $region95: #{custom-call.10} parent=68 // pred_fallthru
              _
          $region69: #{custom-call.10} parent=64 // pred_fallthru
            _
          // Predicated region
          $region70: #{custom-call.10} parent=64 // pred_check
            _
          $region71: #{custom-call.10} parent=64 // pred_check_branch
            %341 = sbr.rel target = $region73
          $region72: #{custom-call.10} parent=64 // pred_region
            %s343 = ssub.s32 256, 1
            loop: start=0, step=1, limit=1
            $region74: #{custom-call.10} parent=72 // loop_pre_header
              _
            $region75: #{custom-call.10} parent=72 // loop_header
              %s345 = sphi 0, %s349
              %p346 = scmp.ge.s32.totalorder %s345, 1
              %s350 = sphi %s327, %s327
              %s351 = sphi %s335, %s335
            $region76: #{custom-call.10} parent=72 // loop_header_branch
              %348 = sbr.rel (%p346) target = $region80
            $region77: #{custom-call.10} parent=72 // loop_body
              %v352 = vld [vmem:[%s350] sm:%s343]
              %353 = vst [vmem:[%s351] sm:%s343] %v352
            $region78: #{custom-call.10} parent=72 // loop_footer
              %s349 = sadd.s32 1, %s345
            $region79: #{custom-call.10} parent=72 // loop_footer_branch
              %344 = sbr.rel target = $region75
            $region80: #{custom-call.10} parent=72 // loop_exit
              _
          $region73: #{custom-call.10} parent=64 // pred_fallthru
            _
        $region65: #{custom-call.10} parent=53 // pred_fallthru
          _
        %368 = vnop
        // Predicated region
        $region96: #{custom-call.10} parent=53 // pred_check
          %p369 = pneg %p59
        $region97: #{custom-call.10} parent=53 // pred_check_branch
          %371 = sbr.rel (%p369) target = $region99
        $region98: #{custom-call.10} parent=53 // pred_region
          %p372 = scmp.lt.s32.totalorder %s15, 0
          %s373 = ssub.s32 0, %s15
          %s374 = scalar_select %p372, %s373, %s15
          %s375 = sshrl.u32 %s374, 3
          %s376 = ssub.s32 0, %s375
          %s377 = scalar_select %p372, %s376, %s375
          %s378 = smul.addr %s377, 2
          %s379 = scalar_lea.vmem %s2, %s378
          // Predicated region
          $region100: #{custom-call.10} parent=98 // pred_check
            _
          $region101: #{custom-call.10} parent=98 // pred_check_branch
            %381 = sbr.rel (0) target = $region103
          $region102: #{custom-call.10} parent=98 // pred_region
            // Predicated region
            $region104: #{custom-call.10} parent=102 // pred_check
              _
            $region105: #{custom-call.10} parent=102 // pred_check_branch
              %383 = sbr.rel target = $region107
            $region106: #{custom-call.10} parent=102 // pred_region
              // Predicated region
              $region119: #{custom-call.10} parent=106 // pred_check
                _
              $region120: #{custom-call.10} parent=106 // pred_check_branch
                %399 = sbr.rel (0) target = $region122
              $region121: #{custom-call.10} parent=106 // pred_region
                %s401 = ssub.s32 4, 1
                loop: start=0, step=1, limit=1
                $region123: #{custom-call.10} parent=121 // loop_pre_header
                  _
                $region124: #{custom-call.10} parent=121 // loop_header
                  %s403 = sphi 0, %s407
                  %p404 = scmp.ge.s32.totalorder %s403, 1
                  %s408 = sphi %s331, %s331
                  %s409 = sphi %s379, %s379
                $region125: #{custom-call.10} parent=121 // loop_header_branch
                  %406 = sbr.rel (%p404) target = $region129
                $region126: #{custom-call.10} parent=121 // loop_body
                  %v410 = vld [vmem:[%s408] sm:%s401]
                  %411 = vst [vmem:[%s409] sm:%s401] %v410
                $region127: #{custom-call.10} parent=121 // loop_footer
                  %s407 = sadd.s32 1, %s403
                $region128: #{custom-call.10} parent=121 // loop_footer_branch
                  %402 = sbr.rel target = $region124
                $region129: #{custom-call.10} parent=121 // loop_exit
                  _
              $region122: #{custom-call.10} parent=106 // pred_fallthru
                _
            $region107: #{custom-call.10} parent=102 // pred_fallthru
              _
            // Predicated region
            $region108: #{custom-call.10} parent=102 // pred_check
              _
            $region109: #{custom-call.10} parent=102 // pred_check_branch
              %385 = sbr.rel (0) target = $region111
            $region110: #{custom-call.10} parent=102 // pred_region
              %s387 = ssub.s32 4, 1
              loop: start=0, step=1, limit=1
              $region112: #{custom-call.10} parent=110 // loop_pre_header
                _
              $region113: #{custom-call.10} parent=110 // loop_header
                %s389 = sphi 0, %s393
                %p390 = scmp.ge.s32.totalorder %s389, 1
                %s394 = sphi %s331, %s331
                %s395 = sphi %s379, %s379
              $region114: #{custom-call.10} parent=110 // loop_header_branch
                %392 = sbr.rel (%p390) target = $region118
              $region115: #{custom-call.10} parent=110 // loop_body
                %v396 = vld [vmem:[%s394] sm:%s387]
                %397 = vst [vmem:[%s395] sm:%s387] %v396
              $region116: #{custom-call.10} parent=110 // loop_footer
                %s393 = sadd.s32 1, %s389
              $region117: #{custom-call.10} parent=110 // loop_footer_branch
                %388 = sbr.rel target = $region113
              $region118: #{custom-call.10} parent=110 // loop_exit
                _
            $region111: #{custom-call.10} parent=102 // pred_fallthru
              _
          $region103: #{custom-call.10} parent=98 // pred_fallthru
            _
          %412 = vnop
        $region99: #{custom-call.10} parent=53 // pred_fallthru
          _
      $region54: #{custom-call.10} parent=5 // pred_fallthru
        _
      %p413 = scmp.le.s32.totalorder 2, %s5
      // Predicated region
      $region130: #{custom-call.10} parent=5 // pred_check
        %p414 = pneg %p413
      $region131: #{custom-call.10} parent=5 // pred_check_branch
        %416 = sbr.rel (%p414) target = $region133
      $region132: #{custom-call.10} parent=5 // pred_region
        %s417 = ssub.s32 %s5, 2
        %s418 = sand.u32 %s11, 1
        %s419 = sand.u32 %s11, 1
        %s420 = smul.addr %s419, 8
        %s421 = scalar_lea.vmem [#allocation1], %s420
        // Predicated region
        $region134: #{custom-call.10} parent=132 // pred_check
          %p422 = pneg %p65
        $region135: #{custom-call.10} parent=132 // pred_check_branch
          %424 = sbr.rel (%p422) target = $region137
        $region136: #{custom-call.10} parent=132 // pred_region
          %s425 = sand.u32 %s50, 1
          %s426 = sand.u32 %s50, 1
          %s427 = smul.addr %s426, 2
          %s428 = scalar_lea.vmem [#allocation3], %s427
        $region137: #{custom-call.10} parent=132 // pred_fallthru
          _
      $region133: #{custom-call.10} parent=5 // pred_fallthru
        _
    $region6: #{custom-call.10} parent=1 // loop_footer
      %s9 = sadd.s32 1, %s5
    $region7: #{custom-call.10} parent=1 // loop_footer_branch
      %4 = sbr.rel target = $region3
    $region8: #{custom-call.10} parent=1 // loop_exit
      _

// kernel: f_svd_net_forward.1
$region0: #{f_svd_net_forward.1}
  #allocation0 [shape = 'u32[]', space=smem, size = 0x4, offset = 0x4, fixed_abs, tag = 'smem constant byte address 0x4 - core index']
  #allocation1 [shape = 'u32[144,128]{1,0:T(1,128)}', space=vmem, size = 0x12000, scoped, tag = 'internal scratch']
  %s0 = inlined_call_operand.vmem [shape: f32[9,32], index: 0, kind: input, shape index: {}]
  %s1 = inlined_call_operand.vmem [shape: f32[8,16], index: 1, kind: input, shape index: {}]
  %s2 = inlined_call_operand.vmem [shape: f32[16,32], index: 2, kind: input, shape index: {}]
  %s3 = inlined_call_operand.vmem [shape: f32[4,16], index: 3, kind: input, shape index: {}]
  %s4 = inlined_call_operand.vmem [shape: f32[4,32], index: 4, kind: output, shape index: {}]
  %s5 = sld [smem:[#allocation0]]
  $region26: #{f_svd_net_forward.1} parent=0
    _
  %s7 = ssub.s32 1, %s5
  %s8 = scalar_select 0, %s7, %s5
  // Predicated region
  $region2: #{f_svd_net_forward.1} parent=0 // pred_check
    _
  $region3: #{f_svd_net_forward.1} parent=0 // pred_check_branch
    %10 = sbr.rel (0) target = $region5
  $region4: #{f_svd_net_forward.1} parent=0 // pred_region
    _
  $region5: #{f_svd_net_forward.1} parent=0 // pred_fallthru
    _
  // Predicated region
  $region6: #{f_svd_net_forward.1} parent=0 // pred_check
    _
  $region7: #{f_svd_net_forward.1} parent=0 // pred_check_branch
    %12 = sbr.rel (0) target = $region9
  $region8: #{f_svd_net_forward.1} parent=0 // pred_region
    _
  $region9: #{f_svd_net_forward.1} parent=0 // pred_fallthru
    _
  // Predicated region
  $region10: #{f_svd_net_forward.1} parent=0 // pred_check
    _
  $region11: #{f_svd_net_forward.1} parent=0 // pred_check_branch
    %14 = sbr.rel (0) target = $region13
  $region12: #{f_svd_net_forward.1} parent=0 // pred_region
    _
  $region13: #{f_svd_net_forward.1} parent=0 // pred_fallthru
    _
  // Predicated region
  $region14: #{f_svd_net_forward.1} parent=0 // pred_check
    _
  $region15: #{f_svd_net_forward.1} parent=0 // pred_check_branch
    %16 = sbr.rel (0) target = $region17
  $region16: #{f_svd_net_forward.1} parent=0 // pred_region
    _
  $region17: #{f_svd_net_forward.1} parent=0 // pred_fallthru
    _
  %v17 = vld [vmem:[%s0] sm:$0xff]
  %v18 = vld [vmem:[%s0 + $0x8] sm:$0x1]
  %v19 = vld [vmem:[%s1] sm:$0xff]
  %v20 = vld [vmem:[%s2] sm:$0xff]
  %v21 = vld [vmem:[%s2 + $0x8] sm:$0xff]
  %vm22 = vcmask 130048
  %v24 = vsel %vm22, %v19, 0
  %26 = vmatprep.subr.mxu0 0.0
  %27 = vmatpush1.msra.mxu0 0.0
  %28 = vmatprep.subr.mxu0 0.0
  %29 = vmatpush1.msra.mxu0 0.0
  %30 = vmatprep.subr.mxu0 0.0
  %31 = vmatpush1.msra.mxu0 0.0
  %32 = vmatprep.subr.mxu0 0.0
  %33 = vmatpush1.msra.mxu0 0.0
  %34 = vmatprep.subr.mxu0 0.0
  %35 = vmatpush1.msra.mxu0 0.0
  %36 = vmatprep.subr.mxu0 0.0
  %37 = vmatpush1.msra.mxu0 0.0
  %38 = vmatprep.subr.mxu0 0.0
  %39 = vmatpush1.msra.mxu0 0.0
  %40 = vmatprep.subr.mxu0 0.0
  %41 = vmatpush1.msra.mxu0 0.0
  %42 = vmatprep.subr.mxu0 0.0
  %43 = vmatpush1.msra.mxu0 0.0
  %44 = vmatprep.subr.mxu0 0.0
  %45 = vmatpush1.msra.mxu0 0.0
  %46 = vmatprep.subr.mxu0 0.0
  %47 = vmatpush1.msra.mxu0 0.0
  %48 = vmatprep.subr.mxu0 0.0
  %49 = vmatpush1.msra.mxu0 0.0
  %50 = vmatprep.subr.mxu0 0.0
  %51 = vmatpush1.msra.mxu0 0.0
  %52 = vmatprep.subr.mxu0 0.0
  %53 = vmatpush1.msra.mxu0 0.0
  %54 = vmatprep.subr.mxu0 0.0
  %55 = vmatpush1.msra.mxu0 %v21
  %56 = vmatprep.subr.mxu0 0.0
  %57 = vmatpush1.msra.mxu0 %v20
  %58 = vmatprep.subr.mxu0 0.0
  %59 = vmatpush2.msra.mxu0 0.0
  %60 = vmatprep.subr.mxu0 0.0
  %61 = vmatpush2.msra.mxu0 0.0
  %62 = vmatprep.subr.mxu0 0.0
  %63 = vmatpush2.msra.mxu0 0.0
  %64 = vmatprep.subr.mxu0 0.0
  %65 = vmatpush2.msra.mxu0 0.0
  %66 = vmatprep.subr.mxu0 0.0
  %67 = vmatpush2.msra.mxu0 0.0
  %68 = vmatprep.subr.mxu0 0.0
  %69 = vmatpush2.msra.mxu0 0.0
  %70 = vmatprep.subr.mxu0 0.0
  %71 = vmatpush2.msra.mxu0 0.0
  %72 = vmatprep.subr.mxu0 0.0
  %73 = vmatpush2.msra.mxu0 0.0
  %74 = vmatprep.subr.mxu0 0.0
  %75 = vmatpush2.msra.mxu0 0.0
  %76 = vmatprep.subr.mxu0 0.0
  %77 = vmatpush2.msra.mxu0 0.0
  %78 = vmatprep.subr.mxu0 0.0
  %79 = vmatpush2.msra.mxu0 0.0
  %80 = vmatprep.subr.mxu0 0.0
  %81 = vmatpush2.msra.mxu0 0.0
  %82 = vmatprep.subr.mxu0 0.0
  %83 = vmatpush2.msra.mxu0 0.0
  %84 = vmatprep.subr.mxu0 0.0
  %85 = vmatpush2.msra.mxu0 0.0
  %86 = vmatprep.subr.mxu0 0.0
  %87 = vmatpush2.msra.mxu0 0.0
  %88 = vmatprep.subr.mxu0 0.0
  %89 = vmatpush2.msra.mxu0 0.0
  %90 = vmatprep.mubr.f32.mxu0 0.0
  %91 = vmatmul.mubr.f32.gmra.mxu0 %v24
  %v92 = vpop.f32.mrf.mxu0
  %v93 = vadd.f32 0.0, %v92
  %v94 = vpop.f32.mrf.mxu0
  %95 = vdwg.mxu0
  %v96 = vand.u32 2147483647, %v93
  %vm97 = vcmp.le.f32.partialorder %v96, 0.7853982
  %vm98 = vcmp.lt.s32.totalorder %v93, 0
  %v99 = vand.u32 %v93, 2139095040
  %v100 = vshrl.u32 %v99, 23
  %v101 = vsub.s32 %v100, 127
  %v102 = vand.u32 2147483647, %v93
  %v103 = vand.u32 %v102, 8388607
  %v104 = vor.u32 %v103, 8388608
  %v105 = vsub.s32 0, %v104
  %v106 = vadd.s32 %v101, 1
  %vm107 = vcmp.gt.s32.totalorder %v106, 0
  %v108 = vsel %vm107, %v106, 0
  %v109 = vshrl.u32 %v108, 5
  %v110 = vand.u32 %v108, 31
  %v111 = vsub.s32 32, %v110
  %v112 = vshrl.u32 683565275, %v111
  %v113 = vshll.u32 683565275, %v110
  %v114 = vshrl.u32 2475754826, %v111
  %v115 = vor.u32 %v113, %v114
  %v116 = vshll.u32 2475754826, %v110
  %v117 = vshrl.u32 2131351028, %v111
  %v118 = vor.u32 %v116, %v117
  %v119 = vshll.u32 2131351028, %v110
  %v120 = vshrl.u32 2102212464, %v111
  %v121 = vor.u32 %v119, %v120
  %v122 = vshll.u32 2102212464, %v110
  %v123 = vshrl.u32 920167782, %v111
  %v124 = vor.u32 %v122, %v123
  %v125 = vshll.u32 920167782, %v110
  %v126 = vshrl.u32 1326507024, %v111
  %v127 = vor.u32 %v125, %v126
  %vm128 = vcmp.lt.s32.totalorder %v109, 1
  %vm129 = vcmp.lt.s32.totalorder %v109, 2
  %vm130 = vcmp.lt.s32.totalorder %v109, 3
  %vm131 = vcmp.lt.s32.totalorder %v109, 4
  %v132 = vsel %vm128, %v112, %v115
  %v133 = vsel %vm131, %v121, 2102212464
  %v134 = vsel %vm130, %v118, %v133
  %v135 = vsel %vm129, %v132, %v134
  %v136 = vsel %vm128, %v115, %v118
  %v137 = vsel %vm131, %v124, 920167782
  %v138 = vsel %vm130, %v121, %v137
  %v139 = vsel %vm129, %v136, %v138
  %v140 = vsel %vm128, %v118, %v121
  %v141 = vsel %vm131, %v127, 1326507024
  %v142 = vsel %vm130, %v124, %v141
  %v143 = vsel %vm129, %v140, %v142
  %v144 = vshll.u32 %v104, 8
  %v145 = vmul.u32.u64.compose %v144, %v143
  %v146 = vextract.low.u32 %v145
  %v147 = vextract.high.u32 %v145
  %v148 = vmul.u32.u64.compose %v144, %v139
  %v149 = vextract.low.u32 %v148
  %v150 = vextract.high.u32 %v148
  %v151 = vmul.u32 %v144, %v135
  %v152 = vadd.s32 %v147, %v149
  %vm153 = vc.u32 %v147, %v149
  %v154 = vadd.s32 %v150, 1
  %v155 = vsel %vm153, %v154, %v150
  %v156 = vadd.s32 %v151, %v155
  %v157 = vadd.s32 %v156, 536870912
  %v158 = vshrl.u32 %v157, 30
  %v159 = vshll.u32 %v158, 30
  %v160 = vsub.s32 %v156, %v159
  %vm161 = vcmp.lt.s32.totalorder %v160, 0
  %v162 = vsub.s32 0, %v160
  %v163 = vsel %vm161, %v162, %v160
  %v164 = vclz %v163
  %v165 = vsub.s32 %v164, 2
  %vm166 = vcmp.gt.s32.totalorder 0, %v165
  %v167 = vsel %vm166, 0, %v165
  %v168 = vsub.s32 32, %v167
  %v169 = vshll.u32 %v160, %v167
  %v170 = vshrl.u32 %v152, %v168
  %v171 = vor.u32 %v169, %v170
  %v172 = vsub.s32 4294967266, %v167
  %v173 = vadd.s32 %v172, 127
  %v174 = vshll.u32 %v173, 23
  %v175 = vor.u32 4788187, %v174
  %v176 = vand.u32 2147483647, %v175
  %v178 = vcvt.s32.f32 %v171
  %v179 = vmul.f32 %v178, %v176
  %v180 = vxor.u32 %v179, 2147483648
  %v181 = vsel %vm98, %v180, %v179
  %v182 = vsub.s32 4, %v158
  %v183 = vsel %vm98, %v182, %v158
  %v184 = vsel %vm97, %v93, %v181
  %v185 = vsel %vm97, 0, %v183
  %v186 = vcosq.f32.pop %v184
  %v187 = vsinq.f32.pop %v184
  %vm188 = vweird.f32 %v93
  %v189 = vadd.s32 %v185, 3
  %v190 = vand.u32 %v189, 3
  %vm191 = vcmp.lt.s32.totalorder %v190, 2
  %vm192 = vcmp.eq.s32.totalorder %v190, 0
  %v193 = vxor.u32 %v187, 2147483648
  %v194 = vsel %vm192, %v186, %v193
  %vm195 = vcmp.eq.s32.totalorder %v190, 2
  %v196 = vxor.u32 %v186, 2147483648
  %v197 = vsel %vm195, %v196, %v187
  %v198 = vsel %vm191, %v194, %v197
  %v199 = vsel %vm188, nan, %v198
  %v200 = vld [vmem:[%s3] sm:$0xf]
  %v201 = vlaneseq
  %v202 = vshrl.u32 %v201, 7
  %v203 = vsub.s32 0, %v202
  %v204 = vrot.slane %v18, %v203
  %v206 = vsel %vm22, %v200, 0
  %208 = vmatprep.subr.mxu0 0.0
  %209 = vmatpush1.msra.mxu0 0.0
  %210 = vmatprep.subr.mxu0 0.0
  %211 = vmatpush1.msra.mxu0 0.0
  %212 = vmatprep.subr.mxu0 0.0
  %213 = vmatpush1.msra.mxu0 0.0
  %214 = vmatprep.subr.mxu0 0.0
  %215 = vmatpush1.msra.mxu0 0.0
  %216 = vmatprep.subr.mxu0 0.0
  %217 = vmatpush1.msra.mxu0 0.0
  %218 = vmatprep.subr.mxu0 0.0
  %219 = vmatpush1.msra.mxu0 0.0
  %220 = vmatprep.subr.mxu0 0.0
  %221 = vmatpush1.msra.mxu0 0.0
  %222 = vmatprep.subr.mxu0 0.0
  %223 = vmatpush1.msra.mxu0 0.0
  %224 = vmatprep.subr.mxu0 0.0
  %225 = vmatpush1.msra.mxu0 0.0
  %226 = vmatprep.subr.mxu0 0.0
  %227 = vmatpush1.msra.mxu0 0.0
  %228 = vmatprep.subr.mxu0 0.0
  %229 = vmatpush1.msra.mxu0 0.0
  %230 = vmatprep.subr.mxu0 0.0
  %231 = vmatpush1.msra.mxu0 0.0
  %232 = vmatprep.subr.mxu0 0.0
  %233 = vmatpush1.msra.mxu0 0.0
  %234 = vmatprep.subr.mxu0 0.0
  %235 = vmatpush1.msra.mxu0 0.0
  %236 = vmatprep.subr.mxu0 0.0
  %237 = vmatpush1.msra.mxu0 %v199
  %238 = vmatprep.subr.mxu0 0.0
  %239 = vmatpush1.msra.mxu0 %v17
  %240 = vmatprep.subr.mxu0 0.0
  %241 = vmatpush2.msra.mxu0 0.0
  %242 = vmatprep.subr.mxu0 0.0
  %243 = vmatpush2.msra.mxu0 0.0
  %244 = vmatprep.subr.mxu0 0.0
  %245 = vmatpush2.msra.mxu0 0.0
  %246 = vmatprep.subr.mxu0 0.0
  %247 = vmatpush2.msra.mxu0 0.0
  %248 = vmatprep.subr.mxu0 0.0
  %249 = vmatpush2.msra.mxu0 0.0
  %250 = vmatprep.subr.mxu0 0.0
  %251 = vmatpush2.msra.mxu0 0.0
  %252 = vmatprep.subr.mxu0 0.0
  %253 = vmatpush2.msra.mxu0 0.0
  %254 = vmatprep.subr.mxu0 0.0
  %255 = vmatpush2.msra.mxu0 0.0
  %256 = vmatprep.subr.mxu0 0.0
  %257 = vmatpush2.msra.mxu0 0.0
  %258 = vmatprep.subr.mxu0 0.0
  %259 = vmatpush2.msra.mxu0 0.0
  %260 = vmatprep.subr.mxu0 0.0
  %261 = vmatpush2.msra.mxu0 0.0
  %262 = vmatprep.subr.mxu0 0.0
  %263 = vmatpush2.msra.mxu0 0.0
  %264 = vmatprep.subr.mxu0 0.0
  %265 = vmatpush2.msra.mxu0 0.0
  %266 = vmatprep.subr.mxu0 0.0
  %267 = vmatpush2.msra.mxu0 0.0
  %268 = vmatprep.subr.mxu0 0.0
  %269 = vmatpush2.msra.mxu0 0.0
  %270 = vmatprep.subr.mxu0 0.0
  %271 = vmatpush2.msra.mxu0 0.0
  %272 = vmatprep.mubr.f32.mxu0 0.0
  %273 = vmatmul.mubr.f32.gmra.mxu0 %v206
  %v274 = vpop.f32.mrf.mxu0
  %v275 = vadd.f32 %v204, %v274
  %v276 = vpop.f32.mrf.mxu0
  %277 = vdwg.mxu0
  %vm278 = vcmask 257024
  %279 = vst.msk [vmem:[%s4] sm:$0xf] %vm278, %v275
  // Predicated region
  $region18: #{f_svd_net_forward.1} parent=0 // pred_check
    _
  $region19: #{f_svd_net_forward.1} parent=0 // pred_check_branch
    %281 = sbr.rel (0) target = $region21
  $region20: #{f_svd_net_forward.1} parent=0 // pred_region
    _
  $region21: #{f_svd_net_forward.1} parent=0 // pred_fallthru
    _
  // Predicated region
  $region22: #{f_svd_net_forward.1} parent=0 // pred_check
    _
  $region23: #{f_svd_net_forward.1} parent=0 // pred_check_branch
    %283 = sbr.rel (0) target = $region25
  $region24: #{f_svd_net_forward.1} parent=0 // pred_region
    _
  $region25: #{f_svd_net_forward.1} parent=0 // pred_fallthru
    _

</llo_original>
